<compile_context>
chip_gen: v6e
topology: v6e:2x2x1
jax: 0.10.0
libtpu: 0.0.40
codegen_flags: <defaults>
</compile_context>

<pallas_src>
import functools

import jax
import jax.numpy as jnp
from jax import lax
from jax.experimental import pallas as pl
from jax.experimental.pallas import tpu as pltpu

EPS = 1e-5
LEAKY_SLOPE = 0.2
LANE = 128
VMEM_LIMIT = 32 << 20  # conservative: fits v7x's smaller VMEM as well


# ----------------------------------------------------------------------------
# Pallas kernels
# ----------------------------------------------------------------------------
def _conv_act_kernel(x_ref, w_ref, o_ref, *, act, alpha):
    """One M-tile: bf16 MXU matmul, f32 accumulate, fused activation epilogue."""
    acc = jnp.dot(x_ref[...], w_ref[...], preferred_element_type=jnp.float32)
    if act == "leaky":
        acc = jnp.where(acc >= 0, acc, alpha * acc)
    elif act == "sigmoid":
        acc = jax.nn.sigmoid(acc)
    o_ref[...] = acc.astype(o_ref.dtype)


def conv_act_matmul(patches, w_pad, act, alpha=LEAKY_SLOPE):
    """patches [M, K] (bf16) @ w_pad [K, Np] (bf16, Np multiple of 128)."""
    M, K = patches.shape
    K2, Np = w_pad.shape
    assert K == K2 and Np % LANE == 0
    tm = M
    for cand in (2048, 1024, 512, 256, 128):
        if M % cand == 0:
            tm = cand
            break
    grid = (M // tm,)
    return pl.pallas_call(
        functools.partial(_conv_act_kernel, act=act, alpha=alpha),
        out_shape=jax.ShapeDtypeStruct((M, Np), jnp.float32),
        grid_spec=pltpu.PrefetchScalarGridSpec(
            num_scalar_prefetch=0,
            grid=grid,
            in_specs=[
                pl.BlockSpec((tm, K), lambda i: (i, 0)),
                pl.BlockSpec((K, Np), lambda i: (0, 0)),
            ],
            out_specs=pl.BlockSpec((tm, Np), lambda i: (i, 0)),
        ),
        compiler_params=pltpu.CompilerParams(
            dimension_semantics=("parallel",),
            vmem_limit_bytes=VMEM_LIMIT,
        ),
    )(patches, w_pad)


def _conv_bn_leaky_kernel(x_ref, w_ref, g_ref, b_ref, o_ref, *, eps, alpha, m_rows):
    """Fused Conv (matmul) + BatchNorm (training-mode batch stats, biased var)
    + LeakyReLU.  Whole M lives in one block, so stats are computed in-kernel.
    Padded (zero) channels stay exactly zero because diff == 0 and beta_pad == 0.
    """
    acc = jnp.dot(x_ref[...], w_ref[...], preferred_element_type=jnp.float32)  # [M, Np]
    inv_m = 1.0 / float(m_rows)
    mean = jnp.sum(acc, axis=0, keepdims=True) * inv_m
    diff = acc - mean
    var = jnp.sum(diff * diff, axis=0, keepdims=True) * inv_m
    y = diff * lax.rsqrt(var + eps) * g_ref[...] + b_ref[...]
    o_ref[...] = jnp.where(y >= 0, y, alpha * y).astype(o_ref.dtype)


def conv_bn_leaky_matmul(patches, w_pad, gamma_pad, beta_pad,
                         eps=EPS, alpha=LEAKY_SLOPE):
    M, K = patches.shape
    _, Np = w_pad.shape
    return pl.pallas_call(
        functools.partial(_conv_bn_leaky_kernel, eps=eps, alpha=alpha, m_rows=M),
        out_shape=jax.ShapeDtypeStruct((M, Np), jnp.float32),
        grid_spec=pltpu.PrefetchScalarGridSpec(
            num_scalar_prefetch=0,
            grid=(1,),
            in_specs=[
                pl.BlockSpec((M, K), lambda i: (0, 0)),
                pl.BlockSpec((K, Np), lambda i: (0, 0)),
                pl.BlockSpec((1, Np), lambda i: (0, 0)),
                pl.BlockSpec((1, Np), lambda i: (0, 0)),
            ],
            out_specs=pl.BlockSpec((M, Np), lambda i: (0, 0)),
        ),
        compiler_params=pltpu.CompilerParams(
            dimension_semantics=("arbitrary",),
            vmem_limit_bytes=VMEM_LIMIT,
        ),
    )(patches, w_pad, gamma_pad, beta_pad)


# ----------------------------------------------------------------------------
# Glue: NHWC im2col (data movement only) + weight repacking + block composition
# ----------------------------------------------------------------------------
def im2col_nhwc(x_nhwc, k, stride, pad):
    """x: [N, H, W, C] -> patches [N*Hout*Wout, k*k*C] (ordering: ky, kx, c)."""
    N, H, W, C = x_nhwc.shape
    Hout = (H + 2 * pad - k) // stride + 1
    Wout = (W + 2 * pad - k) // stride + 1
    xp = jnp.pad(x_nhwc, ((0, 0), (pad, pad), (pad, pad), (0, 0)))
    slabs = []
    for ky in range(k):
        for kx in range(k):
            slabs.append(
                xp[:, ky: ky + stride * Hout: stride,
                      kx: kx + stride * Wout: stride, :]
            )
    p = jnp.stack(slabs, axis=3)                       # [N, Hout, Wout, k*k, C]
    return p.reshape(N * Hout * Wout, k * k * C), Hout, Wout


def _round_up(n, m):
    return -(-n // m) * m


def prep_weight(w_oihw):
    """PyTorch [Cout, Cin, kh, kw] -> [kh*kw*Cin, Np] bf16, Np padded to 128."""
    Cout, Cin, kh, kw = w_oihw.shape
    Np = _round_up(Cout, LANE)
    wm = jnp.transpose(w_oihw, (2, 3, 1, 0)).reshape(kh * kw * Cin, Cout)
    wm = jnp.pad(wm, ((0, 0), (0, Np - Cout)))
    return wm.astype(jnp.bfloat16), Np


def conv_block(x_nhwc, w_oihw, stride, pad, *, act=None, gamma=None, beta=None):
    """One Conv2d(bias=False) block; returns [N, Hout, Wout, Np] (Np lane-padded)
    plus the number of valid channels Cout."""
    Cout = w_oihw.shape[0]
    k = w_oihw.shape[2]
    patches, Hout, Wout = im2col_nhwc(x_nhwc, k, stride, pad)
    patches = patches.astype(jnp.bfloat16)
    w_pad, Np = prep_weight(w_oihw)
    if gamma is not None:
        gp = jnp.pad(gamma.astype(jnp.float32), (0, Np - Cout),
                     constant_values=1.0).reshape(1, Np)
        bp = jnp.pad(beta.astype(jnp.float32), (0, Np - Cout)).reshape(1, Np)
        y = conv_bn_leaky_matmul(patches, w_pad, gp, bp)
    else:
        y = conv_act_matmul(patches, w_pad, act)
    N = x_nhwc.shape[0]
    return y.reshape(N, Hout, Wout, Np), Cout


# ----------------------------------------------------------------------------
# Discriminator: parameter init (matches _init_weights) and forward
# ----------------------------------------------------------------------------
def init_params(key, n_channels, nf):
    ks = jax.random.split(key, 7)
    p = {}
    p["w1"] = 0.02 * jax.random.normal(ks[0], (nf, n_channels, 4, 4), jnp.float32)
    p["w2"] = 0.02 * jax.random.normal(ks[1], (nf * 2, nf, 4, 4), jnp.float32)
    p["g2"] = 1.0 + 0.02 * jax.random.normal(ks[2], (nf * 2,), jnp.float32)
    p["b2"] = jnp.zeros((nf * 2,), jnp.float32)
    p["w3"] = 0.02 * jax.random.normal(ks[3], (nf * 4, nf * 2, 4, 4), jnp.float32)
    p["g3"] = 1.0 + 0.02 * jax.random.normal(ks[4], (nf * 4,), jnp.float32)
    p["b3"] = jnp.zeros((nf * 4,), jnp.float32)
    p["w4"] = 0.02 * jax.random.normal(ks[5], (nf * 8, nf * 4, 4, 4), jnp.float32)
    p["g4"] = 1.0 + 0.02 * jax.random.normal(ks[6], (nf * 8,), jnp.float32)
    p["b4"] = jnp.zeros((nf * 8,), jnp.float32)
    p["w5"] = 0.02 * jax.random.normal(jax.random.fold_in(key, 99),
                                       (1, nf * 8, 4, 4), jnp.float32)
    return p


@jax.jit
def discriminator_forward(x_nchw, params):
    # Single NCHW -> NHWC transpose at the boundary; NHWC everywhere else.
    x = jnp.transpose(x_nchw, (0, 2, 3, 1))
    # block 1: conv(s=2,p=1) + LeakyReLU(0.2)   (fused)
    x, c = conv_block(x, params["w1"], 2, 1, act="leaky")
    x = x[..., :c]
    # blocks 2-4: conv + BatchNorm (batch stats) + LeakyReLU  (single kernel each)
    x, c = conv_block(x, params["w2"], 2, 1, gamma=params["g2"], beta=params["b2"])
    x = x[..., :c]
    x, c = conv_block(x, params["w3"], 2, 1, gamma=params["g3"], beta=params["b3"])
    x = x[..., :c]
    x, c = conv_block(x, params["w4"], 2, 1, gamma=params["g4"], beta=params["b4"])
    x = x[..., :c]
    # block 5: conv(k=4,s=1,p=0) + Sigmoid  (fused)
    y, c = conv_block(x, params["w5"], 1, 0, act="sigmoid")
    return y[..., :c]  # [N, 1, 1, 1] (identical layout to NCHW here)


# ----------------------------------------------------------------------------
# Pure-JAX reference (for correctness check only; not part of the fast path)
# ----------------------------------------------------------------------------
def reference_forward(x, params):
    def conv(x, w, s, p):
        return lax.conv_general_dilated(
            x, w, (s, s), [(p, p), (p, p)],
            dimension_numbers=("NCHW", "OIHW", "NCHW"))

    def leaky(v):
        return jnp.where(v >= 0, v, LEAKY_SLOPE * v)

    def bn_leaky(v, g, b):
        mean = jnp.mean(v, axis=(0, 2, 3), keepdims=True)
        var = jnp.mean((v - mean) ** 2, axis=(0, 2, 3), keepdims=True)
        y = (v - mean) * lax.rsqrt(var + EPS) * g.reshape(1, -1, 1, 1) \
            + b.reshape(1, -1, 1, 1)
        return leaky(y)

    x = leaky(conv(x, params["w1"], 2, 1))
    x = bn_leaky(conv(x, params["w2"], 2, 1), params["g2"], params["b2"])
    x = bn_leaky(conv(x, params["w3"], 2, 1), params["g3"], params["b3"])
    x = bn_leaky(conv(x, params["w4"], 2, 1), params["g4"], params["b4"])
    return jax.nn.sigmoid(conv(x, params["w5"], 1, 0))


if __name__ == "__main__":
    # Four stride-2 convs + final 4x4 valid conv require a 64x64 spatial input;
    # keep batch / channels / feature maps small.
    N, C, H, W = 2, 3, 64, 64
    NF = 8

    key = jax.random.PRNGKey(0)
    kx, kp = jax.random.split(key)
    x = jax.random.normal(kx, (N, C, H, W), jnp.float32)
    params = init_params(kp, C, NF)

    out = jax.block_until_ready(discriminator_forward(x, params))
    assert out.shape == (N, 1, 1, 1), out.shape
    assert bool(jnp.all(jnp.isfinite(out)))

    # Correctness vs. f32 XLA reference (bf16 MXU operands -> loose tolerance).
    ref = jax.block_until_ready(reference_forward(x, params))
    assert float(jnp.max(jnp.abs(out - ref))) < 2e-2

    # TODO(synk): BatchNorm uses training-mode batch statistics (fresh PyTorch
    # module in train()); running-stat (eval-mode) inference is not modeled.
    print("KERNEL_OK")
</pallas_src>

<mosaic_0001>
module attributes {stable_mosaic.version = 11 : i64} {
  func.func @_conv_act_kernel(%arg0: i32, %arg1: memref<2048x48xbf16, #tpu.memory_space<vmem>>, %arg2: memref<48x128xbf16, #tpu.memory_space<vmem>>, %arg3: memref<2048x128xf32, #tpu.memory_space<vmem>>) attributes {dimension_semantics = [#tpu.dimension_semantics<parallel>], iteration_bounds = array<i64: 1>, scalar_prefetch = 0 : i64, scratch_operands = 0 : i64, tpu.core_type = #tpu.core_type<tc>, window_params = [{transform_indices = @transform_0, window_bounds = array<i64: 2048, 48>}, {pipeline_mode = #tpu.pipeline_mode<synchronous>, transform_indices = @transform_1, window_bounds = array<i64: 48, 128>}, {transform_indices = @transform_2, window_bounds = array<i64: 2048, 128>}]} {
    %c0 = arith.constant 0 : index
    %c0_0 = arith.constant 0 : index
    %0 = vector.load %arg1[%c0, %c0_0] : memref<2048x48xbf16, #tpu.memory_space<vmem>>, vector<2048x48xbf16>
    %c0_1 = arith.constant 0 : index
    %c0_2 = arith.constant 0 : index
    %1 = vector.load %arg2[%c0_1, %c0_2] : memref<48x128xbf16, #tpu.memory_space<vmem>>, vector<48x128xbf16>
    %cst = arith.constant dense<0.000000e+00> : vector<2048x128xf32>
    %2 = tpu.matmul %0, %1, %cst {dimension_numbers = #tpu.dot_dimension_numbers<[1], [0], [0], [1], [0, 0, 1, 1], [], []>} : vector<2048x48xbf16>, vector<48x128xbf16>, vector<2048x128xf32> -> vector<2048x128xf32>
    %cst_3 = arith.constant 0.000000e+00 : f32
    %3 = vector.broadcast %cst_3 : f32 to vector<2048x128xf32>
    %4 = arith.cmpf oge, %2, %3 : vector<2048x128xf32>
    %cst_4 = arith.constant 2.000000e-01 : f32
    %5 = vector.broadcast %cst_4 : f32 to vector<2048x128xf32>
    %6 = arith.mulf %5, %2 : vector<2048x128xf32>
    %7 = arith.select %4, %2, %6 : vector<2048x128xi1>, vector<2048x128xf32>
    %c0_5 = arith.constant 0 : index
    %c0_6 = arith.constant 0 : index
    %8 = vector.load %arg3[%c0_5, %c0_6] : memref<2048x128xf32, #tpu.memory_space<vmem>>, vector<2048x128xf32>
    tpu.vector_store %arg3[%c0_5, %c0_6], %7 {strides = array<i32>} : memref<2048x128xf32, #tpu.memory_space<vmem>>, vector<2048x128xf32>,
    return
  }
  func.func @transform_0(%arg0: i32) -> (i32, i32) {
    %c0_i32 = arith.constant 0 : i32
    %c0_i32_0 = arith.constant 0 : i32
    return %arg0, %c0_i32 : i32, i32
  }
  func.func @transform_1(%arg0: i32) -> (i32, i32) {
    %c0_i32 = arith.constant 0 : i32
    %c0_i32_0 = arith.constant 0 : i32
    %c0_i32_1 = arith.constant 0 : i32
    return %c0_i32, %c0_i32_0 : i32, i32
  }
  func.func @transform_2(%arg0: i32) -> (i32, i32) {
    %c0_i32 = arith.constant 0 : i32
    %c0_i32_0 = arith.constant 0 : i32
    return %arg0, %c0_i32 : i32, i32
  }
}

module attributes {stable_mosaic.version = 11 : i64} {
  func.func @_conv_bn_leaky_kernel(%arg0: i32, %arg1: memref<512x128xbf16, #tpu.memory_space<vmem>>, %arg2: memref<128x128xbf16, #tpu.memory_space<vmem>>, %arg3: memref<1x128xf32, #tpu.memory_space<vmem>>, %arg4: memref<1x128xf32, #tpu.memory_space<vmem>>, %arg5: memref<512x128xf32, #tpu.memory_space<vmem>>) attributes {dimension_semantics = [#tpu.dimension_semantics<arbitrary>], iteration_bounds = array<i64: 1>, scalar_prefetch = 0 : i64, scratch_operands = 0 : i64, tpu.core_type = #tpu.core_type<tc>, window_params = [{pipeline_mode = #tpu.pipeline_mode<synchronous>, transform_indices = @transform_0, window_bounds = array<i64: 512, 128>}, {pipeline_mode = #tpu.pipeline_mode<synchronous>, transform_indices = @transform_1, window_bounds = array<i64: 128, 128>}, {pipeline_mode = #tpu.pipeline_mode<synchronous>, transform_indices = @transform_2, window_bounds = array<i64: 1, 128>}, {pipeline_mode = #tpu.pipeline_mode<synchronous>, transform_indices = @transform_3, window_bounds = array<i64: 1, 128>}, {pipeline_mode = #tpu.pipeline_mode<synchronous>, transform_indices = @transform_4, window_bounds = array<i64: 512, 128>}]} {
    %c0 = arith.constant 0 : index
    %c0_0 = arith.constant 0 : index
    %0 = vector.load %arg1[%c0, %c0_0] : memref<512x128xbf16, #tpu.memory_space<vmem>>, vector<512x128xbf16>
    %c0_1 = arith.constant 0 : index
    %c0_2 = arith.constant 0 : index
    %1 = vector.load %arg2[%c0_1, %c0_2] : memref<128x128xbf16, #tpu.memory_space<vmem>>, vector<128x128xbf16>
    %cst = arith.constant dense<0.000000e+00> : vector<512x128xf32>
    %2 = tpu.matmul %0, %1, %cst {dimension_numbers = #tpu.dot_dimension_numbers<[1], [0], [0], [1], [0, 0, 1, 1], [], []>} : vector<512x128xbf16>, vector<128x128xbf16>, vector<512x128xf32> -> vector<512x128xf32>
    %cst_3 = arith.constant dense<0.000000e+00> : vector<128xf32>
    %3 = vector.multi_reduction <add>, %2, %cst_3 [0] : vector<512x128xf32> to vector<128xf32>
    %4 = vector.shape_cast %3 : vector<128xf32> to vector<1x128xf32>
    %cst_4 = arith.constant 0.001953125 : f32
    %5 = vector.broadcast %cst_4 : f32 to vector<1x128xf32>
    %6 = arith.mulf %4, %5 : vector<1x128xf32>
    %7 = vector.broadcast %6 : vector<1x128xf32> to vector<512x128xf32>
    %8 = arith.subf %2, %7 : vector<512x128xf32>
    %9 = arith.mulf %8, %8 : vector<512x128xf32>
    %cst_5 = arith.constant dense<0.000000e+00> : vector<128xf32>
    %10 = vector.multi_reduction <add>, %9, %cst_5 [0] : vector<512x128xf32> to vector<128xf32>
    %11 = vector.shape_cast %10 : vector<128xf32> to vector<1x128xf32>
    %cst_6 = arith.constant 0.001953125 : f32
    %12 = vector.broadcast %cst_6 : f32 to vector<1x128xf32>
    %13 = arith.mulf %11, %12 : vector<1x128xf32>
    %cst_7 = arith.constant 9.99999974E-6 : f32
    %14 = vector.broadcast %cst_7 : f32 to vector<1x128xf32>
    %15 = arith.addf %13, %14 : vector<1x128xf32>
    %16 = math.rsqrt %15 : vector<1x128xf32>
    %17 = vector.broadcast %16 : vector<1x128xf32> to vector<512x128xf32>
    %18 = arith.mulf %8, %17 : vector<512x128xf32>
    %c0_8 = arith.constant 0 : index
    %c0_9 = arith.constant 0 : index
    %19 = vector.load %arg3[%c0_8, %c0_9] : memref<1x128xf32, #tpu.memory_space<vmem>>, vector<1x128xf32>
    %20 = vector.broadcast %19 : vector<1x128xf32> to vector<512x128xf32>
    %21 = arith.mulf %18, %20 : vector<512x128xf32>
    %c0_10 = arith.constant 0 : index
    %c0_11 = arith.constant 0 : index
    %22 = vector.load %arg4[%c0_10, %c0_11] : memref<1x128xf32, #tpu.memory_space<vmem>>, vector<1x128xf32>
    %23 = vector.broadcast %22 : vector<1x128xf32> to vector<512x128xf32>
    %24 = arith.addf %21, %23 : vector<512x128xf32>
    %cst_12 = arith.constant 0.000000e+00 : f32
    %25 = vector.broadcast %cst_12 : f32 to vector<512x128xf32>
    %26 = arith.cmpf oge, %24, %25 : vector<512x128xf32>
    %cst_13 = arith.constant 2.000000e-01 : f32
    %27 = vector.broadcast %cst_13 : f32 to vector<512x128xf32>
    %28 = arith.mulf %27, %24 : vector<512x128xf32>
    %29 = arith.select %26, %24, %28 : vector<512x128xi1>, vector<512x128xf32>
    %c0_14 = arith.constant 0 : index
    %c0_15 = arith.constant 0 : index
    %30 = vector.load %arg5[%c0_14, %c0_15] : memref<512x128xf32, #tpu.memory_space<vmem>>, vector<512x128xf32>
    tpu.vector_store %arg5[%c0_14, %c0_15], %29 {strides = array<i32>} : memref<512x128xf32, #tpu.memory_space<vmem>>, vector<512x128xf32>,
    return
  }
  func.func @transform_0(%arg0: i32) -> (i32, i32) {
    %c0_i32 = arith.constant 0 : i32
    %c0_i32_0 = arith.constant 0 : i32
    %c0_i32_1 = arith.constant 0 : i32
    return %c0_i32, %c0_i32_0 : i32, i32
  }
  func.func @transform_1(%arg0: i32) -> (i32, i32) {
    %c0_i32 = arith.constant 0 : i32
    %c0_i32_0 = arith.constant 0 : i32
    %c0_i32_1 = arith.constant 0 : i32
    return %c0_i32, %c0_i32_0 : i32, i32
  }
  func.func @transform_2(%arg0: i32) -> (i32, i32) {
    %c0_i32 = arith.constant 0 : i32
    %c0_i32_0 = arith.constant 0 : i32
    %c0_i32_1 = arith.constant 0 : i32
    return %c0_i32, %c0_i32_0 : i32, i32
  }
  func.func @transform_3(%arg0: i32) -> (i32, i32) {
    %c0_i32 = arith.constant 0 : i32
    %c0_i32_0 = arith.constant 0 : i32
    %c0_i32_1 = arith.constant 0 : i32
    return %c0_i32, %c0_i32_0 : i32, i32
  }
  func.func @transform_4(%arg0: i32) -> (i32, i32) {
    %c0_i32 = arith.constant 0 : i32
    %c0_i32_0 = arith.constant 0 : i32
    %c0_i32_1 = arith.constant 0 : i32
    return %c0_i32, %c0_i32_0 : i32, i32
  }
}

module attributes {stable_mosaic.version = 11 : i64} {
  func.func @_conv_bn_leaky_kernel(%arg0: i32, %arg1: memref<128x256xbf16, #tpu.memory_space<vmem>>, %arg2: memref<256x128xbf16, #tpu.memory_space<vmem>>, %arg3: memref<1x128xf32, #tpu.memory_space<vmem>>, %arg4: memref<1x128xf32, #tpu.memory_space<vmem>>, %arg5: memref<128x128xf32, #tpu.memory_space<vmem>>) attributes {dimension_semantics = [#tpu.dimension_semantics<arbitrary>], iteration_bounds = array<i64: 1>, scalar_prefetch = 0 : i64, scratch_operands = 0 : i64, tpu.core_type = #tpu.core_type<tc>, window_params = [{pipeline_mode = #tpu.pipeline_mode<synchronous>, transform_indices = @transform_0, window_bounds = array<i64: 128, 256>}, {pipeline_mode = #tpu.pipeline_mode<synchronous>, transform_indices = @transform_1, window_bounds = array<i64: 256, 128>}, {pipeline_mode = #tpu.pipeline_mode<synchronous>, transform_indices = @transform_2, window_bounds = array<i64: 1, 128>}, {pipeline_mode = #tpu.pipeline_mode<synchronous>, transform_indices = @transform_3, window_bounds = array<i64: 1, 128>}, {pipeline_mode = #tpu.pipeline_mode<synchronous>, transform_indices = @transform_4, window_bounds = array<i64: 128, 128>}]} {
    %c0 = arith.constant 0 : index
    %c0_0 = arith.constant 0 : index
    %0 = vector.load %arg1[%c0, %c0_0] : memref<128x256xbf16, #tpu.memory_space<vmem>>, vector<128x256xbf16>
    %c0_1 = arith.constant 0 : index
    %c0_2 = arith.constant 0 : index
    %1 = vector.load %arg2[%c0_1, %c0_2] : memref<256x128xbf16, #tpu.memory_space<vmem>>, vector<256x128xbf16>
    %cst = arith.constant dense<0.000000e+00> : vector<128x128xf32>
    %2 = tpu.matmul %0, %1, %cst {dimension_numbers = #tpu.dot_dimension_numbers<[1], [0], [0], [1], [0, 0, 1, 1], [], []>} : vector<128x256xbf16>, vector<256x128xbf16>, vector<128x128xf32> -> vector<128x128xf32>
    %cst_3 = arith.constant dense<0.000000e+00> : vector<128xf32>
    %3 = vector.multi_reduction <add>, %2, %cst_3 [0] : vector<128x128xf32> to vector<128xf32>
    %4 = vector.shape_cast %3 : vector<128xf32> to vector<1x128xf32>
    %cst_4 = arith.constant 7.812500e-03 : f32
    %5 = vector.broadcast %cst_4 : f32 to vector<1x128xf32>
    %6 = arith.mulf %4, %5 : vector<1x128xf32>
    %7 = vector.broadcast %6 : vector<1x128xf32> to vector<128x128xf32>
    %8 = arith.subf %2, %7 : vector<128x128xf32>
    %9 = arith.mulf %8, %8 : vector<128x128xf32>
    %cst_5 = arith.constant dense<0.000000e+00> : vector<128xf32>
    %10 = vector.multi_reduction <add>, %9, %cst_5 [0] : vector<128x128xf32> to vector<128xf32>
    %11 = vector.shape_cast %10 : vector<128xf32> to vector<1x128xf32>
    %cst_6 = arith.constant 7.812500e-03 : f32
    %12 = vector.broadcast %cst_6 : f32 to vector<1x128xf32>
    %13 = arith.mulf %11, %12 : vector<1x128xf32>
    %cst_7 = arith.constant 9.99999974E-6 : f32
    %14 = vector.broadcast %cst_7 : f32 to vector<1x128xf32>
    %15 = arith.addf %13, %14 : vector<1x128xf32>
    %16 = math.rsqrt %15 : vector<1x128xf32>
    %17 = vector.broadcast %16 : vector<1x128xf32> to vector<128x128xf32>
    %18 = arith.mulf %8, %17 : vector<128x128xf32>
    %c0_8 = arith.constant 0 : index
    %c0_9 = arith.constant 0 : index
    %19 = vector.load %arg3[%c0_8, %c0_9] : memref<1x128xf32, #tpu.memory_space<vmem>>, vector<1x128xf32>
    %20 = vector.broadcast %19 : vector<1x128xf32> to vector<128x128xf32>
    %21 = arith.mulf %18, %20 : vector<128x128xf32>
    %c0_10 = arith.constant 0 : index
    %c0_11 = arith.constant 0 : index
    %22 = vector.load %arg4[%c0_10, %c0_11] : memref<1x128xf32, #tpu.memory_space<vmem>>, vector<1x128xf32>
    %23 = vector.broadcast %22 : vector<1x128xf32> to vector<128x128xf32>
    %24 = arith.addf %21, %23 : vector<128x128xf32>
    %cst_12 = arith.constant 0.000000e+00 : f32
    %25 = vector.broadcast %cst_12 : f32 to vector<128x128xf32>
    %26 = arith.cmpf oge, %24, %25 : vector<128x128xf32>
    %cst_13 = arith.constant 2.000000e-01 : f32
    %27 = vector.broadcast %cst_13 : f32 to vector<128x128xf32>
    %28 = arith.mulf %27, %24 : vector<128x128xf32>
    %29 = arith.select %26, %24, %28 : vector<128x128xi1>, vector<128x128xf32>
    %c0_14 = arith.constant 0 : index
    %c0_15 = arith.constant 0 : index
    %30 = vector.load %arg5[%c0_14, %c0_15] : memref<128x128xf32, #tpu.memory_space<vmem>>, vector<128x128xf32>
    tpu.vector_store %arg5[%c0_14, %c0_15], %29 {strides = array<i32>} : memref<128x128xf32, #tpu.memory_space<vmem>>, vector<128x128xf32>,
    return
  }
  func.func @transform_0(%arg0: i32) -> (i32, i32) {
    %c0_i32 = arith.constant 0 : i32
    %c0_i32_0 = arith.constant 0 : i32
    %c0_i32_1 = arith.constant 0 : i32
    return %c0_i32, %c0_i32_0 : i32, i32
  }
  func.func @transform_1(%arg0: i32) -> (i32, i32) {
    %c0_i32 = arith.constant 0 : i32
    %c0_i32_0 = arith.constant 0 : i32
    %c0_i32_1 = arith.constant 0 : i32
    return %c0_i32, %c0_i32_0 : i32, i32
  }
  func.func @transform_2(%arg0: i32) -> (i32, i32) {
    %c0_i32 = arith.constant 0 : i32
    %c0_i32_0 = arith.constant 0 : i32
    %c0_i32_1 = arith.constant 0 : i32
    return %c0_i32, %c0_i32_0 : i32, i32
  }
  func.func @transform_3(%arg0: i32) -> (i32, i32) {
    %c0_i32 = arith.constant 0 : i32
    %c0_i32_0 = arith.constant 0 : i32
    %c0_i32_1 = arith.constant 0 : i32
    return %c0_i32, %c0_i32_0 : i32, i32
  }
  func.func @transform_4(%arg0: i32) -> (i32, i32) {
    %c0_i32 = arith.constant 0 : i32
    %c0_i32_0 = arith.constant 0 : i32
    %c0_i32_1 = arith.constant 0 : i32
    return %c0_i32, %c0_i32_0 : i32, i32
  }
}

module attributes {stable_mosaic.version = 11 : i64} {
  func.func @_conv_bn_leaky_kernel(%arg0: i32, %arg1: memref<32x512xbf16, #tpu.memory_space<vmem>>, %arg2: memref<512x128xbf16, #tpu.memory_space<vmem>>, %arg3: memref<1x128xf32, #tpu.memory_space<vmem>>, %arg4: memref<1x128xf32, #tpu.memory_space<vmem>>, %arg5: memref<32x128xf32, #tpu.memory_space<vmem>>) attributes {dimension_semantics = [#tpu.dimension_semantics<arbitrary>], iteration_bounds = array<i64: 1>, scalar_prefetch = 0 : i64, scratch_operands = 0 : i64, tpu.core_type = #tpu.core_type<tc>, window_params = [{pipeline_mode = #tpu.pipeline_mode<synchronous>, transform_indices = @transform_0, window_bounds = array<i64: 32, 512>}, {pipeline_mode = #tpu.pipeline_mode<synchronous>, transform_indices = @transform_1, window_bounds = array<i64: 512, 128>}, {pipeline_mode = #tpu.pipeline_mode<synchronous>, transform_indices = @transform_2, window_bounds = array<i64: 1, 128>}, {pipeline_mode = #tpu.pipeline_mode<synchronous>, transform_indices = @transform_3, window_bounds = array<i64: 1, 128>}, {pipeline_mode = #tpu.pipeline_mode<synchronous>, transform_indices = @transform_4, window_bounds = array<i64: 32, 128>}]} {
    %c0 = arith.constant 0 : index
    %c0_0 = arith.constant 0 : index
    %0 = vector.load %arg1[%c0, %c0_0] : memref<32x512xbf16, #tpu.memory_space<vmem>>, vector<32x512xbf16>
    %c0_1 = arith.constant 0 : index
    %c0_2 = arith.constant 0 : index
    %1 = vector.load %arg2[%c0_1, %c0_2] : memref<512x128xbf16, #tpu.memory_space<vmem>>, vector<512x128xbf16>
    %cst = arith.constant dense<0.000000e+00> : vector<32x128xf32>
    %2 = tpu.matmul %0, %1, %cst {dimension_numbers = #tpu.dot_dimension_numbers<[1], [0], [0], [1], [0, 0, 1, 1], [], []>} : vector<32x512xbf16>, vector<512x128xbf16>, vector<32x128xf32> -> vector<32x128xf32>
    %cst_3 = arith.constant dense<0.000000e+00> : vector<128xf32>
    %3 = vector.multi_reduction <add>, %2, %cst_3 [0] : vector<32x128xf32> to vector<128xf32>
    %4 = vector.shape_cast %3 : vector<128xf32> to vector<1x128xf32>
    %cst_4 = arith.constant 3.125000e-02 : f32
    %5 = vector.broadcast %cst_4 : f32 to vector<1x128xf32>
    %6 = arith.mulf %4, %5 : vector<1x128xf32>
    %7 = vector.broadcast %6 : vector<1x128xf32> to vector<32x128xf32>
    %8 = arith.subf %2, %7 : vector<32x128xf32>
    %9 = arith.mulf %8, %8 : vector<32x128xf32>
    %cst_5 = arith.constant dense<0.000000e+00> : vector<128xf32>
    %10 = vector.multi_reduction <add>, %9, %cst_5 [0] : vector<32x128xf32> to vector<128xf32>
    %11 = vector.shape_cast %10 : vector<128xf32> to vector<1x128xf32>
    %cst_6 = arith.constant 3.125000e-02 : f32
    %12 = vector.broadcast %cst_6 : f32 to vector<1x128xf32>
    %13 = arith.mulf %11, %12 : vector<1x128xf32>
    %cst_7 = arith.constant 9.99999974E-6 : f32
    %14 = vector.broadcast %cst_7 : f32 to vector<1x128xf32>
    %15 = arith.addf %13, %14 : vector<1x128xf32>
    %16 = math.rsqrt %15 : vector<1x128xf32>
    %17 = vector.broadcast %16 : vector<1x128xf32> to vector<32x128xf32>
    %18 = arith.mulf %8, %17 : vector<32x128xf32>
    %c0_8 = arith.constant 0 : index
    %c0_9 = arith.constant 0 : index
    %19 = vector.load %arg3[%c0_8, %c0_9] : memref<1x128xf32, #tpu.memory_space<vmem>>, vector<1x128xf32>
    %20 = vector.broadcast %19 : vector<1x128xf32> to vector<32x128xf32>
    %21 = arith.mulf %18, %20 : vector<32x128xf32>
    %c0_10 = arith.constant 0 : index
    %c0_11 = arith.constant 0 : index
    %22 = vector.load %arg4[%c0_10, %c0_11] : memref<1x128xf32, #tpu.memory_space<vmem>>, vector<1x128xf32>
    %23 = vector.broadcast %22 : vector<1x128xf32> to vector<32x128xf32>
    %24 = arith.addf %21, %23 : vector<32x128xf32>
    %cst_12 = arith.constant 0.000000e+00 : f32
    %25 = vector.broadcast %cst_12 : f32 to vector<32x128xf32>
    %26 = arith.cmpf oge, %24, %25 : vector<32x128xf32>
    %cst_13 = arith.constant 2.000000e-01 : f32
    %27 = vector.broadcast %cst_13 : f32 to vector<32x128xf32>
    %28 = arith.mulf %27, %24 : vector<32x128xf32>
    %29 = arith.select %26, %24, %28 : vector<32x128xi1>, vector<32x128xf32>
    %c0_14 = arith.constant 0 : index
    %c0_15 = arith.constant 0 : index
    %30 = vector.load %arg5[%c0_14, %c0_15] : memref<32x128xf32, #tpu.memory_space<vmem>>, vector<32x128xf32>
    tpu.vector_store %arg5[%c0_14, %c0_15], %29 {strides = array<i32>} : memref<32x128xf32, #tpu.memory_space<vmem>>, vector<32x128xf32>,
    return
  }
  func.func @transform_0(%arg0: i32) -> (i32, i32) {
    %c0_i32 = arith.constant 0 : i32
    %c0_i32_0 = arith.constant 0 : i32
    %c0_i32_1 = arith.constant 0 : i32
    return %c0_i32, %c0_i32_0 : i32, i32
  }
  func.func @transform_1(%arg0: i32) -> (i32, i32) {
    %c0_i32 = arith.constant 0 : i32
    %c0_i32_0 = arith.constant 0 : i32
    %c0_i32_1 = arith.constant 0 : i32
    return %c0_i32, %c0_i32_0 : i32, i32
  }
  func.func @transform_2(%arg0: i32) -> (i32, i32) {
    %c0_i32 = arith.constant 0 : i32
    %c0_i32_0 = arith.constant 0 : i32
    %c0_i32_1 = arith.constant 0 : i32
    return %c0_i32, %c0_i32_0 : i32, i32
  }
  func.func @transform_3(%arg0: i32) -> (i32, i32) {
    %c0_i32 = arith.constant 0 : i32
    %c0_i32_0 = arith.constant 0 : i32
    %c0_i32_1 = arith.constant 0 : i32
    return %c0_i32, %c0_i32_0 : i32, i32
  }
  func.func @transform_4(%arg0: i32) -> (i32, i32) {
    %c0_i32 = arith.constant 0 : i32
    %c0_i32_0 = arith.constant 0 : i32
    %c0_i32_1 = arith.constant 0 : i32
    return %c0_i32, %c0_i32_0 : i32, i32
  }
}

module attributes {stable_mosaic.version = 11 : i64} {
  func.func @_conv_act_kernel(%arg0: i32, %arg1: memref<2x1024xbf16, #tpu.memory_space<vmem>>, %arg2: memref<1024x128xbf16, #tpu.memory_space<vmem>>, %arg3: memref<2x128xf32, #tpu.memory_space<vmem>>) attributes {dimension_semantics = [#tpu.dimension_semantics<parallel>], iteration_bounds = array<i64: 1>, scalar_prefetch = 0 : i64, scratch_operands = 0 : i64, tpu.core_type = #tpu.core_type<tc>, window_params = [{transform_indices = @transform_0, window_bounds = array<i64: 2, 1024>}, {pipeline_mode = #tpu.pipeline_mode<synchronous>, transform_indices = @transform_1, window_bounds = array<i64: 1024, 128>}, {transform_indices = @transform_2, window_bounds = array<i64: 2, 128>}]} {
    %c0 = arith.constant 0 : index
    %c0_0 = arith.constant 0 : index
    %0 = vector.load %arg1[%c0, %c0_0] : memref<2x1024xbf16, #tpu.memory_space<vmem>>, vector<2x1024xbf16>
    %c0_1 = arith.constant 0 : index
    %c0_2 = arith.constant 0 : index
    %1 = vector.load %arg2[%c0_1, %c0_2] : memref<1024x128xbf16, #tpu.memory_space<vmem>>, vector<1024x128xbf16>
    %cst = arith.constant dense<0.000000e+00> : vector<2x128xf32>
    %2 = tpu.matmul %0, %1, %cst {dimension_numbers = #tpu.dot_dimension_numbers<[1], [0], [0], [1], [0, 0, 1, 1], [], []>} : vector<2x1024xbf16>, vector<1024x128xbf16>, vector<2x128xf32> -> vector<2x128xf32>
    %3 = arith.negf %2 : vector<2x128xf32>
    %4 = math.exp %3 : vector<2x128xf32>
    %cst_3 = arith.constant 1.000000e+00 : f32
    %5 = vector.broadcast %cst_3 : f32 to vector<2x128xf32>
    %6 = arith.addf %5, %4 : vector<2x128xf32>
    %7 = arith.divf %5, %6 : vector<2x128xf32>
    %c0_4 = arith.constant 0 : index
    %c0_5 = arith.constant 0 : index
    %8 = vector.load %arg3[%c0_4, %c0_5] : memref<2x128xf32, #tpu.memory_space<vmem>>, vector<2x128xf32>
    tpu.vector_store %arg3[%c0_4, %c0_5], %7 {strides = array<i32>} : memref<2x128xf32, #tpu.memory_space<vmem>>, vector<2x128xf32>,
    return
  }
  func.func @transform_0(%arg0: i32) -> (i32, i32) {
    %c0_i32 = arith.constant 0 : i32
    %c0_i32_0 = arith.constant 0 : i32
    return %arg0, %c0_i32 : i32, i32
  }
  func.func @transform_1(%arg0: i32) -> (i32, i32) {
    %c0_i32 = arith.constant 0 : i32
    %c0_i32_0 = arith.constant 0 : i32
    %c0_i32_1 = arith.constant 0 : i32
    return %c0_i32, %c0_i32_0 : i32, i32
  }
  func.func @transform_2(%arg0: i32) -> (i32, i32) {
    %c0_i32 = arith.constant 0 : i32
    %c0_i32_0 = arith.constant 0 : i32
    return %arg0, %c0_i32 : i32, i32
  }
}

</mosaic_0001>

<llo_original>
// kernel: discriminator_forward.5
$region0: #{discriminator_forward.5}
  #allocation0 [shape = 'u32[]', space=smem, size = 0x4, offset = 0x4, fixed_abs, tag = 'smem constant byte address 0x4 - core index']
  #allocation1 [shape = 'u32[144,128]{1,0:T(1,128)}', space=vmem, size = 0x12000, scoped, tag = 'internal scratch']
  %s0 = inlined_call_operand.vmem [shape: bf16[2048,48], index: 0, kind: input, shape index: {}]
  %s1 = inlined_call_operand.vmem [shape: bf16[48,128], index: 1, kind: input, shape index: {}]
  %s2 = inlined_call_operand.vmem [shape: f32[2048,128], index: 2, kind: output, shape index: {}]
  %s3 = sld [smem:[#allocation0]]
  $region18: #{discriminator_forward.5} parent=0
    _
  %s5 = ssub.s32 1, %s3
  %s6 = scalar_select 0, %s5, %s3
  // Predicated region
  $region2: #{discriminator_forward.5} parent=0 // pred_check
    _
  $region3: #{discriminator_forward.5} parent=0 // pred_check_branch
    %8 = sbr.rel (0) target = $region5
  $region4: #{discriminator_forward.5} parent=0 // pred_region
    _
  $region5: #{discriminator_forward.5} parent=0 // pred_fallthru
    _
  // Predicated region
  $region6: #{discriminator_forward.5} parent=0 // pred_check
    _
  $region7: #{discriminator_forward.5} parent=0 // pred_check_branch
    %10 = sbr.rel (0) target = $region9
  $region8: #{discriminator_forward.5} parent=0 // pred_region
    _
  $region9: #{discriminator_forward.5} parent=0 // pred_fallthru
    _
  %v12 = vld [vmem:[%s0] sm:$0xf]
  %v13 = vld [vmem:[%s0 + $0x4] sm:$0xf]
  %v14 = vld [vmem:[%s0 + $0x8] sm:$0xf]
  %v15 = vld [vmem:[%s0 + $0xc] sm:$0xf]
  %v16 = vld [vmem:[%s0 + $0x10] sm:$0xf]
  %v17 = vld [vmem:[%s0 + $0x14] sm:$0xf]
  %v18 = vld [vmem:[%s0 + $0x18] sm:$0xf]
  %v19 = vld [vmem:[%s0 + $0x1c] sm:$0xf]
  %v20 = vld [vmem:[%s0 + $0x20] sm:$0xf]
  %v21 = vld [vmem:[%s0 + $0x24] sm:$0xf]
  %v22 = vld [vmem:[%s0 + $0x28] sm:$0xf]
  %v23 = vld [vmem:[%s0 + $0x2c] sm:$0xf]
  %v24 = vld [vmem:[%s0 + $0x30] sm:$0xf]
  %v25 = vld [vmem:[%s0 + $0x34] sm:$0xf]
  %v26 = vld [vmem:[%s0 + $0x38] sm:$0xf]
  %v27 = vld [vmem:[%s0 + $0x3c] sm:$0xf]
  %v28 = vld [vmem:[%s0 + $0x40] sm:$0xf]
  %v29 = vld [vmem:[%s0 + $0x44] sm:$0xf]
  %v30 = vld [vmem:[%s0 + $0x48] sm:$0xf]
  %v31 = vld [vmem:[%s0 + $0x4c] sm:$0xf]
  %v32 = vld [vmem:[%s0 + $0x50] sm:$0xf]
  %v33 = vld [vmem:[%s0 + $0x54] sm:$0xf]
  %v34 = vld [vmem:[%s0 + $0x58] sm:$0xf]
  %v35 = vld [vmem:[%s0 + $0x5c] sm:$0xf]
  %v36 = vld [vmem:[%s0 + $0x60] sm:$0xf]
  %v37 = vld [vmem:[%s0 + $0x64] sm:$0xf]
  %v38 = vld [vmem:[%s0 + $0x68] sm:$0xf]
  %v39 = vld [vmem:[%s0 + $0x6c] sm:$0xf]
  %v40 = vld [vmem:[%s0 + $0x70] sm:$0xf]
  %v41 = vld [vmem:[%s0 + $0x74] sm:$0xf]
  %v42 = vld [vmem:[%s0 + $0x78] sm:$0xf]
  %v43 = vld [vmem:[%s0 + $0x7c] sm:$0xf]
  %v44 = vld [vmem:[%s0 + $0x80] sm:$0xf]
  %v45 = vld [vmem:[%s0 + $0x84] sm:$0xf]
  %v46 = vld [vmem:[%s0 + $0x88] sm:$0xf]
  %v47 = vld [vmem:[%s0 + $0x8c] sm:$0xf]
  %v48 = vld [vmem:[%s0 + $0x90] sm:$0xf]
  %v49 = vld [vmem:[%s0 + $0x94] sm:$0xf]
  %v50 = vld [vmem:[%s0 + $0x98] sm:$0xf]
  %v51 = vld [vmem:[%s0 + $0x9c] sm:$0xf]
  %v52 = vld [vmem:[%s0 + $0xa0] sm:$0xf]
  %v53 = vld [vmem:[%s0 + $0xa4] sm:$0xf]
  %v54 = vld [vmem:[%s0 + $0xa8] sm:$0xf]
  %v55 = vld [vmem:[%s0 + $0xac] sm:$0xf]
  %v56 = vld [vmem:[%s0 + $0xb0] sm:$0xf]
  %v57 = vld [vmem:[%s0 + $0xb4] sm:$0xf]
  %v58 = vld [vmem:[%s0 + $0xb8] sm:$0xf]
  %v59 = vld [vmem:[%s0 + $0xbc] sm:$0xf]
  %v60 = vld [vmem:[%s0 + $0xc0] sm:$0xf]
  %v61 = vld [vmem:[%s0 + $0xc4] sm:$0xf]
  %v62 = vld [vmem:[%s0 + $0xc8] sm:$0xf]
  %v63 = vld [vmem:[%s0 + $0xcc] sm:$0xf]
  %v64 = vld [vmem:[%s0 + $0xd0] sm:$0xf]
  %v65 = vld [vmem:[%s0 + $0xd4] sm:$0xf]
  %v66 = vld [vmem:[%s0 + $0xd8] sm:$0xf]
  %v67 = vld [vmem:[%s0 + $0xdc] sm:$0xf]
  %v68 = vld [vmem:[%s0 + $0xe0] sm:$0xf]
  %v69 = vld [vmem:[%s0 + $0xe4] sm:$0xf]
  %v70 = vld [vmem:[%s0 + $0xe8] sm:$0xf]
  %v71 = vld [vmem:[%s0 + $0xec] sm:$0xf]
  %v72 = vld [vmem:[%s0 + $0xf0] sm:$0xf]
  %v73 = vld [vmem:[%s0 + $0xf4] sm:$0xf]
  %v74 = vld [vmem:[%s0 + $0xf8] sm:$0xf]
  %v75 = vld [vmem:[%s0 + $0xfc] sm:$0xf]
  %v76 = vld [vmem:[%s0 + $0x100] sm:$0xf]
  %v77 = vld [vmem:[%s0 + $0x104] sm:$0xf]
  %v78 = vld [vmem:[%s0 + $0x108] sm:$0xf]
  %v79 = vld [vmem:[%s0 + $0x10c] sm:$0xf]
  %v80 = vld [vmem:[%s0 + $0x110] sm:$0xf]
  %v81 = vld [vmem:[%s0 + $0x114] sm:$0xf]
  %v82 = vld [vmem:[%s0 + $0x118] sm:$0xf]
  %v83 = vld [vmem:[%s0 + $0x11c] sm:$0xf]
  %v84 = vld [vmem:[%s0 + $0x120] sm:$0xf]
  %v85 = vld [vmem:[%s0 + $0x124] sm:$0xf]
  %v86 = vld [vmem:[%s0 + $0x128] sm:$0xf]
  %v87 = vld [vmem:[%s0 + $0x12c] sm:$0xf]
  %v88 = vld [vmem:[%s0 + $0x130] sm:$0xf]
  %v89 = vld [vmem:[%s0 + $0x134] sm:$0xf]
  %v90 = vld [vmem:[%s0 + $0x138] sm:$0xf]
  %v91 = vld [vmem:[%s0 + $0x13c] sm:$0xf]
  %v92 = vld [vmem:[%s0 + $0x140] sm:$0xf]
  %v93 = vld [vmem:[%s0 + $0x144] sm:$0xf]
  %v94 = vld [vmem:[%s0 + $0x148] sm:$0xf]
  %v95 = vld [vmem:[%s0 + $0x14c] sm:$0xf]
  %v96 = vld [vmem:[%s0 + $0x150] sm:$0xf]
  %v97 = vld [vmem:[%s0 + $0x154] sm:$0xf]
  %v98 = vld [vmem:[%s0 + $0x158] sm:$0xf]
  %v99 = vld [vmem:[%s0 + $0x15c] sm:$0xf]
  %v100 = vld [vmem:[%s0 + $0x160] sm:$0xf]
  %v101 = vld [vmem:[%s0 + $0x164] sm:$0xf]
  %v102 = vld [vmem:[%s0 + $0x168] sm:$0xf]
  %v103 = vld [vmem:[%s0 + $0x16c] sm:$0xf]
  %v104 = vld [vmem:[%s0 + $0x170] sm:$0xf]
  %v105 = vld [vmem:[%s0 + $0x174] sm:$0xf]
  %v106 = vld [vmem:[%s0 + $0x178] sm:$0xf]
  %v107 = vld [vmem:[%s0 + $0x17c] sm:$0xf]
  %v108 = vld [vmem:[%s0 + $0x180] sm:$0xf]
  %v109 = vld [vmem:[%s0 + $0x184] sm:$0xf]
  %v110 = vld [vmem:[%s0 + $0x188] sm:$0xf]
  %v111 = vld [vmem:[%s0 + $0x18c] sm:$0xf]
  %v112 = vld [vmem:[%s0 + $0x190] sm:$0xf]
  %v113 = vld [vmem:[%s0 + $0x194] sm:$0xf]
  %v114 = vld [vmem:[%s0 + $0x198] sm:$0xf]
  %v115 = vld [vmem:[%s0 + $0x19c] sm:$0xf]
  %v116 = vld [vmem:[%s0 + $0x1a0] sm:$0xf]
  %v117 = vld [vmem:[%s0 + $0x1a4] sm:$0xf]
  %v118 = vld [vmem:[%s0 + $0x1a8] sm:$0xf]
  %v119 = vld [vmem:[%s0 + $0x1ac] sm:$0xf]
  %v120 = vld [vmem:[%s0 + $0x1b0] sm:$0xf]
  %v121 = vld [vmem:[%s0 + $0x1b4] sm:$0xf]
  %v122 = vld [vmem:[%s0 + $0x1b8] sm:$0xf]
  %v123 = vld [vmem:[%s0 + $0x1bc] sm:$0xf]
  %v124 = vld [vmem:[%s0 + $0x1c0] sm:$0xf]
  %v125 = vld [vmem:[%s0 + $0x1c4] sm:$0xf]
  %v126 = vld [vmem:[%s0 + $0x1c8] sm:$0xf]
  %v127 = vld [vmem:[%s0 + $0x1cc] sm:$0xf]
  %v128 = vld [vmem:[%s0 + $0x1d0] sm:$0xf]
  %v129 = vld [vmem:[%s0 + $0x1d4] sm:$0xf]
  %v130 = vld [vmem:[%s0 + $0x1d8] sm:$0xf]
  %v131 = vld [vmem:[%s0 + $0x1dc] sm:$0xf]
  %v132 = vld [vmem:[%s0 + $0x1e0] sm:$0xf]
  %v133 = vld [vmem:[%s0 + $0x1e4] sm:$0xf]
  %v134 = vld [vmem:[%s0 + $0x1e8] sm:$0xf]
  %v135 = vld [vmem:[%s0 + $0x1ec] sm:$0xf]
  %v136 = vld [vmem:[%s0 + $0x1f0] sm:$0xf]
  %v137 = vld [vmem:[%s0 + $0x1f4] sm:$0xf]
  %v138 = vld [vmem:[%s0 + $0x1f8] sm:$0xf]
  %v139 = vld [vmem:[%s0 + $0x1fc] sm:$0xf]
  %v140 = vld [vmem:[%s0 + $0x200] sm:$0xf]
  %v141 = vld [vmem:[%s0 + $0x204] sm:$0xf]
  %v142 = vld [vmem:[%s0 + $0x208] sm:$0xf]
  %v143 = vld [vmem:[%s0 + $0x20c] sm:$0xf]
  %v144 = vld [vmem:[%s0 + $0x210] sm:$0xf]
  %v145 = vld [vmem:[%s0 + $0x214] sm:$0xf]
  %v146 = vld [vmem:[%s0 + $0x218] sm:$0xf]
  %v147 = vld [vmem:[%s0 + $0x21c] sm:$0xf]
  %v148 = vld [vmem:[%s0 + $0x220] sm:$0xf]
  %v149 = vld [vmem:[%s0 + $0x224] sm:$0xf]
  %v150 = vld [vmem:[%s0 + $0x228] sm:$0xf]
  %v151 = vld [vmem:[%s0 + $0x22c] sm:$0xf]
  %v152 = vld [vmem:[%s0 + $0x230] sm:$0xf]
  %v153 = vld [vmem:[%s0 + $0x234] sm:$0xf]
  %v154 = vld [vmem:[%s0 + $0x238] sm:$0xf]
  %v155 = vld [vmem:[%s0 + $0x23c] sm:$0xf]
  %v156 = vld [vmem:[%s0 + $0x240] sm:$0xf]
  %v157 = vld [vmem:[%s0 + $0x244] sm:$0xf]
  %v158 = vld [vmem:[%s0 + $0x248] sm:$0xf]
  %v159 = vld [vmem:[%s0 + $0x24c] sm:$0xf]
  %v160 = vld [vmem:[%s0 + $0x250] sm:$0xf]
  %v161 = vld [vmem:[%s0 + $0x254] sm:$0xf]
  %v162 = vld [vmem:[%s0 + $0x258] sm:$0xf]
  %v163 = vld [vmem:[%s0 + $0x25c] sm:$0xf]
  %v164 = vld [vmem:[%s0 + $0x260] sm:$0xf]
  %v165 = vld [vmem:[%s0 + $0x264] sm:$0xf]
  %v166 = vld [vmem:[%s0 + $0x268] sm:$0xf]
  %v167 = vld [vmem:[%s0 + $0x26c] sm:$0xf]
  %v168 = vld [vmem:[%s0 + $0x270] sm:$0xf]
  %v169 = vld [vmem:[%s0 + $0x274] sm:$0xf]
  %v170 = vld [vmem:[%s0 + $0x278] sm:$0xf]
  %v171 = vld [vmem:[%s0 + $0x27c] sm:$0xf]
  %v172 = vld [vmem:[%s0 + $0x280] sm:$0xf]
  %v173 = vld [vmem:[%s0 + $0x284] sm:$0xf]
  %v174 = vld [vmem:[%s0 + $0x288] sm:$0xf]
  %v175 = vld [vmem:[%s0 + $0x28c] sm:$0xf]
  %v176 = vld [vmem:[%s0 + $0x290] sm:$0xf]
  %v177 = vld [vmem:[%s0 + $0x294] sm:$0xf]
  %v178 = vld [vmem:[%s0 + $0x298] sm:$0xf]
  %v179 = vld [vmem:[%s0 + $0x29c] sm:$0xf]
  %v180 = vld [vmem:[%s0 + $0x2a0] sm:$0xf]
  %v181 = vld [vmem:[%s0 + $0x2a4] sm:$0xf]
  %v182 = vld [vmem:[%s0 + $0x2a8] sm:$0xf]
  %v183 = vld [vmem:[%s0 + $0x2ac] sm:$0xf]
  %v184 = vld [vmem:[%s0 + $0x2b0] sm:$0xf]
  %v185 = vld [vmem:[%s0 + $0x2b4] sm:$0xf]
  %v186 = vld [vmem:[%s0 + $0x2b8] sm:$0xf]
  %v187 = vld [vmem:[%s0 + $0x2bc] sm:$0xf]
  %v188 = vld [vmem:[%s0 + $0x2c0] sm:$0xf]
  %v189 = vld [vmem:[%s0 + $0x2c4] sm:$0xf]
  %v190 = vld [vmem:[%s0 + $0x2c8] sm:$0xf]
  %v191 = vld [vmem:[%s0 + $0x2cc] sm:$0xf]
  %v192 = vld [vmem:[%s0 + $0x2d0] sm:$0xf]
  %v193 = vld [vmem:[%s0 + $0x2d4] sm:$0xf]
  %v194 = vld [vmem:[%s0 + $0x2d8] sm:$0xf]
  %v195 = vld [vmem:[%s0 + $0x2dc] sm:$0xf]
  %v196 = vld [vmem:[%s0 + $0x2e0] sm:$0xf]
  %v197 = vld [vmem:[%s0 + $0x2e4] sm:$0xf]
  %v198 = vld [vmem:[%s0 + $0x2e8] sm:$0xf]
  %v199 = vld [vmem:[%s0 + $0x2ec] sm:$0xf]
  %v200 = vld [vmem:[%s0 + $0x2f0] sm:$0xf]
  %v201 = vld [vmem:[%s0 + $0x2f4] sm:$0xf]
  %v202 = vld [vmem:[%s0 + $0x2f8] sm:$0xf]
  %v203 = vld [vmem:[%s0 + $0x2fc] sm:$0xf]
  %v204 = vld [vmem:[%s0 + $0x300] sm:$0xf]
  %v205 = vld [vmem:[%s0 + $0x304] sm:$0xf]
  %v206 = vld [vmem:[%s0 + $0x308] sm:$0xf]
  %v207 = vld [vmem:[%s0 + $0x30c] sm:$0xf]
  %v208 = vld [vmem:[%s0 + $0x310] sm:$0xf]
  %v209 = vld [vmem:[%s0 + $0x314] sm:$0xf]
  %v210 = vld [vmem:[%s0 + $0x318] sm:$0xf]
  %v211 = vld [vmem:[%s0 + $0x31c] sm:$0xf]
  %v212 = vld [vmem:[%s0 + $0x320] sm:$0xf]
  %v213 = vld [vmem:[%s0 + $0x324] sm:$0xf]
  %v214 = vld [vmem:[%s0 + $0x328] sm:$0xf]
  %v215 = vld [vmem:[%s0 + $0x32c] sm:$0xf]
  %v216 = vld [vmem:[%s0 + $0x330] sm:$0xf]
  %v217 = vld [vmem:[%s0 + $0x334] sm:$0xf]
  %v218 = vld [vmem:[%s0 + $0x338] sm:$0xf]
  %v219 = vld [vmem:[%s0 + $0x33c] sm:$0xf]
  %v220 = vld [vmem:[%s0 + $0x340] sm:$0xf]
  %v221 = vld [vmem:[%s0 + $0x344] sm:$0xf]
  %v222 = vld [vmem:[%s0 + $0x348] sm:$0xf]
  %v223 = vld [vmem:[%s0 + $0x34c] sm:$0xf]
  %v224 = vld [vmem:[%s0 + $0x350] sm:$0xf]
  %v225 = vld [vmem:[%s0 + $0x354] sm:$0xf]
  %v226 = vld [vmem:[%s0 + $0x358] sm:$0xf]
  %v227 = vld [vmem:[%s0 + $0x35c] sm:$0xf]
  %v228 = vld [vmem:[%s0 + $0x360] sm:$0xf]
  %v229 = vld [vmem:[%s0 + $0x364] sm:$0xf]
  %v230 = vld [vmem:[%s0 + $0x368] sm:$0xf]
  %v231 = vld [vmem:[%s0 + $0x36c] sm:$0xf]
  %v232 = vld [vmem:[%s0 + $0x370] sm:$0xf]
  %v233 = vld [vmem:[%s0 + $0x374] sm:$0xf]
  %v234 = vld [vmem:[%s0 + $0x378] sm:$0xf]
  %v235 = vld [vmem:[%s0 + $0x37c] sm:$0xf]
  %v236 = vld [vmem:[%s0 + $0x380] sm:$0xf]
  %v237 = vld [vmem:[%s0 + $0x384] sm:$0xf]
  %v238 = vld [vmem:[%s0 + $0x388] sm:$0xf]
  %v239 = vld [vmem:[%s0 + $0x38c] sm:$0xf]
  %v240 = vld [vmem:[%s0 + $0x390] sm:$0xf]
  %v241 = vld [vmem:[%s0 + $0x394] sm:$0xf]
  %v242 = vld [vmem:[%s0 + $0x398] sm:$0xf]
  %v243 = vld [vmem:[%s0 + $0x39c] sm:$0xf]
  %v244 = vld [vmem:[%s0 + $0x3a0] sm:$0xf]
  %v245 = vld [vmem:[%s0 + $0x3a4] sm:$0xf]
  %v246 = vld [vmem:[%s0 + $0x3a8] sm:$0xf]
  %v247 = vld [vmem:[%s0 + $0x3ac] sm:$0xf]
  %v248 = vld [vmem:[%s0 + $0x3b0] sm:$0xf]
  %v249 = vld [vmem:[%s0 + $0x3b4] sm:$0xf]
  %v250 = vld [vmem:[%s0 + $0x3b8] sm:$0xf]
  %v251 = vld [vmem:[%s0 + $0x3bc] sm:$0xf]
  %v252 = vld [vmem:[%s0 + $0x3c0] sm:$0xf]
  %v253 = vld [vmem:[%s0 + $0x3c4] sm:$0xf]
  %v254 = vld [vmem:[%s0 + $0x3c8] sm:$0xf]
  %v255 = vld [vmem:[%s0 + $0x3cc] sm:$0xf]
  %v256 = vld [vmem:[%s0 + $0x3d0] sm:$0xf]
  %v257 = vld [vmem:[%s0 + $0x3d4] sm:$0xf]
  %v258 = vld [vmem:[%s0 + $0x3d8] sm:$0xf]
  %v259 = vld [vmem:[%s0 + $0x3dc] sm:$0xf]
  %v260 = vld [vmem:[%s0 + $0x3e0] sm:$0xf]
  %v261 = vld [vmem:[%s0 + $0x3e4] sm:$0xf]
  %v262 = vld [vmem:[%s0 + $0x3e8] sm:$0xf]
  %v263 = vld [vmem:[%s0 + $0x3ec] sm:$0xf]
  %v264 = vld [vmem:[%s0 + $0x3f0] sm:$0xf]
  %v265 = vld [vmem:[%s0 + $0x3f4] sm:$0xf]
  %v266 = vld [vmem:[%s0 + $0x3f8] sm:$0xf]
  %v267 = vld [vmem:[%s0 + $0x3fc] sm:$0xf]
  %v268 = vld [vmem:[%s1] sm:$0xf]
  %v269 = vld [vmem:[%s1 + $0x4] sm:$0xf]
  %v270 = vld [vmem:[%s1 + $0x8] sm:$0xf]
  %v271 = vld [vmem:[%s1 + $0xc] sm:$0xf]
  %v272 = vld [vmem:[%s1 + $0x10] sm:$0xf]
  %v273 = vld [vmem:[%s1 + $0x14] sm:$0xf]
  %v530 = vunpack.c.l.b16 %v12
  %v531 = vunpack.c.l.b16 %v13
  %v532 = vunpack.c.l.b16 %v14
  %v533 = vunpack.c.l.b16 %v15
  %v534 = vunpack.c.l.b16 %v16
  %v535 = vunpack.c.l.b16 %v17
  %v536 = vunpack.c.l.b16 %v18
  %v537 = vunpack.c.l.b16 %v19
  %v538 = vunpack.c.l.b16 %v20
  %v539 = vunpack.c.l.b16 %v21
  %v540 = vunpack.c.l.b16 %v22
  %v541 = vunpack.c.l.b16 %v23
  %v542 = vunpack.c.l.b16 %v24
  %v543 = vunpack.c.l.b16 %v25
  %v544 = vunpack.c.l.b16 %v26
  %v545 = vunpack.c.l.b16 %v27
  %v546 = vunpack.c.l.b16 %v28
  %v547 = vunpack.c.l.b16 %v29
  %v548 = vunpack.c.l.b16 %v30
  %v549 = vunpack.c.l.b16 %v31
  %v550 = vunpack.c.l.b16 %v32
  %v551 = vunpack.c.l.b16 %v33
  %v552 = vunpack.c.l.b16 %v34
  %v553 = vunpack.c.l.b16 %v35
  %v554 = vunpack.c.l.b16 %v36
  %v555 = vunpack.c.l.b16 %v37
  %v556 = vunpack.c.l.b16 %v38
  %v557 = vunpack.c.l.b16 %v39
  %v558 = vunpack.c.l.b16 %v40
  %v559 = vunpack.c.l.b16 %v41
  %v560 = vunpack.c.l.b16 %v42
  %v561 = vunpack.c.l.b16 %v43
  %v562 = vunpack.c.l.b16 %v44
  %v563 = vunpack.c.l.b16 %v45
  %v564 = vunpack.c.l.b16 %v46
  %v565 = vunpack.c.l.b16 %v47
  %v566 = vunpack.c.l.b16 %v48
  %v567 = vunpack.c.l.b16 %v49
  %v568 = vunpack.c.l.b16 %v50
  %v569 = vunpack.c.l.b16 %v51
  %v570 = vunpack.c.l.b16 %v52
  %v571 = vunpack.c.l.b16 %v53
  %v572 = vunpack.c.l.b16 %v54
  %v573 = vunpack.c.l.b16 %v55
  %v574 = vunpack.c.l.b16 %v56
  %v575 = vunpack.c.l.b16 %v57
  %v576 = vunpack.c.l.b16 %v58
  %v577 = vunpack.c.l.b16 %v59
  %v578 = vunpack.c.l.b16 %v60
  %v579 = vunpack.c.l.b16 %v61
  %v580 = vunpack.c.l.b16 %v62
  %v581 = vunpack.c.l.b16 %v63
  %v582 = vunpack.c.l.b16 %v64
  %v583 = vunpack.c.l.b16 %v65
  %v584 = vunpack.c.l.b16 %v66
  %v585 = vunpack.c.l.b16 %v67
  %v586 = vunpack.c.l.b16 %v68
  %v587 = vunpack.c.l.b16 %v69
  %v588 = vunpack.c.l.b16 %v70
  %v589 = vunpack.c.l.b16 %v71
  %v590 = vunpack.c.l.b16 %v72
  %v591 = vunpack.c.l.b16 %v73
  %v592 = vunpack.c.l.b16 %v74
  %v593 = vunpack.c.l.b16 %v75
  %v594 = vunpack.c.l.b16 %v76
  %v595 = vunpack.c.l.b16 %v77
  %v596 = vunpack.c.l.b16 %v78
  %v597 = vunpack.c.l.b16 %v79
  %v598 = vunpack.c.l.b16 %v80
  %v599 = vunpack.c.l.b16 %v81
  %v600 = vunpack.c.l.b16 %v82
  %v601 = vunpack.c.l.b16 %v83
  %v602 = vunpack.c.l.b16 %v84
  %v603 = vunpack.c.l.b16 %v85
  %v604 = vunpack.c.l.b16 %v86
  %v605 = vunpack.c.l.b16 %v87
  %v606 = vunpack.c.l.b16 %v88
  %v607 = vunpack.c.l.b16 %v89
  %v608 = vunpack.c.l.b16 %v90
  %v609 = vunpack.c.l.b16 %v91
  %v610 = vunpack.c.l.b16 %v92
  %v611 = vunpack.c.l.b16 %v93
  %v612 = vunpack.c.l.b16 %v94
  %v613 = vunpack.c.l.b16 %v95
  %v614 = vunpack.c.l.b16 %v96
  %v615 = vunpack.c.l.b16 %v97
  %v616 = vunpack.c.l.b16 %v98
  %v617 = vunpack.c.l.b16 %v99
  %v618 = vunpack.c.l.b16 %v100
  %v619 = vunpack.c.l.b16 %v101
  %v620 = vunpack.c.l.b16 %v102
  %v621 = vunpack.c.l.b16 %v103
  %v622 = vunpack.c.l.b16 %v104
  %v623 = vunpack.c.l.b16 %v105
  %v624 = vunpack.c.l.b16 %v106
  %v625 = vunpack.c.l.b16 %v107
  %v626 = vunpack.c.l.b16 %v108
  %v627 = vunpack.c.l.b16 %v109
  %v628 = vunpack.c.l.b16 %v110
  %v629 = vunpack.c.l.b16 %v111
  %v630 = vunpack.c.l.b16 %v112
  %v631 = vunpack.c.l.b16 %v113
  %v632 = vunpack.c.l.b16 %v114
  %v633 = vunpack.c.l.b16 %v115
  %v634 = vunpack.c.l.b16 %v116
  %v635 = vunpack.c.l.b16 %v117
  %v636 = vunpack.c.l.b16 %v118
  %v637 = vunpack.c.l.b16 %v119
  %v638 = vunpack.c.l.b16 %v120
  %v639 = vunpack.c.l.b16 %v121
  %v640 = vunpack.c.l.b16 %v122
  %v641 = vunpack.c.l.b16 %v123
  %v642 = vunpack.c.l.b16 %v124
  %v643 = vunpack.c.l.b16 %v125
  %v644 = vunpack.c.l.b16 %v126
  %v645 = vunpack.c.l.b16 %v127
  %v646 = vunpack.c.l.b16 %v128
  %v647 = vunpack.c.l.b16 %v129
  %v648 = vunpack.c.l.b16 %v130
  %v649 = vunpack.c.l.b16 %v131
  %v650 = vunpack.c.l.b16 %v132
  %v651 = vunpack.c.l.b16 %v133
  %v652 = vunpack.c.l.b16 %v134
  %v653 = vunpack.c.l.b16 %v135
  %v654 = vunpack.c.l.b16 %v136
  %v655 = vunpack.c.l.b16 %v137
  %v656 = vunpack.c.l.b16 %v138
  %v657 = vunpack.c.l.b16 %v139
  %v658 = vunpack.c.l.b16 %v140
  %v659 = vunpack.c.l.b16 %v141
  %v660 = vunpack.c.l.b16 %v142
  %v661 = vunpack.c.l.b16 %v143
  %v662 = vunpack.c.l.b16 %v144
  %v663 = vunpack.c.l.b16 %v145
  %v664 = vunpack.c.l.b16 %v146
  %v665 = vunpack.c.l.b16 %v147
  %v666 = vunpack.c.l.b16 %v148
  %v667 = vunpack.c.l.b16 %v149
  %v668 = vunpack.c.l.b16 %v150
  %v669 = vunpack.c.l.b16 %v151
  %v670 = vunpack.c.l.b16 %v152
  %v671 = vunpack.c.l.b16 %v153
  %v672 = vunpack.c.l.b16 %v154
  %v673 = vunpack.c.l.b16 %v155
  %v674 = vunpack.c.l.b16 %v156
  %v675 = vunpack.c.l.b16 %v157
  %v676 = vunpack.c.l.b16 %v158
  %v677 = vunpack.c.l.b16 %v159
  %v678 = vunpack.c.l.b16 %v160
  %v679 = vunpack.c.l.b16 %v161
  %v680 = vunpack.c.l.b16 %v162
  %v681 = vunpack.c.l.b16 %v163
  %v682 = vunpack.c.l.b16 %v164
  %v683 = vunpack.c.l.b16 %v165
  %v684 = vunpack.c.l.b16 %v166
  %v685 = vunpack.c.l.b16 %v167
  %v686 = vunpack.c.l.b16 %v168
  %v687 = vunpack.c.l.b16 %v169
  %v688 = vunpack.c.l.b16 %v170
  %v689 = vunpack.c.l.b16 %v171
  %v690 = vunpack.c.l.b16 %v172
  %v691 = vunpack.c.l.b16 %v173
  %v692 = vunpack.c.l.b16 %v174
  %v693 = vunpack.c.l.b16 %v175
  %v694 = vunpack.c.l.b16 %v176
  %v695 = vunpack.c.l.b16 %v177
  %v696 = vunpack.c.l.b16 %v178
  %v697 = vunpack.c.l.b16 %v179
  %v698 = vunpack.c.l.b16 %v180
  %v699 = vunpack.c.l.b16 %v181
  %v700 = vunpack.c.l.b16 %v182
  %v701 = vunpack.c.l.b16 %v183
  %v702 = vunpack.c.l.b16 %v184
  %v703 = vunpack.c.l.b16 %v185
  %v704 = vunpack.c.l.b16 %v186
  %v705 = vunpack.c.l.b16 %v187
  %v706 = vunpack.c.l.b16 %v188
  %v707 = vunpack.c.l.b16 %v189
  %v708 = vunpack.c.l.b16 %v190
  %v709 = vunpack.c.l.b16 %v191
  %v710 = vunpack.c.l.b16 %v192
  %v711 = vunpack.c.l.b16 %v193
  %v712 = vunpack.c.l.b16 %v194
  %v713 = vunpack.c.l.b16 %v195
  %v714 = vunpack.c.l.b16 %v196
  %v715 = vunpack.c.l.b16 %v197
  %v716 = vunpack.c.l.b16 %v198
  %v717 = vunpack.c.l.b16 %v199
  %v718 = vunpack.c.l.b16 %v200
  %v719 = vunpack.c.l.b16 %v201
  %v720 = vunpack.c.l.b16 %v202
  %v721 = vunpack.c.l.b16 %v203
  %v722 = vunpack.c.l.b16 %v204
  %v723 = vunpack.c.l.b16 %v205
  %v724 = vunpack.c.l.b16 %v206
  %v725 = vunpack.c.l.b16 %v207
  %v726 = vunpack.c.l.b16 %v208
  %v727 = vunpack.c.l.b16 %v209
  %v728 = vunpack.c.l.b16 %v210
  %v729 = vunpack.c.l.b16 %v211
  %v730 = vunpack.c.l.b16 %v212
  %v731 = vunpack.c.l.b16 %v213
  %v732 = vunpack.c.l.b16 %v214
  %v733 = vunpack.c.l.b16 %v215
  %v734 = vunpack.c.l.b16 %v216
  %v735 = vunpack.c.l.b16 %v217
  %v736 = vunpack.c.l.b16 %v218
  %v737 = vunpack.c.l.b16 %v219
  %v738 = vunpack.c.l.b16 %v220
  %v739 = vunpack.c.l.b16 %v221
  %v740 = vunpack.c.l.b16 %v222
  %v741 = vunpack.c.l.b16 %v223
  %v742 = vunpack.c.l.b16 %v224
  %v743 = vunpack.c.l.b16 %v225
  %v744 = vunpack.c.l.b16 %v226
  %v745 = vunpack.c.l.b16 %v227
  %v746 = vunpack.c.l.b16 %v228
  %v747 = vunpack.c.l.b16 %v229
  %v748 = vunpack.c.l.b16 %v230
  %v749 = vunpack.c.l.b16 %v231
  %v750 = vunpack.c.l.b16 %v232
  %v751 = vunpack.c.l.b16 %v233
  %v752 = vunpack.c.l.b16 %v234
  %v753 = vunpack.c.l.b16 %v235
  %v754 = vunpack.c.l.b16 %v236
  %v755 = vunpack.c.l.b16 %v237
  %v756 = vunpack.c.l.b16 %v238
  %v757 = vunpack.c.l.b16 %v239
  %v758 = vunpack.c.l.b16 %v240
  %v759 = vunpack.c.l.b16 %v241
  %v760 = vunpack.c.l.b16 %v242
  %v761 = vunpack.c.l.b16 %v243
  %v762 = vunpack.c.l.b16 %v244
  %v763 = vunpack.c.l.b16 %v245
  %v764 = vunpack.c.l.b16 %v246
  %v765 = vunpack.c.l.b16 %v247
  %v766 = vunpack.c.l.b16 %v248
  %v767 = vunpack.c.l.b16 %v249
  %v768 = vunpack.c.l.b16 %v250
  %v769 = vunpack.c.l.b16 %v251
  %v770 = vunpack.c.l.b16 %v252
  %v771 = vunpack.c.l.b16 %v253
  %v772 = vunpack.c.l.b16 %v254
  %v773 = vunpack.c.l.b16 %v255
  %v774 = vunpack.c.l.b16 %v256
  %v775 = vunpack.c.l.b16 %v257
  %v776 = vunpack.c.l.b16 %v258
  %v777 = vunpack.c.l.b16 %v259
  %v778 = vunpack.c.l.b16 %v260
  %v779 = vunpack.c.l.b16 %v261
  %v780 = vunpack.c.l.b16 %v262
  %v781 = vunpack.c.l.b16 %v263
  %v782 = vunpack.c.l.b16 %v264
  %v783 = vunpack.c.l.b16 %v265
  %v784 = vunpack.c.l.b16 %v266
  %v785 = vunpack.c.l.b16 %v267
  %v786 = vpack.c.b16 %v531, %v530
  %v787 = vpack.c.b16 %v533, %v532
  %v788 = vpack.c.b16 %v535, %v534
  %v789 = vpack.c.b16 %v537, %v536
  %v790 = vpack.c.b16 %v539, %v538
  %v791 = vpack.c.b16 %v541, %v540
  %v792 = vpack.c.b16 %v543, %v542
  %v793 = vpack.c.b16 %v545, %v544
  %v794 = vpack.c.b16 %v547, %v546
  %v795 = vpack.c.b16 %v549, %v548
  %v796 = vpack.c.b16 %v551, %v550
  %v797 = vpack.c.b16 %v553, %v552
  %v798 = vpack.c.b16 %v555, %v554
  %v799 = vpack.c.b16 %v557, %v556
  %v800 = vpack.c.b16 %v559, %v558
  %v801 = vpack.c.b16 %v561, %v560
  %v802 = vpack.c.b16 %v563, %v562
  %v803 = vpack.c.b16 %v565, %v564
  %v804 = vpack.c.b16 %v567, %v566
  %v805 = vpack.c.b16 %v569, %v568
  %v806 = vpack.c.b16 %v571, %v570
  %v807 = vpack.c.b16 %v573, %v572
  %v808 = vpack.c.b16 %v575, %v574
  %v809 = vpack.c.b16 %v577, %v576
  %v810 = vpack.c.b16 %v579, %v578
  %v811 = vpack.c.b16 %v581, %v580
  %v812 = vpack.c.b16 %v583, %v582
  %v813 = vpack.c.b16 %v585, %v584
  %v814 = vpack.c.b16 %v587, %v586
  %v815 = vpack.c.b16 %v589, %v588
  %v816 = vpack.c.b16 %v591, %v590
  %v817 = vpack.c.b16 %v593, %v592
  %v818 = vpack.c.b16 %v595, %v594
  %v819 = vpack.c.b16 %v597, %v596
  %v820 = vpack.c.b16 %v599, %v598
  %v821 = vpack.c.b16 %v601, %v600
  %v822 = vpack.c.b16 %v603, %v602
  %v823 = vpack.c.b16 %v605, %v604
  %v824 = vpack.c.b16 %v607, %v606
  %v825 = vpack.c.b16 %v609, %v608
  %v826 = vpack.c.b16 %v611, %v610
  %v827 = vpack.c.b16 %v613, %v612
  %v828 = vpack.c.b16 %v615, %v614
  %v829 = vpack.c.b16 %v617, %v616
  %v830 = vpack.c.b16 %v619, %v618
  %v831 = vpack.c.b16 %v621, %v620
  %v832 = vpack.c.b16 %v623, %v622
  %v833 = vpack.c.b16 %v625, %v624
  %v834 = vpack.c.b16 %v627, %v626
  %v835 = vpack.c.b16 %v629, %v628
  %v836 = vpack.c.b16 %v631, %v630
  %v837 = vpack.c.b16 %v633, %v632
  %v838 = vpack.c.b16 %v635, %v634
  %v839 = vpack.c.b16 %v637, %v636
  %v840 = vpack.c.b16 %v639, %v638
  %v841 = vpack.c.b16 %v641, %v640
  %v842 = vpack.c.b16 %v643, %v642
  %v843 = vpack.c.b16 %v645, %v644
  %v844 = vpack.c.b16 %v647, %v646
  %v845 = vpack.c.b16 %v649, %v648
  %v846 = vpack.c.b16 %v651, %v650
  %v847 = vpack.c.b16 %v653, %v652
  %v848 = vpack.c.b16 %v655, %v654
  %v849 = vpack.c.b16 %v657, %v656
  %v850 = vpack.c.b16 %v659, %v658
  %v851 = vpack.c.b16 %v661, %v660
  %v852 = vpack.c.b16 %v663, %v662
  %v853 = vpack.c.b16 %v665, %v664
  %v854 = vpack.c.b16 %v667, %v666
  %v855 = vpack.c.b16 %v669, %v668
  %v856 = vpack.c.b16 %v671, %v670
  %v857 = vpack.c.b16 %v673, %v672
  %v858 = vpack.c.b16 %v675, %v674
  %v859 = vpack.c.b16 %v677, %v676
  %v860 = vpack.c.b16 %v679, %v678
  %v861 = vpack.c.b16 %v681, %v680
  %v862 = vpack.c.b16 %v683, %v682
  %v863 = vpack.c.b16 %v685, %v684
  %v864 = vpack.c.b16 %v687, %v686
  %v865 = vpack.c.b16 %v689, %v688
  %v866 = vpack.c.b16 %v691, %v690
  %v867 = vpack.c.b16 %v693, %v692
  %v868 = vpack.c.b16 %v695, %v694
  %v869 = vpack.c.b16 %v697, %v696
  %v870 = vpack.c.b16 %v699, %v698
  %v871 = vpack.c.b16 %v701, %v700
  %v872 = vpack.c.b16 %v703, %v702
  %v873 = vpack.c.b16 %v705, %v704
  %v874 = vpack.c.b16 %v707, %v706
  %v875 = vpack.c.b16 %v709, %v708
  %v876 = vpack.c.b16 %v711, %v710
  %v877 = vpack.c.b16 %v713, %v712
  %v878 = vpack.c.b16 %v715, %v714
  %v879 = vpack.c.b16 %v717, %v716
  %v880 = vpack.c.b16 %v719, %v718
  %v881 = vpack.c.b16 %v721, %v720
  %v882 = vpack.c.b16 %v723, %v722
  %v883 = vpack.c.b16 %v725, %v724
  %v884 = vpack.c.b16 %v727, %v726
  %v885 = vpack.c.b16 %v729, %v728
  %v886 = vpack.c.b16 %v731, %v730
  %v887 = vpack.c.b16 %v733, %v732
  %v888 = vpack.c.b16 %v735, %v734
  %v889 = vpack.c.b16 %v737, %v736
  %v890 = vpack.c.b16 %v739, %v738
  %v891 = vpack.c.b16 %v741, %v740
  %v892 = vpack.c.b16 %v743, %v742
  %v893 = vpack.c.b16 %v745, %v744
  %v894 = vpack.c.b16 %v747, %v746
  %v895 = vpack.c.b16 %v749, %v748
  %v896 = vpack.c.b16 %v751, %v750
  %v897 = vpack.c.b16 %v753, %v752
  %v898 = vpack.c.b16 %v755, %v754
  %v899 = vpack.c.b16 %v757, %v756
  %v900 = vpack.c.b16 %v759, %v758
  %v901 = vpack.c.b16 %v761, %v760
  %v902 = vpack.c.b16 %v763, %v762
  %v903 = vpack.c.b16 %v765, %v764
  %v904 = vpack.c.b16 %v767, %v766
  %v905 = vpack.c.b16 %v769, %v768
  %v906 = vpack.c.b16 %v771, %v770
  %v907 = vpack.c.b16 %v773, %v772
  %v908 = vpack.c.b16 %v775, %v774
  %v909 = vpack.c.b16 %v777, %v776
  %v910 = vpack.c.b16 %v779, %v778
  %v911 = vpack.c.b16 %v781, %v780
  %v912 = vpack.c.b16 %v783, %v782
  %v913 = vpack.c.b16 %v785, %v784
  %v920 = vunpack.c.l.b16 %v268
  %v921 = vunpack.c.l.b16 %v269
  %v922 = vunpack.c.l.b16 %v270
  %v923 = vunpack.c.l.b16 %v271
  %v924 = vunpack.c.l.b16 %v272
  %v925 = vunpack.c.l.b16 %v273
  %v926 = vpack.c.b16 %v921, %v920
  %v927 = vpack.c.b16 %v923, %v922
  %v928 = vpack.c.b16 %v925, %v924
  %vm932 = vcmask 392192
  %v934 = vsel %vm932, %v786, 0
  %v937 = vsel %vm932, %v787, 0
  %v940 = vsel %vm932, %v788, 0
  %v943 = vsel %vm932, %v789, 0
  %v946 = vsel %vm932, %v790, 0
  %v949 = vsel %vm932, %v791, 0
  %v952 = vsel %vm932, %v792, 0
  %v955 = vsel %vm932, %v793, 0
  %v958 = vsel %vm932, %v794, 0
  %v961 = vsel %vm932, %v795, 0
  %v964 = vsel %vm932, %v796, 0
  %v967 = vsel %vm932, %v797, 0
  %v970 = vsel %vm932, %v798, 0
  %v973 = vsel %vm932, %v799, 0
  %v976 = vsel %vm932, %v800, 0
  %v979 = vsel %vm932, %v801, 0
  %v982 = vsel %vm932, %v802, 0
  %v985 = vsel %vm932, %v803, 0
  %v988 = vsel %vm932, %v804, 0
  %v991 = vsel %vm932, %v805, 0
  %v994 = vsel %vm932, %v806, 0
  %v997 = vsel %vm932, %v807, 0
  %v1000 = vsel %vm932, %v808, 0
  %v1003 = vsel %vm932, %v809, 0
  %v1006 = vsel %vm932, %v810, 0
  %v1009 = vsel %vm932, %v811, 0
  %v1012 = vsel %vm932, %v812, 0
  %v1015 = vsel %vm932, %v813, 0
  %v1018 = vsel %vm932, %v814, 0
  %v1021 = vsel %vm932, %v815, 0
  %v1024 = vsel %vm932, %v816, 0
  %v1027 = vsel %vm932, %v817, 0
  %v1030 = vsel %vm932, %v818, 0
  %v1033 = vsel %vm932, %v819, 0
  %v1036 = vsel %vm932, %v820, 0
  %v1039 = vsel %vm932, %v821, 0
  %v1042 = vsel %vm932, %v822, 0
  %v1045 = vsel %vm932, %v823, 0
  %v1048 = vsel %vm932, %v824, 0
  %v1051 = vsel %vm932, %v825, 0
  %v1054 = vsel %vm932, %v826, 0
  %v1057 = vsel %vm932, %v827, 0
  %v1060 = vsel %vm932, %v828, 0
  %v1063 = vsel %vm932, %v829, 0
  %v1066 = vsel %vm932, %v830, 0
  %v1069 = vsel %vm932, %v831, 0
  %v1072 = vsel %vm932, %v832, 0
  %v1075 = vsel %vm932, %v833, 0
  %v1078 = vsel %vm932, %v834, 0
  %v1081 = vsel %vm932, %v835, 0
  %v1084 = vsel %vm932, %v836, 0
  %v1087 = vsel %vm932, %v837, 0
  %v1090 = vsel %vm932, %v838, 0
  %v1093 = vsel %vm932, %v839, 0
  %v1096 = vsel %vm932, %v840, 0
  %v1099 = vsel %vm932, %v841, 0
  %v1102 = vsel %vm932, %v842, 0
  %v1105 = vsel %vm932, %v843, 0
  %v1108 = vsel %vm932, %v844, 0
  %v1111 = vsel %vm932, %v845, 0
  %v1114 = vsel %vm932, %v846, 0
  %v1117 = vsel %vm932, %v847, 0
  %v1120 = vsel %vm932, %v848, 0
  %v1123 = vsel %vm932, %v849, 0
  %v1126 = vsel %vm932, %v850, 0
  %v1129 = vsel %vm932, %v851, 0
  %v1132 = vsel %vm932, %v852, 0
  %v1135 = vsel %vm932, %v853, 0
  %v1138 = vsel %vm932, %v854, 0
  %v1141 = vsel %vm932, %v855, 0
  %v1144 = vsel %vm932, %v856, 0
  %v1147 = vsel %vm932, %v857, 0
  %v1150 = vsel %vm932, %v858, 0
  %v1153 = vsel %vm932, %v859, 0
  %v1156 = vsel %vm932, %v860, 0
  %v1159 = vsel %vm932, %v861, 0
  %v1162 = vsel %vm932, %v862, 0
  %v1165 = vsel %vm932, %v863, 0
  %v1168 = vsel %vm932, %v864, 0
  %v1171 = vsel %vm932, %v865, 0
  %v1174 = vsel %vm932, %v866, 0
  %v1177 = vsel %vm932, %v867, 0
  %v1180 = vsel %vm932, %v868, 0
  %v1183 = vsel %vm932, %v869, 0
  %v1186 = vsel %vm932, %v870, 0
  %v1189 = vsel %vm932, %v871, 0
  %v1192 = vsel %vm932, %v872, 0
  %v1195 = vsel %vm932, %v873, 0
  %v1198 = vsel %vm932, %v874, 0
  %v1201 = vsel %vm932, %v875, 0
  %v1204 = vsel %vm932, %v876, 0
  %v1207 = vsel %vm932, %v877, 0
  %v1210 = vsel %vm932, %v878, 0
  %v1213 = vsel %vm932, %v879, 0
  %v1216 = vsel %vm932, %v880, 0
  %v1219 = vsel %vm932, %v881, 0
  %v1222 = vsel %vm932, %v882, 0
  %v1225 = vsel %vm932, %v883, 0
  %v1228 = vsel %vm932, %v884, 0
  %v1231 = vsel %vm932, %v885, 0
  %v1234 = vsel %vm932, %v886, 0
  %v1237 = vsel %vm932, %v887, 0
  %v1240 = vsel %vm932, %v888, 0
  %v1243 = vsel %vm932, %v889, 0
  %v1246 = vsel %vm932, %v890, 0
  %v1249 = vsel %vm932, %v891, 0
  %v1252 = vsel %vm932, %v892, 0
  %v1255 = vsel %vm932, %v893, 0
  %v1258 = vsel %vm932, %v894, 0
  %v1261 = vsel %vm932, %v895, 0
  %v1264 = vsel %vm932, %v896, 0
  %v1267 = vsel %vm932, %v897, 0
  %v1270 = vsel %vm932, %v898, 0
  %v1273 = vsel %vm932, %v899, 0
  %v1276 = vsel %vm932, %v900, 0
  %v1279 = vsel %vm932, %v901, 0
  %v1282 = vsel %vm932, %v902, 0
  %v1285 = vsel %vm932, %v903, 0
  %v1288 = vsel %vm932, %v904, 0
  %v1291 = vsel %vm932, %v905, 0
  %v1294 = vsel %vm932, %v906, 0
  %v1297 = vsel %vm932, %v907, 0
  %v1300 = vsel %vm932, %v908, 0
  %v1303 = vsel %vm932, %v909, 0
  %v1306 = vsel %vm932, %v910, 0
  %v1309 = vsel %vm932, %v911, 0
  %v1312 = vsel %vm932, %v912, 0
  %v1315 = vsel %vm932, %v913, 0
  %1317 = vmatprep.subr.bf16.mxu0 0
  %1318 = vmatpush1.bf16.msra.mxu0 0
  %1319 = vmatprep.subr.bf16.mxu0 0
  %1320 = vmatpush1.bf16.msra.mxu0 0
  %1321 = vmatprep.subr.bf16.mxu0 0
  %1322 = vmatpush1.bf16.msra.mxu0 0
  %1323 = vmatprep.subr.bf16.mxu0 0
  %1324 = vmatpush1.bf16.msra.mxu0 0
  %1325 = vmatprep.subr.bf16.mxu0 0
  %1326 = vmatpush1.bf16.msra.mxu0 0
  %1327 = vmatprep.subr.bf16.mxu0 0
  %1328 = vmatpush1.bf16.msra.mxu0 %v928
  %1329 = vmatprep.subr.bf16.mxu0 0
  %1330 = vmatpush1.bf16.msra.mxu0 %v927
  %1331 = vmatprep.subr.bf16.mxu0 0
  %1332 = vmatpush1.bf16.msra.mxu0 %v926
  %1333 = vmatprep.subr.bf16.mxu0 0
  %1334 = vmatpush2.bf16.msra.mxu0 0
  %1335 = vmatprep.subr.bf16.mxu0 0
  %1336 = vmatpush2.bf16.msra.mxu0 0
  %1337 = vmatprep.subr.bf16.mxu0 0
  %1338 = vmatpush2.bf16.msra.mxu0 0
  %1339 = vmatprep.subr.bf16.mxu0 0
  %1340 = vmatpush2.bf16.msra.mxu0 0
  %1341 = vmatprep.subr.bf16.mxu0 0
  %1342 = vmatpush2.bf16.msra.mxu0 0
  %1343 = vmatprep.subr.bf16.mxu0 0
  %1344 = vmatpush2.bf16.msra.mxu0 0
  %1345 = vmatprep.subr.bf16.mxu0 0
  %1346 = vmatpush2.bf16.msra.mxu0 0
  %1347 = vmatprep.subr.bf16.mxu0 0
  %1348 = vmatpush2.bf16.msra.mxu0 0
  %1349 = vmatprep.mubr.bf16.mxu0 0
  %1350 = vmatmul.mubr.bf16.gmra.mxu0 %v934
  %v1351 = vpop.f32.mrf.mxu0
  %v1352 = vadd.f32 0.0, %v1351
  %v1353 = vpop.f32.mrf.mxu0
  %v1354 = vpop.f32.mrf.mxu0
  %v1355 = vadd.f32 0.0, %v1354
  %v1356 = vpop.f32.mrf.mxu0
  %1357 = vmatprep.mubr.bf16.mxu0 0
  %1358 = vmatmul.mubr.bf16.gmra.mxu0 %v937
  %v1359 = vpop.f32.mrf.mxu0
  %v1360 = vadd.f32 0.0, %v1359
  %v1361 = vpop.f32.mrf.mxu0
  %v1362 = vpop.f32.mrf.mxu0
  %v1363 = vadd.f32 0.0, %v1362
  %v1364 = vpop.f32.mrf.mxu0
  %1365 = vmatprep.mubr.bf16.mxu0 0
  %1366 = vmatmul.mubr.bf16.gmra.mxu0 %v940
  %v1367 = vpop.f32.mrf.mxu0
  %v1368 = vadd.f32 0.0, %v1367
  %v1369 = vpop.f32.mrf.mxu0
  %v1370 = vpop.f32.mrf.mxu0
  %v1371 = vadd.f32 0.0, %v1370
  %v1372 = vpop.f32.mrf.mxu0
  %1373 = vmatprep.mubr.bf16.mxu0 0
  %1374 = vmatmul.mubr.bf16.gmra.mxu0 %v943
  %v1375 = vpop.f32.mrf.mxu0
  %v1376 = vadd.f32 0.0, %v1375
  %v1377 = vpop.f32.mrf.mxu0
  %v1378 = vpop.f32.mrf.mxu0
  %v1379 = vadd.f32 0.0, %v1378
  %v1380 = vpop.f32.mrf.mxu0
  %1381 = vmatprep.mubr.bf16.mxu0 0
  %1382 = vmatmul.mubr.bf16.gmra.mxu0 %v946
  %v1383 = vpop.f32.mrf.mxu0
  %v1384 = vadd.f32 0.0, %v1383
  %v1385 = vpop.f32.mrf.mxu0
  %v1386 = vpop.f32.mrf.mxu0
  %v1387 = vadd.f32 0.0, %v1386
  %v1388 = vpop.f32.mrf.mxu0
  %1389 = vmatprep.mubr.bf16.mxu0 0
  %1390 = vmatmul.mubr.bf16.gmra.mxu0 %v949
  %v1391 = vpop.f32.mrf.mxu0
  %v1392 = vadd.f32 0.0, %v1391
  %v1393 = vpop.f32.mrf.mxu0
  %v1394 = vpop.f32.mrf.mxu0
  %v1395 = vadd.f32 0.0, %v1394
  %v1396 = vpop.f32.mrf.mxu0
  %1397 = vmatprep.mubr.bf16.mxu0 0
  %1398 = vmatmul.mubr.bf16.gmra.mxu0 %v952
  %v1399 = vpop.f32.mrf.mxu0
  %v1400 = vadd.f32 0.0, %v1399
  %v1401 = vpop.f32.mrf.mxu0
  %v1402 = vpop.f32.mrf.mxu0
  %v1403 = vadd.f32 0.0, %v1402
  %v1404 = vpop.f32.mrf.mxu0
  %1405 = vmatprep.mubr.bf16.mxu0 0
  %1406 = vmatmul.mubr.bf16.gmra.mxu0 %v955
  %v1407 = vpop.f32.mrf.mxu0
  %v1408 = vadd.f32 0.0, %v1407
  %v1409 = vpop.f32.mrf.mxu0
  %v1410 = vpop.f32.mrf.mxu0
  %v1411 = vadd.f32 0.0, %v1410
  %v1412 = vpop.f32.mrf.mxu0
  %1413 = vmatprep.mubr.bf16.mxu0 0
  %1414 = vmatmul.mubr.bf16.gmra.mxu0 %v958
  %v1415 = vpop.f32.mrf.mxu0
  %v1416 = vadd.f32 0.0, %v1415
  %v1417 = vpop.f32.mrf.mxu0
  %v1418 = vpop.f32.mrf.mxu0
  %v1419 = vadd.f32 0.0, %v1418
  %v1420 = vpop.f32.mrf.mxu0
  %1421 = vmatprep.mubr.bf16.mxu0 0
  %1422 = vmatmul.mubr.bf16.gmra.mxu0 %v961
  %v1423 = vpop.f32.mrf.mxu0
  %v1424 = vadd.f32 0.0, %v1423
  %v1425 = vpop.f32.mrf.mxu0
  %v1426 = vpop.f32.mrf.mxu0
  %v1427 = vadd.f32 0.0, %v1426
  %v1428 = vpop.f32.mrf.mxu0
  %1429 = vmatprep.mubr.bf16.mxu0 0
  %1430 = vmatmul.mubr.bf16.gmra.mxu0 %v964
  %v1431 = vpop.f32.mrf.mxu0
  %v1432 = vadd.f32 0.0, %v1431
  %v1433 = vpop.f32.mrf.mxu0
  %v1434 = vpop.f32.mrf.mxu0
  %v1435 = vadd.f32 0.0, %v1434
  %v1436 = vpop.f32.mrf.mxu0
  %1437 = vmatprep.mubr.bf16.mxu0 0
  %1438 = vmatmul.mubr.bf16.gmra.mxu0 %v967
  %v1439 = vpop.f32.mrf.mxu0
  %v1440 = vadd.f32 0.0, %v1439
  %v1441 = vpop.f32.mrf.mxu0
  %v1442 = vpop.f32.mrf.mxu0
  %v1443 = vadd.f32 0.0, %v1442
  %v1444 = vpop.f32.mrf.mxu0
  %1445 = vmatprep.mubr.bf16.mxu0 0
  %1446 = vmatmul.mubr.bf16.gmra.mxu0 %v970
  %v1447 = vpop.f32.mrf.mxu0
  %v1448 = vadd.f32 0.0, %v1447
  %v1449 = vpop.f32.mrf.mxu0
  %v1450 = vpop.f32.mrf.mxu0
  %v1451 = vadd.f32 0.0, %v1450
  %v1452 = vpop.f32.mrf.mxu0
  %1453 = vmatprep.mubr.bf16.mxu0 0
  %1454 = vmatmul.mubr.bf16.gmra.mxu0 %v973
  %v1455 = vpop.f32.mrf.mxu0
  %v1456 = vadd.f32 0.0, %v1455
  %v1457 = vpop.f32.mrf.mxu0
  %v1458 = vpop.f32.mrf.mxu0
  %v1459 = vadd.f32 0.0, %v1458
  %v1460 = vpop.f32.mrf.mxu0
  %1461 = vmatprep.mubr.bf16.mxu0 0
  %1462 = vmatmul.mubr.bf16.gmra.mxu0 %v976
  %v1463 = vpop.f32.mrf.mxu0
  %v1464 = vadd.f32 0.0, %v1463
  %v1465 = vpop.f32.mrf.mxu0
  %v1466 = vpop.f32.mrf.mxu0
  %v1467 = vadd.f32 0.0, %v1466
  %v1468 = vpop.f32.mrf.mxu0
  %1469 = vmatprep.mubr.bf16.mxu0 0
  %1470 = vmatmul.mubr.bf16.gmra.mxu0 %v979
  %v1471 = vpop.f32.mrf.mxu0
  %v1472 = vadd.f32 0.0, %v1471
  %v1473 = vpop.f32.mrf.mxu0
  %v1474 = vpop.f32.mrf.mxu0
  %v1475 = vadd.f32 0.0, %v1474
  %v1476 = vpop.f32.mrf.mxu0
  %1477 = vmatprep.mubr.bf16.mxu0 0
  %1478 = vmatmul.mubr.bf16.gmra.mxu0 %v982
  %v1479 = vpop.f32.mrf.mxu0
  %v1480 = vadd.f32 0.0, %v1479
  %v1481 = vpop.f32.mrf.mxu0
  %v1482 = vpop.f32.mrf.mxu0
  %v1483 = vadd.f32 0.0, %v1482
  %v1484 = vpop.f32.mrf.mxu0
  %1485 = vmatprep.mubr.bf16.mxu0 0
  %1486 = vmatmul.mubr.bf16.gmra.mxu0 %v985
  %v1487 = vpop.f32.mrf.mxu0
  %v1488 = vadd.f32 0.0, %v1487
  %v1489 = vpop.f32.mrf.mxu0
  %v1490 = vpop.f32.mrf.mxu0
  %v1491 = vadd.f32 0.0, %v1490
  %v1492 = vpop.f32.mrf.mxu0
  %1493 = vmatprep.mubr.bf16.mxu0 0
  %1494 = vmatmul.mubr.bf16.gmra.mxu0 %v988
  %v1495 = vpop.f32.mrf.mxu0
  %v1496 = vadd.f32 0.0, %v1495
  %v1497 = vpop.f32.mrf.mxu0
  %v1498 = vpop.f32.mrf.mxu0
  %v1499 = vadd.f32 0.0, %v1498
  %v1500 = vpop.f32.mrf.mxu0
  %1501 = vmatprep.mubr.bf16.mxu0 0
  %1502 = vmatmul.mubr.bf16.gmra.mxu0 %v991
  %v1503 = vpop.f32.mrf.mxu0
  %v1504 = vadd.f32 0.0, %v1503
  %v1505 = vpop.f32.mrf.mxu0
  %v1506 = vpop.f32.mrf.mxu0
  %v1507 = vadd.f32 0.0, %v1506
  %v1508 = vpop.f32.mrf.mxu0
  %1509 = vmatprep.mubr.bf16.mxu0 0
  %1510 = vmatmul.mubr.bf16.gmra.mxu0 %v994
  %v1511 = vpop.f32.mrf.mxu0
  %v1512 = vadd.f32 0.0, %v1511
  %v1513 = vpop.f32.mrf.mxu0
  %v1514 = vpop.f32.mrf.mxu0
  %v1515 = vadd.f32 0.0, %v1514
  %v1516 = vpop.f32.mrf.mxu0
  %1517 = vmatprep.mubr.bf16.mxu0 0
  %1518 = vmatmul.mubr.bf16.gmra.mxu0 %v997
  %v1519 = vpop.f32.mrf.mxu0
  %v1520 = vadd.f32 0.0, %v1519
  %v1521 = vpop.f32.mrf.mxu0
  %v1522 = vpop.f32.mrf.mxu0
  %v1523 = vadd.f32 0.0, %v1522
  %v1524 = vpop.f32.mrf.mxu0
  %1525 = vmatprep.mubr.bf16.mxu0 0
  %1526 = vmatmul.mubr.bf16.gmra.mxu0 %v1000
  %v1527 = vpop.f32.mrf.mxu0
  %v1528 = vadd.f32 0.0, %v1527
  %v1529 = vpop.f32.mrf.mxu0
  %v1530 = vpop.f32.mrf.mxu0
  %v1531 = vadd.f32 0.0, %v1530
  %v1532 = vpop.f32.mrf.mxu0
  %1533 = vmatprep.mubr.bf16.mxu0 0
  %1534 = vmatmul.mubr.bf16.gmra.mxu0 %v1003
  %v1535 = vpop.f32.mrf.mxu0
  %v1536 = vadd.f32 0.0, %v1535
  %v1537 = vpop.f32.mrf.mxu0
  %v1538 = vpop.f32.mrf.mxu0
  %v1539 = vadd.f32 0.0, %v1538
  %v1540 = vpop.f32.mrf.mxu0
  %1541 = vmatprep.mubr.bf16.mxu0 0
  %1542 = vmatmul.mubr.bf16.gmra.mxu0 %v1006
  %v1543 = vpop.f32.mrf.mxu0
  %v1544 = vadd.f32 0.0, %v1543
  %v1545 = vpop.f32.mrf.mxu0
  %v1546 = vpop.f32.mrf.mxu0
  %v1547 = vadd.f32 0.0, %v1546
  %v1548 = vpop.f32.mrf.mxu0
  %1549 = vmatprep.mubr.bf16.mxu0 0
  %1550 = vmatmul.mubr.bf16.gmra.mxu0 %v1009
  %v1551 = vpop.f32.mrf.mxu0
  %v1552 = vadd.f32 0.0, %v1551
  %v1553 = vpop.f32.mrf.mxu0
  %v1554 = vpop.f32.mrf.mxu0
  %v1555 = vadd.f32 0.0, %v1554
  %v1556 = vpop.f32.mrf.mxu0
  %1557 = vmatprep.mubr.bf16.mxu0 0
  %1558 = vmatmul.mubr.bf16.gmra.mxu0 %v1012
  %v1559 = vpop.f32.mrf.mxu0
  %v1560 = vadd.f32 0.0, %v1559
  %v1561 = vpop.f32.mrf.mxu0
  %v1562 = vpop.f32.mrf.mxu0
  %v1563 = vadd.f32 0.0, %v1562
  %v1564 = vpop.f32.mrf.mxu0
  %1565 = vmatprep.mubr.bf16.mxu0 0
  %1566 = vmatmul.mubr.bf16.gmra.mxu0 %v1015
  %v1567 = vpop.f32.mrf.mxu0
  %v1568 = vadd.f32 0.0, %v1567
  %v1569 = vpop.f32.mrf.mxu0
  %v1570 = vpop.f32.mrf.mxu0
  %v1571 = vadd.f32 0.0, %v1570
  %v1572 = vpop.f32.mrf.mxu0
  %1573 = vmatprep.mubr.bf16.mxu0 0
  %1574 = vmatmul.mubr.bf16.gmra.mxu0 %v1018
  %v1575 = vpop.f32.mrf.mxu0
  %v1576 = vadd.f32 0.0, %v1575
  %v1577 = vpop.f32.mrf.mxu0
  %v1578 = vpop.f32.mrf.mxu0
  %v1579 = vadd.f32 0.0, %v1578
  %v1580 = vpop.f32.mrf.mxu0
  %1581 = vmatprep.mubr.bf16.mxu0 0
  %1582 = vmatmul.mubr.bf16.gmra.mxu0 %v1021
  %v1583 = vpop.f32.mrf.mxu0
  %v1584 = vadd.f32 0.0, %v1583
  %v1585 = vpop.f32.mrf.mxu0
  %v1586 = vpop.f32.mrf.mxu0
  %v1587 = vadd.f32 0.0, %v1586
  %v1588 = vpop.f32.mrf.mxu0
  %1589 = vmatprep.mubr.bf16.mxu0 0
  %1590 = vmatmul.mubr.bf16.gmra.mxu0 %v1024
  %v1591 = vpop.f32.mrf.mxu0
  %v1592 = vadd.f32 0.0, %v1591
  %v1593 = vpop.f32.mrf.mxu0
  %v1594 = vpop.f32.mrf.mxu0
  %v1595 = vadd.f32 0.0, %v1594
  %v1596 = vpop.f32.mrf.mxu0
  %1597 = vmatprep.mubr.bf16.mxu0 0
  %1598 = vmatmul.mubr.bf16.gmra.mxu0 %v1027
  %v1599 = vpop.f32.mrf.mxu0
  %v1600 = vadd.f32 0.0, %v1599
  %v1601 = vpop.f32.mrf.mxu0
  %v1602 = vpop.f32.mrf.mxu0
  %v1603 = vadd.f32 0.0, %v1602
  %v1604 = vpop.f32.mrf.mxu0
  %1605 = vmatprep.mubr.bf16.mxu0 0
  %1606 = vmatmul.mubr.bf16.gmra.mxu0 %v1030
  %v1607 = vpop.f32.mrf.mxu0
  %v1608 = vadd.f32 0.0, %v1607
  %v1609 = vpop.f32.mrf.mxu0
  %v1610 = vpop.f32.mrf.mxu0
  %v1611 = vadd.f32 0.0, %v1610
  %v1612 = vpop.f32.mrf.mxu0
  %1613 = vmatprep.mubr.bf16.mxu0 0
  %1614 = vmatmul.mubr.bf16.gmra.mxu0 %v1033
  %v1615 = vpop.f32.mrf.mxu0
  %v1616 = vadd.f32 0.0, %v1615
  %v1617 = vpop.f32.mrf.mxu0
  %v1618 = vpop.f32.mrf.mxu0
  %v1619 = vadd.f32 0.0, %v1618
  %v1620 = vpop.f32.mrf.mxu0
  %1621 = vmatprep.mubr.bf16.mxu0 0
  %1622 = vmatmul.mubr.bf16.gmra.mxu0 %v1036
  %v1623 = vpop.f32.mrf.mxu0
  %v1624 = vadd.f32 0.0, %v1623
  %v1625 = vpop.f32.mrf.mxu0
  %v1626 = vpop.f32.mrf.mxu0
  %v1627 = vadd.f32 0.0, %v1626
  %v1628 = vpop.f32.mrf.mxu0
  %1629 = vmatprep.mubr.bf16.mxu0 0
  %1630 = vmatmul.mubr.bf16.gmra.mxu0 %v1039
  %v1631 = vpop.f32.mrf.mxu0
  %v1632 = vadd.f32 0.0, %v1631
  %v1633 = vpop.f32.mrf.mxu0
  %v1634 = vpop.f32.mrf.mxu0
  %v1635 = vadd.f32 0.0, %v1634
  %v1636 = vpop.f32.mrf.mxu0
  %1637 = vmatprep.mubr.bf16.mxu0 0
  %1638 = vmatmul.mubr.bf16.gmra.mxu0 %v1042
  %v1639 = vpop.f32.mrf.mxu0
  %v1640 = vadd.f32 0.0, %v1639
  %v1641 = vpop.f32.mrf.mxu0
  %v1642 = vpop.f32.mrf.mxu0
  %v1643 = vadd.f32 0.0, %v1642
  %v1644 = vpop.f32.mrf.mxu0
  %1645 = vmatprep.mubr.bf16.mxu0 0
  %1646 = vmatmul.mubr.bf16.gmra.mxu0 %v1045
  %v1647 = vpop.f32.mrf.mxu0
  %v1648 = vadd.f32 0.0, %v1647
  %v1649 = vpop.f32.mrf.mxu0
  %v1650 = vpop.f32.mrf.mxu0
  %v1651 = vadd.f32 0.0, %v1650
  %v1652 = vpop.f32.mrf.mxu0
  %1653 = vmatprep.mubr.bf16.mxu0 0
  %1654 = vmatmul.mubr.bf16.gmra.mxu0 %v1048
  %v1655 = vpop.f32.mrf.mxu0
  %v1656 = vadd.f32 0.0, %v1655
  %v1657 = vpop.f32.mrf.mxu0
  %v1658 = vpop.f32.mrf.mxu0
  %v1659 = vadd.f32 0.0, %v1658
  %v1660 = vpop.f32.mrf.mxu0
  %1661 = vmatprep.mubr.bf16.mxu0 0
  %1662 = vmatmul.mubr.bf16.gmra.mxu0 %v1051
  %v1663 = vpop.f32.mrf.mxu0
  %v1664 = vadd.f32 0.0, %v1663
  %v1665 = vpop.f32.mrf.mxu0
  %v1666 = vpop.f32.mrf.mxu0
  %v1667 = vadd.f32 0.0, %v1666
  %v1668 = vpop.f32.mrf.mxu0
  %1669 = vmatprep.mubr.bf16.mxu0 0
  %1670 = vmatmul.mubr.bf16.gmra.mxu0 %v1054
  %v1671 = vpop.f32.mrf.mxu0
  %v1672 = vadd.f32 0.0, %v1671
  %v1673 = vpop.f32.mrf.mxu0
  %v1674 = vpop.f32.mrf.mxu0
  %v1675 = vadd.f32 0.0, %v1674
  %v1676 = vpop.f32.mrf.mxu0
  %1677 = vmatprep.mubr.bf16.mxu0 0
  %1678 = vmatmul.mubr.bf16.gmra.mxu0 %v1057
  %v1679 = vpop.f32.mrf.mxu0
  %v1680 = vadd.f32 0.0, %v1679
  %v1681 = vpop.f32.mrf.mxu0
  %v1682 = vpop.f32.mrf.mxu0
  %v1683 = vadd.f32 0.0, %v1682
  %v1684 = vpop.f32.mrf.mxu0
  %1685 = vmatprep.mubr.bf16.mxu0 0
  %1686 = vmatmul.mubr.bf16.gmra.mxu0 %v1060
  %v1687 = vpop.f32.mrf.mxu0
  %v1688 = vadd.f32 0.0, %v1687
  %v1689 = vpop.f32.mrf.mxu0
  %v1690 = vpop.f32.mrf.mxu0
  %v1691 = vadd.f32 0.0, %v1690
  %v1692 = vpop.f32.mrf.mxu0
  %1693 = vmatprep.mubr.bf16.mxu0 0
  %1694 = vmatmul.mubr.bf16.gmra.mxu0 %v1063
  %v1695 = vpop.f32.mrf.mxu0
  %v1696 = vadd.f32 0.0, %v1695
  %v1697 = vpop.f32.mrf.mxu0
  %v1698 = vpop.f32.mrf.mxu0
  %v1699 = vadd.f32 0.0, %v1698
  %v1700 = vpop.f32.mrf.mxu0
  %1701 = vmatprep.mubr.bf16.mxu0 0
  %1702 = vmatmul.mubr.bf16.gmra.mxu0 %v1066
  %v1703 = vpop.f32.mrf.mxu0
  %v1704 = vadd.f32 0.0, %v1703
  %v1705 = vpop.f32.mrf.mxu0
  %v1706 = vpop.f32.mrf.mxu0
  %v1707 = vadd.f32 0.0, %v1706
  %v1708 = vpop.f32.mrf.mxu0
  %1709 = vmatprep.mubr.bf16.mxu0 0
  %1710 = vmatmul.mubr.bf16.gmra.mxu0 %v1069
  %v1711 = vpop.f32.mrf.mxu0
  %v1712 = vadd.f32 0.0, %v1711
  %v1713 = vpop.f32.mrf.mxu0
  %v1714 = vpop.f32.mrf.mxu0
  %v1715 = vadd.f32 0.0, %v1714
  %v1716 = vpop.f32.mrf.mxu0
  %1717 = vmatprep.mubr.bf16.mxu0 0
  %1718 = vmatmul.mubr.bf16.gmra.mxu0 %v1072
  %v1719 = vpop.f32.mrf.mxu0
  %v1720 = vadd.f32 0.0, %v1719
  %v1721 = vpop.f32.mrf.mxu0
  %v1722 = vpop.f32.mrf.mxu0
  %v1723 = vadd.f32 0.0, %v1722
  %v1724 = vpop.f32.mrf.mxu0
  %1725 = vmatprep.mubr.bf16.mxu0 0
  %1726 = vmatmul.mubr.bf16.gmra.mxu0 %v1075
  %v1727 = vpop.f32.mrf.mxu0
  %v1728 = vadd.f32 0.0, %v1727
  %v1729 = vpop.f32.mrf.mxu0
  %v1730 = vpop.f32.mrf.mxu0
  %v1731 = vadd.f32 0.0, %v1730
  %v1732 = vpop.f32.mrf.mxu0
  %1733 = vmatprep.mubr.bf16.mxu0 0
  %1734 = vmatmul.mubr.bf16.gmra.mxu0 %v1078
  %v1735 = vpop.f32.mrf.mxu0
  %v1736 = vadd.f32 0.0, %v1735
  %v1737 = vpop.f32.mrf.mxu0
  %v1738 = vpop.f32.mrf.mxu0
  %v1739 = vadd.f32 0.0, %v1738
  %v1740 = vpop.f32.mrf.mxu0
  %1741 = vmatprep.mubr.bf16.mxu0 0
  %1742 = vmatmul.mubr.bf16.gmra.mxu0 %v1081
  %v1743 = vpop.f32.mrf.mxu0
  %v1744 = vadd.f32 0.0, %v1743
  %v1745 = vpop.f32.mrf.mxu0
  %v1746 = vpop.f32.mrf.mxu0
  %v1747 = vadd.f32 0.0, %v1746
  %v1748 = vpop.f32.mrf.mxu0
  %1749 = vmatprep.mubr.bf16.mxu0 0
  %1750 = vmatmul.mubr.bf16.gmra.mxu0 %v1084
  %v1751 = vpop.f32.mrf.mxu0
  %v1752 = vadd.f32 0.0, %v1751
  %v1753 = vpop.f32.mrf.mxu0
  %v1754 = vpop.f32.mrf.mxu0
  %v1755 = vadd.f32 0.0, %v1754
  %v1756 = vpop.f32.mrf.mxu0
  %1757 = vmatprep.mubr.bf16.mxu0 0
  %1758 = vmatmul.mubr.bf16.gmra.mxu0 %v1087
  %v1759 = vpop.f32.mrf.mxu0
  %v1760 = vadd.f32 0.0, %v1759
  %v1761 = vpop.f32.mrf.mxu0
  %v1762 = vpop.f32.mrf.mxu0
  %v1763 = vadd.f32 0.0, %v1762
  %v1764 = vpop.f32.mrf.mxu0
  %1765 = vmatprep.mubr.bf16.mxu0 0
  %1766 = vmatmul.mubr.bf16.gmra.mxu0 %v1090
  %v1767 = vpop.f32.mrf.mxu0
  %v1768 = vadd.f32 0.0, %v1767
  %v1769 = vpop.f32.mrf.mxu0
  %v1770 = vpop.f32.mrf.mxu0
  %v1771 = vadd.f32 0.0, %v1770
  %v1772 = vpop.f32.mrf.mxu0
  %1773 = vmatprep.mubr.bf16.mxu0 0
  %1774 = vmatmul.mubr.bf16.gmra.mxu0 %v1093
  %v1775 = vpop.f32.mrf.mxu0
  %v1776 = vadd.f32 0.0, %v1775
  %v1777 = vpop.f32.mrf.mxu0
  %v1778 = vpop.f32.mrf.mxu0
  %v1779 = vadd.f32 0.0, %v1778
  %v1780 = vpop.f32.mrf.mxu0
  %1781 = vmatprep.mubr.bf16.mxu0 0
  %1782 = vmatmul.mubr.bf16.gmra.mxu0 %v1096
  %v1783 = vpop.f32.mrf.mxu0
  %v1784 = vadd.f32 0.0, %v1783
  %v1785 = vpop.f32.mrf.mxu0
  %v1786 = vpop.f32.mrf.mxu0
  %v1787 = vadd.f32 0.0, %v1786
  %v1788 = vpop.f32.mrf.mxu0
  %1789 = vmatprep.mubr.bf16.mxu0 0
  %1790 = vmatmul.mubr.bf16.gmra.mxu0 %v1099
  %v1791 = vpop.f32.mrf.mxu0
  %v1792 = vadd.f32 0.0, %v1791
  %v1793 = vpop.f32.mrf.mxu0
  %v1794 = vpop.f32.mrf.mxu0
  %v1795 = vadd.f32 0.0, %v1794
  %v1796 = vpop.f32.mrf.mxu0
  %1797 = vmatprep.mubr.bf16.mxu0 0
  %1798 = vmatmul.mubr.bf16.gmra.mxu0 %v1102
  %v1799 = vpop.f32.mrf.mxu0
  %v1800 = vadd.f32 0.0, %v1799
  %v1801 = vpop.f32.mrf.mxu0
  %v1802 = vpop.f32.mrf.mxu0
  %v1803 = vadd.f32 0.0, %v1802
  %v1804 = vpop.f32.mrf.mxu0
  %1805 = vmatprep.mubr.bf16.mxu0 0
  %1806 = vmatmul.mubr.bf16.gmra.mxu0 %v1105
  %v1807 = vpop.f32.mrf.mxu0
  %v1808 = vadd.f32 0.0, %v1807
  %v1809 = vpop.f32.mrf.mxu0
  %v1810 = vpop.f32.mrf.mxu0
  %v1811 = vadd.f32 0.0, %v1810
  %v1812 = vpop.f32.mrf.mxu0
  %1813 = vmatprep.mubr.bf16.mxu0 0
  %1814 = vmatmul.mubr.bf16.gmra.mxu0 %v1108
  %v1815 = vpop.f32.mrf.mxu0
  %v1816 = vadd.f32 0.0, %v1815
  %v1817 = vpop.f32.mrf.mxu0
  %v1818 = vpop.f32.mrf.mxu0
  %v1819 = vadd.f32 0.0, %v1818
  %v1820 = vpop.f32.mrf.mxu0
  %1821 = vmatprep.mubr.bf16.mxu0 0
  %1822 = vmatmul.mubr.bf16.gmra.mxu0 %v1111
  %v1823 = vpop.f32.mrf.mxu0
  %v1824 = vadd.f32 0.0, %v1823
  %v1825 = vpop.f32.mrf.mxu0
  %v1826 = vpop.f32.mrf.mxu0
  %v1827 = vadd.f32 0.0, %v1826
  %v1828 = vpop.f32.mrf.mxu0
  %1829 = vmatprep.mubr.bf16.mxu0 0
  %1830 = vmatmul.mubr.bf16.gmra.mxu0 %v1114
  %v1831 = vpop.f32.mrf.mxu0
  %v1832 = vadd.f32 0.0, %v1831
  %v1833 = vpop.f32.mrf.mxu0
  %v1834 = vpop.f32.mrf.mxu0
  %v1835 = vadd.f32 0.0, %v1834
  %v1836 = vpop.f32.mrf.mxu0
  %1837 = vmatprep.mubr.bf16.mxu0 0
  %1838 = vmatmul.mubr.bf16.gmra.mxu0 %v1117
  %v1839 = vpop.f32.mrf.mxu0
  %v1840 = vadd.f32 0.0, %v1839
  %v1841 = vpop.f32.mrf.mxu0
  %v1842 = vpop.f32.mrf.mxu0
  %v1843 = vadd.f32 0.0, %v1842
  %v1844 = vpop.f32.mrf.mxu0
  %1845 = vmatprep.mubr.bf16.mxu0 0
  %1846 = vmatmul.mubr.bf16.gmra.mxu0 %v1120
  %v1847 = vpop.f32.mrf.mxu0
  %v1848 = vadd.f32 0.0, %v1847
  %v1849 = vpop.f32.mrf.mxu0
  %v1850 = vpop.f32.mrf.mxu0
  %v1851 = vadd.f32 0.0, %v1850
  %v1852 = vpop.f32.mrf.mxu0
  %1853 = vmatprep.mubr.bf16.mxu0 0
  %1854 = vmatmul.mubr.bf16.gmra.mxu0 %v1123
  %v1855 = vpop.f32.mrf.mxu0
  %v1856 = vadd.f32 0.0, %v1855
  %v1857 = vpop.f32.mrf.mxu0
  %v1858 = vpop.f32.mrf.mxu0
  %v1859 = vadd.f32 0.0, %v1858
  %v1860 = vpop.f32.mrf.mxu0
  %1861 = vmatprep.mubr.bf16.mxu0 0
  %1862 = vmatmul.mubr.bf16.gmra.mxu0 %v1126
  %v1863 = vpop.f32.mrf.mxu0
  %v1864 = vadd.f32 0.0, %v1863
  %v1865 = vpop.f32.mrf.mxu0
  %v1866 = vpop.f32.mrf.mxu0
  %v1867 = vadd.f32 0.0, %v1866
  %v1868 = vpop.f32.mrf.mxu0
  %1869 = vmatprep.mubr.bf16.mxu0 0
  %1870 = vmatmul.mubr.bf16.gmra.mxu0 %v1129
  %v1871 = vpop.f32.mrf.mxu0
  %v1872 = vadd.f32 0.0, %v1871
  %v1873 = vpop.f32.mrf.mxu0
  %v1874 = vpop.f32.mrf.mxu0
  %v1875 = vadd.f32 0.0, %v1874
  %v1876 = vpop.f32.mrf.mxu0
  %1877 = vmatprep.mubr.bf16.mxu0 0
  %1878 = vmatmul.mubr.bf16.gmra.mxu0 %v1132
  %v1879 = vpop.f32.mrf.mxu0
  %v1880 = vadd.f32 0.0, %v1879
  %v1881 = vpop.f32.mrf.mxu0
  %v1882 = vpop.f32.mrf.mxu0
  %v1883 = vadd.f32 0.0, %v1882
  %v1884 = vpop.f32.mrf.mxu0
  %1885 = vmatprep.mubr.bf16.mxu0 0
  %1886 = vmatmul.mubr.bf16.gmra.mxu0 %v1135
  %v1887 = vpop.f32.mrf.mxu0
  %v1888 = vadd.f32 0.0, %v1887
  %v1889 = vpop.f32.mrf.mxu0
  %v1890 = vpop.f32.mrf.mxu0
  %v1891 = vadd.f32 0.0, %v1890
  %v1892 = vpop.f32.mrf.mxu0
  %1893 = vmatprep.mubr.bf16.mxu0 0
  %1894 = vmatmul.mubr.bf16.gmra.mxu0 %v1138
  %v1895 = vpop.f32.mrf.mxu0
  %v1896 = vadd.f32 0.0, %v1895
  %v1897 = vpop.f32.mrf.mxu0
  %v1898 = vpop.f32.mrf.mxu0
  %v1899 = vadd.f32 0.0, %v1898
  %v1900 = vpop.f32.mrf.mxu0
  %1901 = vmatprep.mubr.bf16.mxu0 0
  %1902 = vmatmul.mubr.bf16.gmra.mxu0 %v1141
  %v1903 = vpop.f32.mrf.mxu0
  %v1904 = vadd.f32 0.0, %v1903
  %v1905 = vpop.f32.mrf.mxu0
  %v1906 = vpop.f32.mrf.mxu0
  %v1907 = vadd.f32 0.0, %v1906
  %v1908 = vpop.f32.mrf.mxu0
  %1909 = vmatprep.mubr.bf16.mxu0 0
  %1910 = vmatmul.mubr.bf16.gmra.mxu0 %v1144
  %v1911 = vpop.f32.mrf.mxu0
  %v1912 = vadd.f32 0.0, %v1911
  %v1913 = vpop.f32.mrf.mxu0
  %v1914 = vpop.f32.mrf.mxu0
  %v1915 = vadd.f32 0.0, %v1914
  %v1916 = vpop.f32.mrf.mxu0
  %1917 = vmatprep.mubr.bf16.mxu0 0
  %1918 = vmatmul.mubr.bf16.gmra.mxu0 %v1147
  %v1919 = vpop.f32.mrf.mxu0
  %v1920 = vadd.f32 0.0, %v1919
  %v1921 = vpop.f32.mrf.mxu0
  %v1922 = vpop.f32.mrf.mxu0
  %v1923 = vadd.f32 0.0, %v1922
  %v1924 = vpop.f32.mrf.mxu0
  %1925 = vmatprep.mubr.bf16.mxu0 0
  %1926 = vmatmul.mubr.bf16.gmra.mxu0 %v1150
  %v1927 = vpop.f32.mrf.mxu0
  %v1928 = vadd.f32 0.0, %v1927
  %v1929 = vpop.f32.mrf.mxu0
  %v1930 = vpop.f32.mrf.mxu0
  %v1931 = vadd.f32 0.0, %v1930
  %v1932 = vpop.f32.mrf.mxu0
  %1933 = vmatprep.mubr.bf16.mxu0 0
  %1934 = vmatmul.mubr.bf16.gmra.mxu0 %v1153
  %v1935 = vpop.f32.mrf.mxu0
  %v1936 = vadd.f32 0.0, %v1935
  %v1937 = vpop.f32.mrf.mxu0
  %v1938 = vpop.f32.mrf.mxu0
  %v1939 = vadd.f32 0.0, %v1938
  %v1940 = vpop.f32.mrf.mxu0
  %1941 = vmatprep.mubr.bf16.mxu0 0
  %1942 = vmatmul.mubr.bf16.gmra.mxu0 %v1156
  %v1943 = vpop.f32.mrf.mxu0
  %v1944 = vadd.f32 0.0, %v1943
  %v1945 = vpop.f32.mrf.mxu0
  %v1946 = vpop.f32.mrf.mxu0
  %v1947 = vadd.f32 0.0, %v1946
  %v1948 = vpop.f32.mrf.mxu0
  %1949 = vmatprep.mubr.bf16.mxu0 0
  %1950 = vmatmul.mubr.bf16.gmra.mxu0 %v1159
  %v1951 = vpop.f32.mrf.mxu0
  %v1952 = vadd.f32 0.0, %v1951
  %v1953 = vpop.f32.mrf.mxu0
  %v1954 = vpop.f32.mrf.mxu0
  %v1955 = vadd.f32 0.0, %v1954
  %v1956 = vpop.f32.mrf.mxu0
  %1957 = vmatprep.mubr.bf16.mxu0 0
  %1958 = vmatmul.mubr.bf16.gmra.mxu0 %v1162
  %v1959 = vpop.f32.mrf.mxu0
  %v1960 = vadd.f32 0.0, %v1959
  %v1961 = vpop.f32.mrf.mxu0
  %v1962 = vpop.f32.mrf.mxu0
  %v1963 = vadd.f32 0.0, %v1962
  %v1964 = vpop.f32.mrf.mxu0
  %1965 = vmatprep.mubr.bf16.mxu0 0
  %1966 = vmatmul.mubr.bf16.gmra.mxu0 %v1165
  %v1967 = vpop.f32.mrf.mxu0
  %v1968 = vadd.f32 0.0, %v1967
  %v1969 = vpop.f32.mrf.mxu0
  %v1970 = vpop.f32.mrf.mxu0
  %v1971 = vadd.f32 0.0, %v1970
  %v1972 = vpop.f32.mrf.mxu0
  %1973 = vmatprep.mubr.bf16.mxu0 0
  %1974 = vmatmul.mubr.bf16.gmra.mxu0 %v1168
  %v1975 = vpop.f32.mrf.mxu0
  %v1976 = vadd.f32 0.0, %v1975
  %v1977 = vpop.f32.mrf.mxu0
  %v1978 = vpop.f32.mrf.mxu0
  %v1979 = vadd.f32 0.0, %v1978
  %v1980 = vpop.f32.mrf.mxu0
  %1981 = vmatprep.mubr.bf16.mxu0 0
  %1982 = vmatmul.mubr.bf16.gmra.mxu0 %v1171
  %v1983 = vpop.f32.mrf.mxu0
  %v1984 = vadd.f32 0.0, %v1983
  %v1985 = vpop.f32.mrf.mxu0
  %v1986 = vpop.f32.mrf.mxu0
  %v1987 = vadd.f32 0.0, %v1986
  %v1988 = vpop.f32.mrf.mxu0
  %1989 = vmatprep.mubr.bf16.mxu0 0
  %1990 = vmatmul.mubr.bf16.gmra.mxu0 %v1174
  %v1991 = vpop.f32.mrf.mxu0
  %v1992 = vadd.f32 0.0, %v1991
  %v1993 = vpop.f32.mrf.mxu0
  %v1994 = vpop.f32.mrf.mxu0
  %v1995 = vadd.f32 0.0, %v1994
  %v1996 = vpop.f32.mrf.mxu0
  %1997 = vmatprep.mubr.bf16.mxu0 0
  %1998 = vmatmul.mubr.bf16.gmra.mxu0 %v1177
  %v1999 = vpop.f32.mrf.mxu0
  %v2000 = vadd.f32 0.0, %v1999
  %v2001 = vpop.f32.mrf.mxu0
  %v2002 = vpop.f32.mrf.mxu0
  %v2003 = vadd.f32 0.0, %v2002
  %v2004 = vpop.f32.mrf.mxu0
  %2005 = vmatprep.mubr.bf16.mxu0 0
  %2006 = vmatmul.mubr.bf16.gmra.mxu0 %v1180
  %v2007 = vpop.f32.mrf.mxu0
  %v2008 = vadd.f32 0.0, %v2007
  %v2009 = vpop.f32.mrf.mxu0
  %v2010 = vpop.f32.mrf.mxu0
  %v2011 = vadd.f32 0.0, %v2010
  %v2012 = vpop.f32.mrf.mxu0
  %2013 = vmatprep.mubr.bf16.mxu0 0
  %2014 = vmatmul.mubr.bf16.gmra.mxu0 %v1183
  %v2015 = vpop.f32.mrf.mxu0
  %v2016 = vadd.f32 0.0, %v2015
  %v2017 = vpop.f32.mrf.mxu0
  %v2018 = vpop.f32.mrf.mxu0
  %v2019 = vadd.f32 0.0, %v2018
  %v2020 = vpop.f32.mrf.mxu0
  %2021 = vmatprep.mubr.bf16.mxu0 0
  %2022 = vmatmul.mubr.bf16.gmra.mxu0 %v1186
  %v2023 = vpop.f32.mrf.mxu0
  %v2024 = vadd.f32 0.0, %v2023
  %v2025 = vpop.f32.mrf.mxu0
  %v2026 = vpop.f32.mrf.mxu0
  %v2027 = vadd.f32 0.0, %v2026
  %v2028 = vpop.f32.mrf.mxu0
  %2029 = vmatprep.mubr.bf16.mxu0 0
  %2030 = vmatmul.mubr.bf16.gmra.mxu0 %v1189
  %v2031 = vpop.f32.mrf.mxu0
  %v2032 = vadd.f32 0.0, %v2031
  %v2033 = vpop.f32.mrf.mxu0
  %v2034 = vpop.f32.mrf.mxu0
  %v2035 = vadd.f32 0.0, %v2034
  %v2036 = vpop.f32.mrf.mxu0
  %2037 = vmatprep.mubr.bf16.mxu0 0
  %2038 = vmatmul.mubr.bf16.gmra.mxu0 %v1192
  %v2039 = vpop.f32.mrf.mxu0
  %v2040 = vadd.f32 0.0, %v2039
  %v2041 = vpop.f32.mrf.mxu0
  %v2042 = vpop.f32.mrf.mxu0
  %v2043 = vadd.f32 0.0, %v2042
  %v2044 = vpop.f32.mrf.mxu0
  %2045 = vmatprep.mubr.bf16.mxu0 0
  %2046 = vmatmul.mubr.bf16.gmra.mxu0 %v1195
  %v2047 = vpop.f32.mrf.mxu0
  %v2048 = vadd.f32 0.0, %v2047
  %v2049 = vpop.f32.mrf.mxu0
  %v2050 = vpop.f32.mrf.mxu0
  %v2051 = vadd.f32 0.0, %v2050
  %v2052 = vpop.f32.mrf.mxu0
  %2053 = vmatprep.mubr.bf16.mxu0 0
  %2054 = vmatmul.mubr.bf16.gmra.mxu0 %v1198
  %v2055 = vpop.f32.mrf.mxu0
  %v2056 = vadd.f32 0.0, %v2055
  %v2057 = vpop.f32.mrf.mxu0
  %v2058 = vpop.f32.mrf.mxu0
  %v2059 = vadd.f32 0.0, %v2058
  %v2060 = vpop.f32.mrf.mxu0
  %2061 = vmatprep.mubr.bf16.mxu0 0
  %2062 = vmatmul.mubr.bf16.gmra.mxu0 %v1201
  %v2063 = vpop.f32.mrf.mxu0
  %v2064 = vadd.f32 0.0, %v2063
  %v2065 = vpop.f32.mrf.mxu0
  %v2066 = vpop.f32.mrf.mxu0
  %v2067 = vadd.f32 0.0, %v2066
  %v2068 = vpop.f32.mrf.mxu0
  %2069 = vmatprep.mubr.bf16.mxu0 0
  %2070 = vmatmul.mubr.bf16.gmra.mxu0 %v1204
  %v2071 = vpop.f32.mrf.mxu0
  %v2072 = vadd.f32 0.0, %v2071
  %v2073 = vpop.f32.mrf.mxu0
  %v2074 = vpop.f32.mrf.mxu0
  %v2075 = vadd.f32 0.0, %v2074
  %v2076 = vpop.f32.mrf.mxu0
  %2077 = vmatprep.mubr.bf16.mxu0 0
  %2078 = vmatmul.mubr.bf16.gmra.mxu0 %v1207
  %v2079 = vpop.f32.mrf.mxu0
  %v2080 = vadd.f32 0.0, %v2079
  %v2081 = vpop.f32.mrf.mxu0
  %v2082 = vpop.f32.mrf.mxu0
  %v2083 = vadd.f32 0.0, %v2082
  %v2084 = vpop.f32.mrf.mxu0
  %2085 = vmatprep.mubr.bf16.mxu0 0
  %2086 = vmatmul.mubr.bf16.gmra.mxu0 %v1210
  %v2087 = vpop.f32.mrf.mxu0
  %v2088 = vadd.f32 0.0, %v2087
  %v2089 = vpop.f32.mrf.mxu0
  %v2090 = vpop.f32.mrf.mxu0
  %v2091 = vadd.f32 0.0, %v2090
  %v2092 = vpop.f32.mrf.mxu0
  %2093 = vmatprep.mubr.bf16.mxu0 0
  %2094 = vmatmul.mubr.bf16.gmra.mxu0 %v1213
  %v2095 = vpop.f32.mrf.mxu0
  %v2096 = vadd.f32 0.0, %v2095
  %v2097 = vpop.f32.mrf.mxu0
  %v2098 = vpop.f32.mrf.mxu0
  %v2099 = vadd.f32 0.0, %v2098
  %v2100 = vpop.f32.mrf.mxu0
  %2101 = vmatprep.mubr.bf16.mxu0 0
  %2102 = vmatmul.mubr.bf16.gmra.mxu0 %v1216
  %v2103 = vpop.f32.mrf.mxu0
  %v2104 = vadd.f32 0.0, %v2103
  %v2105 = vpop.f32.mrf.mxu0
  %v2106 = vpop.f32.mrf.mxu0
  %v2107 = vadd.f32 0.0, %v2106
  %v2108 = vpop.f32.mrf.mxu0
  %2109 = vmatprep.mubr.bf16.mxu0 0
  %2110 = vmatmul.mubr.bf16.gmra.mxu0 %v1219
  %v2111 = vpop.f32.mrf.mxu0
  %v2112 = vadd.f32 0.0, %v2111
  %v2113 = vpop.f32.mrf.mxu0
  %v2114 = vpop.f32.mrf.mxu0
  %v2115 = vadd.f32 0.0, %v2114
  %v2116 = vpop.f32.mrf.mxu0
  %2117 = vmatprep.mubr.bf16.mxu0 0
  %2118 = vmatmul.mubr.bf16.gmra.mxu0 %v1222
  %v2119 = vpop.f32.mrf.mxu0
  %v2120 = vadd.f32 0.0, %v2119
  %v2121 = vpop.f32.mrf.mxu0
  %v2122 = vpop.f32.mrf.mxu0
  %v2123 = vadd.f32 0.0, %v2122
  %v2124 = vpop.f32.mrf.mxu0
  %2125 = vmatprep.mubr.bf16.mxu0 0
  %2126 = vmatmul.mubr.bf16.gmra.mxu0 %v1225
  %v2127 = vpop.f32.mrf.mxu0
  %v2128 = vadd.f32 0.0, %v2127
  %v2129 = vpop.f32.mrf.mxu0
  %v2130 = vpop.f32.mrf.mxu0
  %v2131 = vadd.f32 0.0, %v2130
  %v2132 = vpop.f32.mrf.mxu0
  %2133 = vmatprep.mubr.bf16.mxu0 0
  %2134 = vmatmul.mubr.bf16.gmra.mxu0 %v1228
  %v2135 = vpop.f32.mrf.mxu0
  %v2136 = vadd.f32 0.0, %v2135
  %v2137 = vpop.f32.mrf.mxu0
  %v2138 = vpop.f32.mrf.mxu0
  %v2139 = vadd.f32 0.0, %v2138
  %v2140 = vpop.f32.mrf.mxu0
  %2141 = vmatprep.mubr.bf16.mxu0 0
  %2142 = vmatmul.mubr.bf16.gmra.mxu0 %v1231
  %v2143 = vpop.f32.mrf.mxu0
  %v2144 = vadd.f32 0.0, %v2143
  %v2145 = vpop.f32.mrf.mxu0
  %v2146 = vpop.f32.mrf.mxu0
  %v2147 = vadd.f32 0.0, %v2146
  %v2148 = vpop.f32.mrf.mxu0
  %2149 = vmatprep.mubr.bf16.mxu0 0
  %2150 = vmatmul.mubr.bf16.gmra.mxu0 %v1234
  %v2151 = vpop.f32.mrf.mxu0
  %v2152 = vadd.f32 0.0, %v2151
  %v2153 = vpop.f32.mrf.mxu0
  %v2154 = vpop.f32.mrf.mxu0
  %v2155 = vadd.f32 0.0, %v2154
  %v2156 = vpop.f32.mrf.mxu0
  %2157 = vmatprep.mubr.bf16.mxu0 0
  %2158 = vmatmul.mubr.bf16.gmra.mxu0 %v1237
  %v2159 = vpop.f32.mrf.mxu0
  %v2160 = vadd.f32 0.0, %v2159
  %v2161 = vpop.f32.mrf.mxu0
  %v2162 = vpop.f32.mrf.mxu0
  %v2163 = vadd.f32 0.0, %v2162
  %v2164 = vpop.f32.mrf.mxu0
  %2165 = vmatprep.mubr.bf16.mxu0 0
  %2166 = vmatmul.mubr.bf16.gmra.mxu0 %v1240
  %v2167 = vpop.f32.mrf.mxu0
  %v2168 = vadd.f32 0.0, %v2167
  %v2169 = vpop.f32.mrf.mxu0
  %v2170 = vpop.f32.mrf.mxu0
  %v2171 = vadd.f32 0.0, %v2170
  %v2172 = vpop.f32.mrf.mxu0
  %2173 = vmatprep.mubr.bf16.mxu0 0
  %2174 = vmatmul.mubr.bf16.gmra.mxu0 %v1243
  %v2175 = vpop.f32.mrf.mxu0
  %v2176 = vadd.f32 0.0, %v2175
  %v2177 = vpop.f32.mrf.mxu0
  %v2178 = vpop.f32.mrf.mxu0
  %v2179 = vadd.f32 0.0, %v2178
  %v2180 = vpop.f32.mrf.mxu0
  %2181 = vmatprep.mubr.bf16.mxu0 0
  %2182 = vmatmul.mubr.bf16.gmra.mxu0 %v1246
  %v2183 = vpop.f32.mrf.mxu0
  %v2184 = vadd.f32 0.0, %v2183
  %v2185 = vpop.f32.mrf.mxu0
  %v2186 = vpop.f32.mrf.mxu0
  %v2187 = vadd.f32 0.0, %v2186
  %v2188 = vpop.f32.mrf.mxu0
  %2189 = vmatprep.mubr.bf16.mxu0 0
  %2190 = vmatmul.mubr.bf16.gmra.mxu0 %v1249
  %v2191 = vpop.f32.mrf.mxu0
  %v2192 = vadd.f32 0.0, %v2191
  %v2193 = vpop.f32.mrf.mxu0
  %v2194 = vpop.f32.mrf.mxu0
  %v2195 = vadd.f32 0.0, %v2194
  %v2196 = vpop.f32.mrf.mxu0
  %2197 = vmatprep.mubr.bf16.mxu0 0
  %2198 = vmatmul.mubr.bf16.gmra.mxu0 %v1252
  %v2199 = vpop.f32.mrf.mxu0
  %v2200 = vadd.f32 0.0, %v2199
  %v2201 = vpop.f32.mrf.mxu0
  %v2202 = vpop.f32.mrf.mxu0
  %v2203 = vadd.f32 0.0, %v2202
  %v2204 = vpop.f32.mrf.mxu0
  %2205 = vmatprep.mubr.bf16.mxu0 0
  %2206 = vmatmul.mubr.bf16.gmra.mxu0 %v1255
  %v2207 = vpop.f32.mrf.mxu0
  %v2208 = vadd.f32 0.0, %v2207
  %v2209 = vpop.f32.mrf.mxu0
  %v2210 = vpop.f32.mrf.mxu0
  %v2211 = vadd.f32 0.0, %v2210
  %v2212 = vpop.f32.mrf.mxu0
  %2213 = vmatprep.mubr.bf16.mxu0 0
  %2214 = vmatmul.mubr.bf16.gmra.mxu0 %v1258
  %v2215 = vpop.f32.mrf.mxu0
  %v2216 = vadd.f32 0.0, %v2215
  %v2217 = vpop.f32.mrf.mxu0
  %v2218 = vpop.f32.mrf.mxu0
  %v2219 = vadd.f32 0.0, %v2218
  %v2220 = vpop.f32.mrf.mxu0
  %2221 = vmatprep.mubr.bf16.mxu0 0
  %2222 = vmatmul.mubr.bf16.gmra.mxu0 %v1261
  %v2223 = vpop.f32.mrf.mxu0
  %v2224 = vadd.f32 0.0, %v2223
  %v2225 = vpop.f32.mrf.mxu0
  %v2226 = vpop.f32.mrf.mxu0
  %v2227 = vadd.f32 0.0, %v2226
  %v2228 = vpop.f32.mrf.mxu0
  %2229 = vmatprep.mubr.bf16.mxu0 0
  %2230 = vmatmul.mubr.bf16.gmra.mxu0 %v1264
  %v2231 = vpop.f32.mrf.mxu0
  %v2232 = vadd.f32 0.0, %v2231
  %v2233 = vpop.f32.mrf.mxu0
  %v2234 = vpop.f32.mrf.mxu0
  %v2235 = vadd.f32 0.0, %v2234
  %v2236 = vpop.f32.mrf.mxu0
  %2237 = vmatprep.mubr.bf16.mxu0 0
  %2238 = vmatmul.mubr.bf16.gmra.mxu0 %v1267
  %v2239 = vpop.f32.mrf.mxu0
  %v2240 = vadd.f32 0.0, %v2239
  %v2241 = vpop.f32.mrf.mxu0
  %v2242 = vpop.f32.mrf.mxu0
  %v2243 = vadd.f32 0.0, %v2242
  %v2244 = vpop.f32.mrf.mxu0
  %2245 = vmatprep.mubr.bf16.mxu0 0
  %2246 = vmatmul.mubr.bf16.gmra.mxu0 %v1270
  %v2247 = vpop.f32.mrf.mxu0
  %v2248 = vadd.f32 0.0, %v2247
  %v2249 = vpop.f32.mrf.mxu0
  %v2250 = vpop.f32.mrf.mxu0
  %v2251 = vadd.f32 0.0, %v2250
  %v2252 = vpop.f32.mrf.mxu0
  %2253 = vmatprep.mubr.bf16.mxu0 0
  %2254 = vmatmul.mubr.bf16.gmra.mxu0 %v1273
  %v2255 = vpop.f32.mrf.mxu0
  %v2256 = vadd.f32 0.0, %v2255
  %v2257 = vpop.f32.mrf.mxu0
  %v2258 = vpop.f32.mrf.mxu0
  %v2259 = vadd.f32 0.0, %v2258
  %v2260 = vpop.f32.mrf.mxu0
  %2261 = vmatprep.mubr.bf16.mxu0 0
  %2262 = vmatmul.mubr.bf16.gmra.mxu0 %v1276
  %v2263 = vpop.f32.mrf.mxu0
  %v2264 = vadd.f32 0.0, %v2263
  %v2265 = vpop.f32.mrf.mxu0
  %v2266 = vpop.f32.mrf.mxu0
  %v2267 = vadd.f32 0.0, %v2266
  %v2268 = vpop.f32.mrf.mxu0
  %2269 = vmatprep.mubr.bf16.mxu0 0
  %2270 = vmatmul.mubr.bf16.gmra.mxu0 %v1279
  %v2271 = vpop.f32.mrf.mxu0
  %v2272 = vadd.f32 0.0, %v2271
  %v2273 = vpop.f32.mrf.mxu0
  %v2274 = vpop.f32.mrf.mxu0
  %v2275 = vadd.f32 0.0, %v2274
  %v2276 = vpop.f32.mrf.mxu0
  %2277 = vmatprep.mubr.bf16.mxu0 0
  %2278 = vmatmul.mubr.bf16.gmra.mxu0 %v1282
  %v2279 = vpop.f32.mrf.mxu0
  %v2280 = vadd.f32 0.0, %v2279
  %v2281 = vpop.f32.mrf.mxu0
  %v2282 = vpop.f32.mrf.mxu0
  %v2283 = vadd.f32 0.0, %v2282
  %v2284 = vpop.f32.mrf.mxu0
  %2285 = vmatprep.mubr.bf16.mxu0 0
  %2286 = vmatmul.mubr.bf16.gmra.mxu0 %v1285
  %v2287 = vpop.f32.mrf.mxu0
  %v2288 = vadd.f32 0.0, %v2287
  %v2289 = vpop.f32.mrf.mxu0
  %v2290 = vpop.f32.mrf.mxu0
  %v2291 = vadd.f32 0.0, %v2290
  %v2292 = vpop.f32.mrf.mxu0
  %2293 = vmatprep.mubr.bf16.mxu0 0
  %2294 = vmatmul.mubr.bf16.gmra.mxu0 %v1288
  %v2295 = vpop.f32.mrf.mxu0
  %v2296 = vadd.f32 0.0, %v2295
  %v2297 = vpop.f32.mrf.mxu0
  %v2298 = vpop.f32.mrf.mxu0
  %v2299 = vadd.f32 0.0, %v2298
  %v2300 = vpop.f32.mrf.mxu0
  %2301 = vmatprep.mubr.bf16.mxu0 0
  %2302 = vmatmul.mubr.bf16.gmra.mxu0 %v1291
  %v2303 = vpop.f32.mrf.mxu0
  %v2304 = vadd.f32 0.0, %v2303
  %v2305 = vpop.f32.mrf.mxu0
  %v2306 = vpop.f32.mrf.mxu0
  %v2307 = vadd.f32 0.0, %v2306
  %v2308 = vpop.f32.mrf.mxu0
  %2309 = vmatprep.mubr.bf16.mxu0 0
  %2310 = vmatmul.mubr.bf16.gmra.mxu0 %v1294
  %v2311 = vpop.f32.mrf.mxu0
  %v2312 = vadd.f32 0.0, %v2311
  %v2313 = vpop.f32.mrf.mxu0
  %v2314 = vpop.f32.mrf.mxu0
  %v2315 = vadd.f32 0.0, %v2314
  %v2316 = vpop.f32.mrf.mxu0
  %2317 = vmatprep.mubr.bf16.mxu0 0
  %2318 = vmatmul.mubr.bf16.gmra.mxu0 %v1297
  %v2319 = vpop.f32.mrf.mxu0
  %v2320 = vadd.f32 0.0, %v2319
  %v2321 = vpop.f32.mrf.mxu0
  %v2322 = vpop.f32.mrf.mxu0
  %v2323 = vadd.f32 0.0, %v2322
  %v2324 = vpop.f32.mrf.mxu0
  %2325 = vmatprep.mubr.bf16.mxu0 0
  %2326 = vmatmul.mubr.bf16.gmra.mxu0 %v1300
  %v2327 = vpop.f32.mrf.mxu0
  %v2328 = vadd.f32 0.0, %v2327
  %v2329 = vpop.f32.mrf.mxu0
  %v2330 = vpop.f32.mrf.mxu0
  %v2331 = vadd.f32 0.0, %v2330
  %v2332 = vpop.f32.mrf.mxu0
  %2333 = vmatprep.mubr.bf16.mxu0 0
  %2334 = vmatmul.mubr.bf16.gmra.mxu0 %v1303
  %v2335 = vpop.f32.mrf.mxu0
  %v2336 = vadd.f32 0.0, %v2335
  %v2337 = vpop.f32.mrf.mxu0
  %v2338 = vpop.f32.mrf.mxu0
  %v2339 = vadd.f32 0.0, %v2338
  %v2340 = vpop.f32.mrf.mxu0
  %2341 = vmatprep.mubr.bf16.mxu0 0
  %2342 = vmatmul.mubr.bf16.gmra.mxu0 %v1306
  %v2343 = vpop.f32.mrf.mxu0
  %v2344 = vadd.f32 0.0, %v2343
  %v2345 = vpop.f32.mrf.mxu0
  %v2346 = vpop.f32.mrf.mxu0
  %v2347 = vadd.f32 0.0, %v2346
  %v2348 = vpop.f32.mrf.mxu0
  %2349 = vmatprep.mubr.bf16.mxu0 0
  %2350 = vmatmul.mubr.bf16.gmra.mxu0 %v1309
  %v2351 = vpop.f32.mrf.mxu0
  %v2352 = vadd.f32 0.0, %v2351
  %v2353 = vpop.f32.mrf.mxu0
  %v2354 = vpop.f32.mrf.mxu0
  %v2355 = vadd.f32 0.0, %v2354
  %v2356 = vpop.f32.mrf.mxu0
  %2357 = vmatprep.mubr.bf16.mxu0 0
  %2358 = vmatmul.mubr.bf16.gmra.mxu0 %v1312
  %v2359 = vpop.f32.mrf.mxu0
  %v2360 = vadd.f32 0.0, %v2359
  %v2361 = vpop.f32.mrf.mxu0
  %v2362 = vpop.f32.mrf.mxu0
  %v2363 = vadd.f32 0.0, %v2362
  %v2364 = vpop.f32.mrf.mxu0
  %2365 = vmatprep.mubr.bf16.mxu0 0
  %2366 = vmatmul.mubr.bf16.gmra.mxu0 %v1315
  %v2367 = vpop.f32.mrf.mxu0
  %v2368 = vadd.f32 0.0, %v2367
  %v2369 = vpop.f32.mrf.mxu0
  %v2370 = vpop.f32.mrf.mxu0
  %v2371 = vadd.f32 0.0, %v2370
  %v2372 = vpop.f32.mrf.mxu0
  %2373 = vdwg.mxu0
  %vm2374 = vcmp.ge.f32.partialorder %v1352, 0.0
  %vm2375 = vcmp.ge.f32.partialorder %v1355, 0.0
  %vm2376 = vcmp.ge.f32.partialorder %v1360, 0.0
  %vm2377 = vcmp.ge.f32.partialorder %v1363, 0.0
  %vm2378 = vcmp.ge.f32.partialorder %v1368, 0.0
  %vm2379 = vcmp.ge.f32.partialorder %v1371, 0.0
  %vm2380 = vcmp.ge.f32.partialorder %v1376, 0.0
  %vm2381 = vcmp.ge.f32.partialorder %v1379, 0.0
  %vm2382 = vcmp.ge.f32.partialorder %v1384, 0.0
  %vm2383 = vcmp.ge.f32.partialorder %v1387, 0.0
  %vm2384 = vcmp.ge.f32.partialorder %v1392, 0.0
  %vm2385 = vcmp.ge.f32.partialorder %v1395, 0.0
  %vm2386 = vcmp.ge.f32.partialorder %v1400, 0.0
  %vm2387 = vcmp.ge.f32.partialorder %v1403, 0.0
  %vm2388 = vcmp.ge.f32.partialorder %v1408, 0.0
  %vm2389 = vcmp.ge.f32.partialorder %v1411, 0.0
  %vm2390 = vcmp.ge.f32.partialorder %v1416, 0.0
  %vm2391 = vcmp.ge.f32.partialorder %v1419, 0.0
  %vm2392 = vcmp.ge.f32.partialorder %v1424, 0.0
  %vm2393 = vcmp.ge.f32.partialorder %v1427, 0.0
  %vm2394 = vcmp.ge.f32.partialorder %v1432, 0.0
  %vm2395 = vcmp.ge.f32.partialorder %v1435, 0.0
  %vm2396 = vcmp.ge.f32.partialorder %v1440, 0.0
  %vm2397 = vcmp.ge.f32.partialorder %v1443, 0.0
  %vm2398 = vcmp.ge.f32.partialorder %v1448, 0.0
  %vm2399 = vcmp.ge.f32.partialorder %v1451, 0.0
  %vm2400 = vcmp.ge.f32.partialorder %v1456, 0.0
  %vm2401 = vcmp.ge.f32.partialorder %v1459, 0.0
  %vm2402 = vcmp.ge.f32.partialorder %v1464, 0.0
  %vm2403 = vcmp.ge.f32.partialorder %v1467, 0.0
  %vm2404 = vcmp.ge.f32.partialorder %v1472, 0.0
  %vm2405 = vcmp.ge.f32.partialorder %v1475, 0.0
  %vm2406 = vcmp.ge.f32.partialorder %v1480, 0.0
  %vm2407 = vcmp.ge.f32.partialorder %v1483, 0.0
  %vm2408 = vcmp.ge.f32.partialorder %v1488, 0.0
  %vm2409 = vcmp.ge.f32.partialorder %v1491, 0.0
  %vm2410 = vcmp.ge.f32.partialorder %v1496, 0.0
  %vm2411 = vcmp.ge.f32.partialorder %v1499, 0.0
  %vm2412 = vcmp.ge.f32.partialorder %v1504, 0.0
  %vm2413 = vcmp.ge.f32.partialorder %v1507, 0.0
  %vm2414 = vcmp.ge.f32.partialorder %v1512, 0.0
  %vm2415 = vcmp.ge.f32.partialorder %v1515, 0.0
  %vm2416 = vcmp.ge.f32.partialorder %v1520, 0.0
  %vm2417 = vcmp.ge.f32.partialorder %v1523, 0.0
  %vm2418 = vcmp.ge.f32.partialorder %v1528, 0.0
  %vm2419 = vcmp.ge.f32.partialorder %v1531, 0.0
  %vm2420 = vcmp.ge.f32.partialorder %v1536, 0.0
  %vm2421 = vcmp.ge.f32.partialorder %v1539, 0.0
  %vm2422 = vcmp.ge.f32.partialorder %v1544, 0.0
  %vm2423 = vcmp.ge.f32.partialorder %v1547, 0.0
  %vm2424 = vcmp.ge.f32.partialorder %v1552, 0.0
  %vm2425 = vcmp.ge.f32.partialorder %v1555, 0.0
  %vm2426 = vcmp.ge.f32.partialorder %v1560, 0.0
  %vm2427 = vcmp.ge.f32.partialorder %v1563, 0.0
  %vm2428 = vcmp.ge.f32.partialorder %v1568, 0.0
  %vm2429 = vcmp.ge.f32.partialorder %v1571, 0.0
  %vm2430 = vcmp.ge.f32.partialorder %v1576, 0.0
  %vm2431 = vcmp.ge.f32.partialorder %v1579, 0.0
  %vm2432 = vcmp.ge.f32.partialorder %v1584, 0.0
  %vm2433 = vcmp.ge.f32.partialorder %v1587, 0.0
  %vm2434 = vcmp.ge.f32.partialorder %v1592, 0.0
  %vm2435 = vcmp.ge.f32.partialorder %v1595, 0.0
  %vm2436 = vcmp.ge.f32.partialorder %v1600, 0.0
  %vm2437 = vcmp.ge.f32.partialorder %v1603, 0.0
  %vm2438 = vcmp.ge.f32.partialorder %v1608, 0.0
  %vm2439 = vcmp.ge.f32.partialorder %v1611, 0.0
  %vm2440 = vcmp.ge.f32.partialorder %v1616, 0.0
  %vm2441 = vcmp.ge.f32.partialorder %v1619, 0.0
  %vm2442 = vcmp.ge.f32.partialorder %v1624, 0.0
  %vm2443 = vcmp.ge.f32.partialorder %v1627, 0.0
  %vm2444 = vcmp.ge.f32.partialorder %v1632, 0.0
  %vm2445 = vcmp.ge.f32.partialorder %v1635, 0.0
  %vm2446 = vcmp.ge.f32.partialorder %v1640, 0.0
  %vm2447 = vcmp.ge.f32.partialorder %v1643, 0.0
  %vm2448 = vcmp.ge.f32.partialorder %v1648, 0.0
  %vm2449 = vcmp.ge.f32.partialorder %v1651, 0.0
  %vm2450 = vcmp.ge.f32.partialorder %v1656, 0.0
  %vm2451 = vcmp.ge.f32.partialorder %v1659, 0.0
  %vm2452 = vcmp.ge.f32.partialorder %v1664, 0.0
  %vm2453 = vcmp.ge.f32.partialorder %v1667, 0.0
  %vm2454 = vcmp.ge.f32.partialorder %v1672, 0.0
  %vm2455 = vcmp.ge.f32.partialorder %v1675, 0.0
  %vm2456 = vcmp.ge.f32.partialorder %v1680, 0.0
  %vm2457 = vcmp.ge.f32.partialorder %v1683, 0.0
  %vm2458 = vcmp.ge.f32.partialorder %v1688, 0.0
  %vm2459 = vcmp.ge.f32.partialorder %v1691, 0.0
  %vm2460 = vcmp.ge.f32.partialorder %v1696, 0.0
  %vm2461 = vcmp.ge.f32.partialorder %v1699, 0.0
  %vm2462 = vcmp.ge.f32.partialorder %v1704, 0.0
  %vm2463 = vcmp.ge.f32.partialorder %v1707, 0.0
  %vm2464 = vcmp.ge.f32.partialorder %v1712, 0.0
  %vm2465 = vcmp.ge.f32.partialorder %v1715, 0.0
  %vm2466 = vcmp.ge.f32.partialorder %v1720, 0.0
  %vm2467 = vcmp.ge.f32.partialorder %v1723, 0.0
  %vm2468 = vcmp.ge.f32.partialorder %v1728, 0.0
  %vm2469 = vcmp.ge.f32.partialorder %v1731, 0.0
  %vm2470 = vcmp.ge.f32.partialorder %v1736, 0.0
  %vm2471 = vcmp.ge.f32.partialorder %v1739, 0.0
  %vm2472 = vcmp.ge.f32.partialorder %v1744, 0.0
  %vm2473 = vcmp.ge.f32.partialorder %v1747, 0.0
  %vm2474 = vcmp.ge.f32.partialorder %v1752, 0.0
  %vm2475 = vcmp.ge.f32.partialorder %v1755, 0.0
  %vm2476 = vcmp.ge.f32.partialorder %v1760, 0.0
  %vm2477 = vcmp.ge.f32.partialorder %v1763, 0.0
  %vm2478 = vcmp.ge.f32.partialorder %v1768, 0.0
  %vm2479 = vcmp.ge.f32.partialorder %v1771, 0.0
  %vm2480 = vcmp.ge.f32.partialorder %v1776, 0.0
  %vm2481 = vcmp.ge.f32.partialorder %v1779, 0.0
  %vm2482 = vcmp.ge.f32.partialorder %v1784, 0.0
  %vm2483 = vcmp.ge.f32.partialorder %v1787, 0.0
  %vm2484 = vcmp.ge.f32.partialorder %v1792, 0.0
  %vm2485 = vcmp.ge.f32.partialorder %v1795, 0.0
  %vm2486 = vcmp.ge.f32.partialorder %v1800, 0.0
  %vm2487 = vcmp.ge.f32.partialorder %v1803, 0.0
  %vm2488 = vcmp.ge.f32.partialorder %v1808, 0.0
  %vm2489 = vcmp.ge.f32.partialorder %v1811, 0.0
  %vm2490 = vcmp.ge.f32.partialorder %v1816, 0.0
  %vm2491 = vcmp.ge.f32.partialorder %v1819, 0.0
  %vm2492 = vcmp.ge.f32.partialorder %v1824, 0.0
  %vm2493 = vcmp.ge.f32.partialorder %v1827, 0.0
  %vm2494 = vcmp.ge.f32.partialorder %v1832, 0.0
  %vm2495 = vcmp.ge.f32.partialorder %v1835, 0.0
  %vm2496 = vcmp.ge.f32.partialorder %v1840, 0.0
  %vm2497 = vcmp.ge.f32.partialorder %v1843, 0.0
  %vm2498 = vcmp.ge.f32.partialorder %v1848, 0.0
  %vm2499 = vcmp.ge.f32.partialorder %v1851, 0.0
  %vm2500 = vcmp.ge.f32.partialorder %v1856, 0.0
  %vm2501 = vcmp.ge.f32.partialorder %v1859, 0.0
  %vm2502 = vcmp.ge.f32.partialorder %v1864, 0.0
  %vm2503 = vcmp.ge.f32.partialorder %v1867, 0.0
  %vm2504 = vcmp.ge.f32.partialorder %v1872, 0.0
  %vm2505 = vcmp.ge.f32.partialorder %v1875, 0.0
  %vm2506 = vcmp.ge.f32.partialorder %v1880, 0.0
  %vm2507 = vcmp.ge.f32.partialorder %v1883, 0.0
  %vm2508 = vcmp.ge.f32.partialorder %v1888, 0.0
  %vm2509 = vcmp.ge.f32.partialorder %v1891, 0.0
  %vm2510 = vcmp.ge.f32.partialorder %v1896, 0.0
  %vm2511 = vcmp.ge.f32.partialorder %v1899, 0.0
  %vm2512 = vcmp.ge.f32.partialorder %v1904, 0.0
  %vm2513 = vcmp.ge.f32.partialorder %v1907, 0.0
  %vm2514 = vcmp.ge.f32.partialorder %v1912, 0.0
  %vm2515 = vcmp.ge.f32.partialorder %v1915, 0.0
  %vm2516 = vcmp.ge.f32.partialorder %v1920, 0.0
  %vm2517 = vcmp.ge.f32.partialorder %v1923, 0.0
  %vm2518 = vcmp.ge.f32.partialorder %v1928, 0.0
  %vm2519 = vcmp.ge.f32.partialorder %v1931, 0.0
  %vm2520 = vcmp.ge.f32.partialorder %v1936, 0.0
  %vm2521 = vcmp.ge.f32.partialorder %v1939, 0.0
  %vm2522 = vcmp.ge.f32.partialorder %v1944, 0.0
  %vm2523 = vcmp.ge.f32.partialorder %v1947, 0.0
  %vm2524 = vcmp.ge.f32.partialorder %v1952, 0.0
  %vm2525 = vcmp.ge.f32.partialorder %v1955, 0.0
  %vm2526 = vcmp.ge.f32.partialorder %v1960, 0.0
  %vm2527 = vcmp.ge.f32.partialorder %v1963, 0.0
  %vm2528 = vcmp.ge.f32.partialorder %v1968, 0.0
  %vm2529 = vcmp.ge.f32.partialorder %v1971, 0.0
  %vm2530 = vcmp.ge.f32.partialorder %v1976, 0.0
  %vm2531 = vcmp.ge.f32.partialorder %v1979, 0.0
  %vm2532 = vcmp.ge.f32.partialorder %v1984, 0.0
  %vm2533 = vcmp.ge.f32.partialorder %v1987, 0.0
  %vm2534 = vcmp.ge.f32.partialorder %v1992, 0.0
  %vm2535 = vcmp.ge.f32.partialorder %v1995, 0.0
  %vm2536 = vcmp.ge.f32.partialorder %v2000, 0.0
  %vm2537 = vcmp.ge.f32.partialorder %v2003, 0.0
  %vm2538 = vcmp.ge.f32.partialorder %v2008, 0.0
  %vm2539 = vcmp.ge.f32.partialorder %v2011, 0.0
  %vm2540 = vcmp.ge.f32.partialorder %v2016, 0.0
  %vm2541 = vcmp.ge.f32.partialorder %v2019, 0.0
  %vm2542 = vcmp.ge.f32.partialorder %v2024, 0.0
  %vm2543 = vcmp.ge.f32.partialorder %v2027, 0.0
  %vm2544 = vcmp.ge.f32.partialorder %v2032, 0.0
  %vm2545 = vcmp.ge.f32.partialorder %v2035, 0.0
  %vm2546 = vcmp.ge.f32.partialorder %v2040, 0.0
  %vm2547 = vcmp.ge.f32.partialorder %v2043, 0.0
  %vm2548 = vcmp.ge.f32.partialorder %v2048, 0.0
  %vm2549 = vcmp.ge.f32.partialorder %v2051, 0.0
  %vm2550 = vcmp.ge.f32.partialorder %v2056, 0.0
  %vm2551 = vcmp.ge.f32.partialorder %v2059, 0.0
  %vm2552 = vcmp.ge.f32.partialorder %v2064, 0.0
  %vm2553 = vcmp.ge.f32.partialorder %v2067, 0.0
  %vm2554 = vcmp.ge.f32.partialorder %v2072, 0.0
  %vm2555 = vcmp.ge.f32.partialorder %v2075, 0.0
  %vm2556 = vcmp.ge.f32.partialorder %v2080, 0.0
  %vm2557 = vcmp.ge.f32.partialorder %v2083, 0.0
  %vm2558 = vcmp.ge.f32.partialorder %v2088, 0.0
  %vm2559 = vcmp.ge.f32.partialorder %v2091, 0.0
  %vm2560 = vcmp.ge.f32.partialorder %v2096, 0.0
  %vm2561 = vcmp.ge.f32.partialorder %v2099, 0.0
  %vm2562 = vcmp.ge.f32.partialorder %v2104, 0.0
  %vm2563 = vcmp.ge.f32.partialorder %v2107, 0.0
  %vm2564 = vcmp.ge.f32.partialorder %v2112, 0.0
  %vm2565 = vcmp.ge.f32.partialorder %v2115, 0.0
  %vm2566 = vcmp.ge.f32.partialorder %v2120, 0.0
  %vm2567 = vcmp.ge.f32.partialorder %v2123, 0.0
  %vm2568 = vcmp.ge.f32.partialorder %v2128, 0.0
  %vm2569 = vcmp.ge.f32.partialorder %v2131, 0.0
  %vm2570 = vcmp.ge.f32.partialorder %v2136, 0.0
  %vm2571 = vcmp.ge.f32.partialorder %v2139, 0.0
  %vm2572 = vcmp.ge.f32.partialorder %v2144, 0.0
  %vm2573 = vcmp.ge.f32.partialorder %v2147, 0.0
  %vm2574 = vcmp.ge.f32.partialorder %v2152, 0.0
  %vm2575 = vcmp.ge.f32.partialorder %v2155, 0.0
  %vm2576 = vcmp.ge.f32.partialorder %v2160, 0.0
  %vm2577 = vcmp.ge.f32.partialorder %v2163, 0.0
  %vm2578 = vcmp.ge.f32.partialorder %v2168, 0.0
  %vm2579 = vcmp.ge.f32.partialorder %v2171, 0.0
  %vm2580 = vcmp.ge.f32.partialorder %v2176, 0.0
  %vm2581 = vcmp.ge.f32.partialorder %v2179, 0.0
  %vm2582 = vcmp.ge.f32.partialorder %v2184, 0.0
  %vm2583 = vcmp.ge.f32.partialorder %v2187, 0.0
  %vm2584 = vcmp.ge.f32.partialorder %v2192, 0.0
  %vm2585 = vcmp.ge.f32.partialorder %v2195, 0.0
  %vm2586 = vcmp.ge.f32.partialorder %v2200, 0.0
  %vm2587 = vcmp.ge.f32.partialorder %v2203, 0.0
  %vm2588 = vcmp.ge.f32.partialorder %v2208, 0.0
  %vm2589 = vcmp.ge.f32.partialorder %v2211, 0.0
  %vm2590 = vcmp.ge.f32.partialorder %v2216, 0.0
  %vm2591 = vcmp.ge.f32.partialorder %v2219, 0.0
  %vm2592 = vcmp.ge.f32.partialorder %v2224, 0.0
  %vm2593 = vcmp.ge.f32.partialorder %v2227, 0.0
  %vm2594 = vcmp.ge.f32.partialorder %v2232, 0.0
  %vm2595 = vcmp.ge.f32.partialorder %v2235, 0.0
  %vm2596 = vcmp.ge.f32.partialorder %v2240, 0.0
  %vm2597 = vcmp.ge.f32.partialorder %v2243, 0.0
  %vm2598 = vcmp.ge.f32.partialorder %v2248, 0.0
  %vm2599 = vcmp.ge.f32.partialorder %v2251, 0.0
  %vm2600 = vcmp.ge.f32.partialorder %v2256, 0.0
  %vm2601 = vcmp.ge.f32.partialorder %v2259, 0.0
  %vm2602 = vcmp.ge.f32.partialorder %v2264, 0.0
  %vm2603 = vcmp.ge.f32.partialorder %v2267, 0.0
  %vm2604 = vcmp.ge.f32.partialorder %v2272, 0.0
  %vm2605 = vcmp.ge.f32.partialorder %v2275, 0.0
  %vm2606 = vcmp.ge.f32.partialorder %v2280, 0.0
  %vm2607 = vcmp.ge.f32.partialorder %v2283, 0.0
  %vm2608 = vcmp.ge.f32.partialorder %v2288, 0.0
  %vm2609 = vcmp.ge.f32.partialorder %v2291, 0.0
  %vm2610 = vcmp.ge.f32.partialorder %v2296, 0.0
  %vm2611 = vcmp.ge.f32.partialorder %v2299, 0.0
  %vm2612 = vcmp.ge.f32.partialorder %v2304, 0.0
  %vm2613 = vcmp.ge.f32.partialorder %v2307, 0.0
  %vm2614 = vcmp.ge.f32.partialorder %v2312, 0.0
  %vm2615 = vcmp.ge.f32.partialorder %v2315, 0.0
  %vm2616 = vcmp.ge.f32.partialorder %v2320, 0.0
  %vm2617 = vcmp.ge.f32.partialorder %v2323, 0.0
  %vm2618 = vcmp.ge.f32.partialorder %v2328, 0.0
  %vm2619 = vcmp.ge.f32.partialorder %v2331, 0.0
  %vm2620 = vcmp.ge.f32.partialorder %v2336, 0.0
  %vm2621 = vcmp.ge.f32.partialorder %v2339, 0.0
  %vm2622 = vcmp.ge.f32.partialorder %v2344, 0.0
  %vm2623 = vcmp.ge.f32.partialorder %v2347, 0.0
  %vm2624 = vcmp.ge.f32.partialorder %v2352, 0.0
  %vm2625 = vcmp.ge.f32.partialorder %v2355, 0.0
  %vm2626 = vcmp.ge.f32.partialorder %v2360, 0.0
  %vm2627 = vcmp.ge.f32.partialorder %v2363, 0.0
  %vm2628 = vcmp.ge.f32.partialorder %v2368, 0.0
  %vm2629 = vcmp.ge.f32.partialorder %v2371, 0.0
  %v2630 = vmul.f32 %v1352, 0.2
  %v2631 = vmul.f32 %v1355, 0.2
  %v2632 = vmul.f32 %v1360, 0.2
  %v2633 = vmul.f32 %v1363, 0.2
  %v2634 = vmul.f32 %v1368, 0.2
  %v2635 = vmul.f32 %v1371, 0.2
  %v2636 = vmul.f32 %v1376, 0.2
  %v2637 = vmul.f32 %v1379, 0.2
  %v2638 = vmul.f32 %v1384, 0.2
  %v2639 = vmul.f32 %v1387, 0.2
  %v2640 = vmul.f32 %v1392, 0.2
  %v2641 = vmul.f32 %v1395, 0.2
  %v2642 = vmul.f32 %v1400, 0.2
  %v2643 = vmul.f32 %v1403, 0.2
  %v2644 = vmul.f32 %v1408, 0.2
  %v2645 = vmul.f32 %v1411, 0.2
  %v2646 = vmul.f32 %v1416, 0.2
  %v2647 = vmul.f32 %v1419, 0.2
  %v2648 = vmul.f32 %v1424, 0.2
  %v2649 = vmul.f32 %v1427, 0.2
  %v2650 = vmul.f32 %v1432, 0.2
  %v2651 = vmul.f32 %v1435, 0.2
  %v2652 = vmul.f32 %v1440, 0.2
  %v2653 = vmul.f32 %v1443, 0.2
  %v2654 = vmul.f32 %v1448, 0.2
  %v2655 = vmul.f32 %v1451, 0.2
  %v2656 = vmul.f32 %v1456, 0.2
  %v2657 = vmul.f32 %v1459, 0.2
  %v2658 = vmul.f32 %v1464, 0.2
  %v2659 = vmul.f32 %v1467, 0.2
  %v2660 = vmul.f32 %v1472, 0.2
  %v2661 = vmul.f32 %v1475, 0.2
  %v2662 = vmul.f32 %v1480, 0.2
  %v2663 = vmul.f32 %v1483, 0.2
  %v2664 = vmul.f32 %v1488, 0.2
  %v2665 = vmul.f32 %v1491, 0.2
  %v2666 = vmul.f32 %v1496, 0.2
  %v2667 = vmul.f32 %v1499, 0.2
  %v2668 = vmul.f32 %v1504, 0.2
  %v2669 = vmul.f32 %v1507, 0.2
  %v2670 = vmul.f32 %v1512, 0.2
  %v2671 = vmul.f32 %v1515, 0.2
  %v2672 = vmul.f32 %v1520, 0.2
  %v2673 = vmul.f32 %v1523, 0.2
  %v2674 = vmul.f32 %v1528, 0.2
  %v2675 = vmul.f32 %v1531, 0.2
  %v2676 = vmul.f32 %v1536, 0.2
  %v2677 = vmul.f32 %v1539, 0.2
  %v2678 = vmul.f32 %v1544, 0.2
  %v2679 = vmul.f32 %v1547, 0.2
  %v2680 = vmul.f32 %v1552, 0.2
  %v2681 = vmul.f32 %v1555, 0.2
  %v2682 = vmul.f32 %v1560, 0.2
  %v2683 = vmul.f32 %v1563, 0.2
  %v2684 = vmul.f32 %v1568, 0.2
  %v2685 = vmul.f32 %v1571, 0.2
  %v2686 = vmul.f32 %v1576, 0.2
  %v2687 = vmul.f32 %v1579, 0.2
  %v2688 = vmul.f32 %v1584, 0.2
  %v2689 = vmul.f32 %v1587, 0.2
  %v2690 = vmul.f32 %v1592, 0.2
  %v2691 = vmul.f32 %v1595, 0.2
  %v2692 = vmul.f32 %v1600, 0.2
  %v2693 = vmul.f32 %v1603, 0.2
  %v2694 = vmul.f32 %v1608, 0.2
  %v2695 = vmul.f32 %v1611, 0.2
  %v2696 = vmul.f32 %v1616, 0.2
  %v2697 = vmul.f32 %v1619, 0.2
  %v2698 = vmul.f32 %v1624, 0.2
  %v2699 = vmul.f32 %v1627, 0.2
  %v2700 = vmul.f32 %v1632, 0.2
  %v2701 = vmul.f32 %v1635, 0.2
  %v2702 = vmul.f32 %v1640, 0.2
  %v2703 = vmul.f32 %v1643, 0.2
  %v2704 = vmul.f32 %v1648, 0.2
  %v2705 = vmul.f32 %v1651, 0.2
  %v2706 = vmul.f32 %v1656, 0.2
  %v2707 = vmul.f32 %v1659, 0.2
  %v2708 = vmul.f32 %v1664, 0.2
  %v2709 = vmul.f32 %v1667, 0.2
  %v2710 = vmul.f32 %v1672, 0.2
  %v2711 = vmul.f32 %v1675, 0.2
  %v2712 = vmul.f32 %v1680, 0.2
  %v2713 = vmul.f32 %v1683, 0.2
  %v2714 = vmul.f32 %v1688, 0.2
  %v2715 = vmul.f32 %v1691, 0.2
  %v2716 = vmul.f32 %v1696, 0.2
  %v2717 = vmul.f32 %v1699, 0.2
  %v2718 = vmul.f32 %v1704, 0.2
  %v2719 = vmul.f32 %v1707, 0.2
  %v2720 = vmul.f32 %v1712, 0.2
  %v2721 = vmul.f32 %v1715, 0.2
  %v2722 = vmul.f32 %v1720, 0.2
  %v2723 = vmul.f32 %v1723, 0.2
  %v2724 = vmul.f32 %v1728, 0.2
  %v2725 = vmul.f32 %v1731, 0.2
  %v2726 = vmul.f32 %v1736, 0.2
  %v2727 = vmul.f32 %v1739, 0.2
  %v2728 = vmul.f32 %v1744, 0.2
  %v2729 = vmul.f32 %v1747, 0.2
  %v2730 = vmul.f32 %v1752, 0.2
  %v2731 = vmul.f32 %v1755, 0.2
  %v2732 = vmul.f32 %v1760, 0.2
  %v2733 = vmul.f32 %v1763, 0.2
  %v2734 = vmul.f32 %v1768, 0.2
  %v2735 = vmul.f32 %v1771, 0.2
  %v2736 = vmul.f32 %v1776, 0.2
  %v2737 = vmul.f32 %v1779, 0.2
  %v2738 = vmul.f32 %v1784, 0.2
  %v2739 = vmul.f32 %v1787, 0.2
  %v2740 = vmul.f32 %v1792, 0.2
  %v2741 = vmul.f32 %v1795, 0.2
  %v2742 = vmul.f32 %v1800, 0.2
  %v2743 = vmul.f32 %v1803, 0.2
  %v2744 = vmul.f32 %v1808, 0.2
  %v2745 = vmul.f32 %v1811, 0.2
  %v2746 = vmul.f32 %v1816, 0.2
  %v2747 = vmul.f32 %v1819, 0.2
  %v2748 = vmul.f32 %v1824, 0.2
  %v2749 = vmul.f32 %v1827, 0.2
  %v2750 = vmul.f32 %v1832, 0.2
  %v2751 = vmul.f32 %v1835, 0.2
  %v2752 = vmul.f32 %v1840, 0.2
  %v2753 = vmul.f32 %v1843, 0.2
  %v2754 = vmul.f32 %v1848, 0.2
  %v2755 = vmul.f32 %v1851, 0.2
  %v2756 = vmul.f32 %v1856, 0.2
  %v2757 = vmul.f32 %v1859, 0.2
  %v2758 = vmul.f32 %v1864, 0.2
  %v2759 = vmul.f32 %v1867, 0.2
  %v2760 = vmul.f32 %v1872, 0.2
  %v2761 = vmul.f32 %v1875, 0.2
  %v2762 = vmul.f32 %v1880, 0.2
  %v2763 = vmul.f32 %v1883, 0.2
  %v2764 = vmul.f32 %v1888, 0.2
  %v2765 = vmul.f32 %v1891, 0.2
  %v2766 = vmul.f32 %v1896, 0.2
  %v2767 = vmul.f32 %v1899, 0.2
  %v2768 = vmul.f32 %v1904, 0.2
  %v2769 = vmul.f32 %v1907, 0.2
  %v2770 = vmul.f32 %v1912, 0.2
  %v2771 = vmul.f32 %v1915, 0.2
  %v2772 = vmul.f32 %v1920, 0.2
  %v2773 = vmul.f32 %v1923, 0.2
  %v2774 = vmul.f32 %v1928, 0.2
  %v2775 = vmul.f32 %v1931, 0.2
  %v2776 = vmul.f32 %v1936, 0.2
  %v2777 = vmul.f32 %v1939, 0.2
  %v2778 = vmul.f32 %v1944, 0.2
  %v2779 = vmul.f32 %v1947, 0.2
  %v2780 = vmul.f32 %v1952, 0.2
  %v2781 = vmul.f32 %v1955, 0.2
  %v2782 = vmul.f32 %v1960, 0.2
  %v2783 = vmul.f32 %v1963, 0.2
  %v2784 = vmul.f32 %v1968, 0.2
  %v2785 = vmul.f32 %v1971, 0.2
  %v2786 = vmul.f32 %v1976, 0.2
  %v2787 = vmul.f32 %v1979, 0.2
  %v2788 = vmul.f32 %v1984, 0.2
  %v2789 = vmul.f32 %v1987, 0.2
  %v2790 = vmul.f32 %v1992, 0.2
  %v2791 = vmul.f32 %v1995, 0.2
  %v2792 = vmul.f32 %v2000, 0.2
  %v2793 = vmul.f32 %v2003, 0.2
  %v2794 = vmul.f32 %v2008, 0.2
  %v2795 = vmul.f32 %v2011, 0.2
  %v2796 = vmul.f32 %v2016, 0.2
  %v2797 = vmul.f32 %v2019, 0.2
  %v2798 = vmul.f32 %v2024, 0.2
  %v2799 = vmul.f32 %v2027, 0.2
  %v2800 = vmul.f32 %v2032, 0.2
  %v2801 = vmul.f32 %v2035, 0.2
  %v2802 = vmul.f32 %v2040, 0.2
  %v2803 = vmul.f32 %v2043, 0.2
  %v2804 = vmul.f32 %v2048, 0.2
  %v2805 = vmul.f32 %v2051, 0.2
  %v2806 = vmul.f32 %v2056, 0.2
  %v2807 = vmul.f32 %v2059, 0.2
  %v2808 = vmul.f32 %v2064, 0.2
  %v2809 = vmul.f32 %v2067, 0.2
  %v2810 = vmul.f32 %v2072, 0.2
  %v2811 = vmul.f32 %v2075, 0.2
  %v2812 = vmul.f32 %v2080, 0.2
  %v2813 = vmul.f32 %v2083, 0.2
  %v2814 = vmul.f32 %v2088, 0.2
  %v2815 = vmul.f32 %v2091, 0.2
  %v2816 = vmul.f32 %v2096, 0.2
  %v2817 = vmul.f32 %v2099, 0.2
  %v2818 = vmul.f32 %v2104, 0.2
  %v2819 = vmul.f32 %v2107, 0.2
  %v2820 = vmul.f32 %v2112, 0.2
  %v2821 = vmul.f32 %v2115, 0.2
  %v2822 = vmul.f32 %v2120, 0.2
  %v2823 = vmul.f32 %v2123, 0.2
  %v2824 = vmul.f32 %v2128, 0.2
  %v2825 = vmul.f32 %v2131, 0.2
  %v2826 = vmul.f32 %v2136, 0.2
  %v2827 = vmul.f32 %v2139, 0.2
  %v2828 = vmul.f32 %v2144, 0.2
  %v2829 = vmul.f32 %v2147, 0.2
  %v2830 = vmul.f32 %v2152, 0.2
  %v2831 = vmul.f32 %v2155, 0.2
  %v2832 = vmul.f32 %v2160, 0.2
  %v2833 = vmul.f32 %v2163, 0.2
  %v2834 = vmul.f32 %v2168, 0.2
  %v2835 = vmul.f32 %v2171, 0.2
  %v2836 = vmul.f32 %v2176, 0.2
  %v2837 = vmul.f32 %v2179, 0.2
  %v2838 = vmul.f32 %v2184, 0.2
  %v2839 = vmul.f32 %v2187, 0.2
  %v2840 = vmul.f32 %v2192, 0.2
  %v2841 = vmul.f32 %v2195, 0.2
  %v2842 = vmul.f32 %v2200, 0.2
  %v2843 = vmul.f32 %v2203, 0.2
  %v2844 = vmul.f32 %v2208, 0.2
  %v2845 = vmul.f32 %v2211, 0.2
  %v2846 = vmul.f32 %v2216, 0.2
  %v2847 = vmul.f32 %v2219, 0.2
  %v2848 = vmul.f32 %v2224, 0.2
  %v2849 = vmul.f32 %v2227, 0.2
  %v2850 = vmul.f32 %v2232, 0.2
  %v2851 = vmul.f32 %v2235, 0.2
  %v2852 = vmul.f32 %v2240, 0.2
  %v2853 = vmul.f32 %v2243, 0.2
  %v2854 = vmul.f32 %v2248, 0.2
  %v2855 = vmul.f32 %v2251, 0.2
  %v2856 = vmul.f32 %v2256, 0.2
  %v2857 = vmul.f32 %v2259, 0.2
  %v2858 = vmul.f32 %v2264, 0.2
  %v2859 = vmul.f32 %v2267, 0.2
  %v2860 = vmul.f32 %v2272, 0.2
  %v2861 = vmul.f32 %v2275, 0.2
  %v2862 = vmul.f32 %v2280, 0.2
  %v2863 = vmul.f32 %v2283, 0.2
  %v2864 = vmul.f32 %v2288, 0.2
  %v2865 = vmul.f32 %v2291, 0.2
  %v2866 = vmul.f32 %v2296, 0.2
  %v2867 = vmul.f32 %v2299, 0.2
  %v2868 = vmul.f32 %v2304, 0.2
  %v2869 = vmul.f32 %v2307, 0.2
  %v2870 = vmul.f32 %v2312, 0.2
  %v2871 = vmul.f32 %v2315, 0.2
  %v2872 = vmul.f32 %v2320, 0.2
  %v2873 = vmul.f32 %v2323, 0.2
  %v2874 = vmul.f32 %v2328, 0.2
  %v2875 = vmul.f32 %v2331, 0.2
  %v2876 = vmul.f32 %v2336, 0.2
  %v2877 = vmul.f32 %v2339, 0.2
  %v2878 = vmul.f32 %v2344, 0.2
  %v2879 = vmul.f32 %v2347, 0.2
  %v2880 = vmul.f32 %v2352, 0.2
  %v2881 = vmul.f32 %v2355, 0.2
  %v2882 = vmul.f32 %v2360, 0.2
  %v2883 = vmul.f32 %v2363, 0.2
  %v2884 = vmul.f32 %v2368, 0.2
  %v2885 = vmul.f32 %v2371, 0.2
  %v2886 = vsel %vm2374, %v1352, %v2630
  %v2887 = vsel %vm2375, %v1355, %v2631
  %v2888 = vsel %vm2376, %v1360, %v2632
  %v2889 = vsel %vm2377, %v1363, %v2633
  %v2890 = vsel %vm2378, %v1368, %v2634
  %v2891 = vsel %vm2379, %v1371, %v2635
  %v2892 = vsel %vm2380, %v1376, %v2636
  %v2893 = vsel %vm2381, %v1379, %v2637
  %v2894 = vsel %vm2382, %v1384, %v2638
  %v2895 = vsel %vm2383, %v1387, %v2639
  %v2896 = vsel %vm2384, %v1392, %v2640
  %v2897 = vsel %vm2385, %v1395, %v2641
  %v2898 = vsel %vm2386, %v1400, %v2642
  %v2899 = vsel %vm2387, %v1403, %v2643
  %v2900 = vsel %vm2388, %v1408, %v2644
  %v2901 = vsel %vm2389, %v1411, %v2645
  %v2902 = vsel %vm2390, %v1416, %v2646
  %v2903 = vsel %vm2391, %v1419, %v2647
  %v2904 = vsel %vm2392, %v1424, %v2648
  %v2905 = vsel %vm2393, %v1427, %v2649
  %v2906 = vsel %vm2394, %v1432, %v2650
  %v2907 = vsel %vm2395, %v1435, %v2651
  %v2908 = vsel %vm2396, %v1440, %v2652
  %v2909 = vsel %vm2397, %v1443, %v2653
  %v2910 = vsel %vm2398, %v1448, %v2654
  %v2911 = vsel %vm2399, %v1451, %v2655
  %v2912 = vsel %vm2400, %v1456, %v2656
  %v2913 = vsel %vm2401, %v1459, %v2657
  %v2914 = vsel %vm2402, %v1464, %v2658
  %v2915 = vsel %vm2403, %v1467, %v2659
  %v2916 = vsel %vm2404, %v1472, %v2660
  %v2917 = vsel %vm2405, %v1475, %v2661
  %v2918 = vsel %vm2406, %v1480, %v2662
  %v2919 = vsel %vm2407, %v1483, %v2663
  %v2920 = vsel %vm2408, %v1488, %v2664
  %v2921 = vsel %vm2409, %v1491, %v2665
  %v2922 = vsel %vm2410, %v1496, %v2666
  %v2923 = vsel %vm2411, %v1499, %v2667
  %v2924 = vsel %vm2412, %v1504, %v2668
  %v2925 = vsel %vm2413, %v1507, %v2669
  %v2926 = vsel %vm2414, %v1512, %v2670
  %v2927 = vsel %vm2415, %v1515, %v2671
  %v2928 = vsel %vm2416, %v1520, %v2672
  %v2929 = vsel %vm2417, %v1523, %v2673
  %v2930 = vsel %vm2418, %v1528, %v2674
  %v2931 = vsel %vm2419, %v1531, %v2675
  %v2932 = vsel %vm2420, %v1536, %v2676
  %v2933 = vsel %vm2421, %v1539, %v2677
  %v2934 = vsel %vm2422, %v1544, %v2678
  %v2935 = vsel %vm2423, %v1547, %v2679
  %v2936 = vsel %vm2424, %v1552, %v2680
  %v2937 = vsel %vm2425, %v1555, %v2681
  %v2938 = vsel %vm2426, %v1560, %v2682
  %v2939 = vsel %vm2427, %v1563, %v2683
  %v2940 = vsel %vm2428, %v1568, %v2684
  %v2941 = vsel %vm2429, %v1571, %v2685
  %v2942 = vsel %vm2430, %v1576, %v2686
  %v2943 = vsel %vm2431, %v1579, %v2687
  %v2944 = vsel %vm2432, %v1584, %v2688
  %v2945 = vsel %vm2433, %v1587, %v2689
  %v2946 = vsel %vm2434, %v1592, %v2690
  %v2947 = vsel %vm2435, %v1595, %v2691
  %v2948 = vsel %vm2436, %v1600, %v2692
  %v2949 = vsel %vm2437, %v1603, %v2693
  %v2950 = vsel %vm2438, %v1608, %v2694
  %v2951 = vsel %vm2439, %v1611, %v2695
  %v2952 = vsel %vm2440, %v1616, %v2696
  %v2953 = vsel %vm2441, %v1619, %v2697
  %v2954 = vsel %vm2442, %v1624, %v2698
  %v2955 = vsel %vm2443, %v1627, %v2699
  %v2956 = vsel %vm2444, %v1632, %v2700
  %v2957 = vsel %vm2445, %v1635, %v2701
  %v2958 = vsel %vm2446, %v1640, %v2702
  %v2959 = vsel %vm2447, %v1643, %v2703
  %v2960 = vsel %vm2448, %v1648, %v2704
  %v2961 = vsel %vm2449, %v1651, %v2705
  %v2962 = vsel %vm2450, %v1656, %v2706
  %v2963 = vsel %vm2451, %v1659, %v2707
  %v2964 = vsel %vm2452, %v1664, %v2708
  %v2965 = vsel %vm2453, %v1667, %v2709
  %v2966 = vsel %vm2454, %v1672, %v2710
  %v2967 = vsel %vm2455, %v1675, %v2711
  %v2968 = vsel %vm2456, %v1680, %v2712
  %v2969 = vsel %vm2457, %v1683, %v2713
  %v2970 = vsel %vm2458, %v1688, %v2714
  %v2971 = vsel %vm2459, %v1691, %v2715
  %v2972 = vsel %vm2460, %v1696, %v2716
  %v2973 = vsel %vm2461, %v1699, %v2717
  %v2974 = vsel %vm2462, %v1704, %v2718
  %v2975 = vsel %vm2463, %v1707, %v2719
  %v2976 = vsel %vm2464, %v1712, %v2720
  %v2977 = vsel %vm2465, %v1715, %v2721
  %v2978 = vsel %vm2466, %v1720, %v2722
  %v2979 = vsel %vm2467, %v1723, %v2723
  %v2980 = vsel %vm2468, %v1728, %v2724
  %v2981 = vsel %vm2469, %v1731, %v2725
  %v2982 = vsel %vm2470, %v1736, %v2726
  %v2983 = vsel %vm2471, %v1739, %v2727
  %v2984 = vsel %vm2472, %v1744, %v2728
  %v2985 = vsel %vm2473, %v1747, %v2729
  %v2986 = vsel %vm2474, %v1752, %v2730
  %v2987 = vsel %vm2475, %v1755, %v2731
  %v2988 = vsel %vm2476, %v1760, %v2732
  %v2989 = vsel %vm2477, %v1763, %v2733
  %v2990 = vsel %vm2478, %v1768, %v2734
  %v2991 = vsel %vm2479, %v1771, %v2735
  %v2992 = vsel %vm2480, %v1776, %v2736
  %v2993 = vsel %vm2481, %v1779, %v2737
  %v2994 = vsel %vm2482, %v1784, %v2738
  %v2995 = vsel %vm2483, %v1787, %v2739
  %v2996 = vsel %vm2484, %v1792, %v2740
  %v2997 = vsel %vm2485, %v1795, %v2741
  %v2998 = vsel %vm2486, %v1800, %v2742
  %v2999 = vsel %vm2487, %v1803, %v2743
  %v3000 = vsel %vm2488, %v1808, %v2744
  %v3001 = vsel %vm2489, %v1811, %v2745
  %v3002 = vsel %vm2490, %v1816, %v2746
  %v3003 = vsel %vm2491, %v1819, %v2747
  %v3004 = vsel %vm2492, %v1824, %v2748
  %v3005 = vsel %vm2493, %v1827, %v2749
  %v3006 = vsel %vm2494, %v1832, %v2750
  %v3007 = vsel %vm2495, %v1835, %v2751
  %v3008 = vsel %vm2496, %v1840, %v2752
  %v3009 = vsel %vm2497, %v1843, %v2753
  %v3010 = vsel %vm2498, %v1848, %v2754
  %v3011 = vsel %vm2499, %v1851, %v2755
  %v3012 = vsel %vm2500, %v1856, %v2756
  %v3013 = vsel %vm2501, %v1859, %v2757
  %v3014 = vsel %vm2502, %v1864, %v2758
  %v3015 = vsel %vm2503, %v1867, %v2759
  %v3016 = vsel %vm2504, %v1872, %v2760
  %v3017 = vsel %vm2505, %v1875, %v2761
  %v3018 = vsel %vm2506, %v1880, %v2762
  %v3019 = vsel %vm2507, %v1883, %v2763
  %v3020 = vsel %vm2508, %v1888, %v2764
  %v3021 = vsel %vm2509, %v1891, %v2765
  %v3022 = vsel %vm2510, %v1896, %v2766
  %v3023 = vsel %vm2511, %v1899, %v2767
  %v3024 = vsel %vm2512, %v1904, %v2768
  %v3025 = vsel %vm2513, %v1907, %v2769
  %v3026 = vsel %vm2514, %v1912, %v2770
  %v3027 = vsel %vm2515, %v1915, %v2771
  %v3028 = vsel %vm2516, %v1920, %v2772
  %v3029 = vsel %vm2517, %v1923, %v2773
  %v3030 = vsel %vm2518, %v1928, %v2774
  %v3031 = vsel %vm2519, %v1931, %v2775
  %v3032 = vsel %vm2520, %v1936, %v2776
  %v3033 = vsel %vm2521, %v1939, %v2777
  %v3034 = vsel %vm2522, %v1944, %v2778
  %v3035 = vsel %vm2523, %v1947, %v2779
  %v3036 = vsel %vm2524, %v1952, %v2780
  %v3037 = vsel %vm2525, %v1955, %v2781
  %v3038 = vsel %vm2526, %v1960, %v2782
  %v3039 = vsel %vm2527, %v1963, %v2783
  %v3040 = vsel %vm2528, %v1968, %v2784
  %v3041 = vsel %vm2529, %v1971, %v2785
  %v3042 = vsel %vm2530, %v1976, %v2786
  %v3043 = vsel %vm2531, %v1979, %v2787
  %v3044 = vsel %vm2532, %v1984, %v2788
  %v3045 = vsel %vm2533, %v1987, %v2789
  %v3046 = vsel %vm2534, %v1992, %v2790
  %v3047 = vsel %vm2535, %v1995, %v2791
  %v3048 = vsel %vm2536, %v2000, %v2792
  %v3049 = vsel %vm2537, %v2003, %v2793
  %v3050 = vsel %vm2538, %v2008, %v2794
  %v3051 = vsel %vm2539, %v2011, %v2795
  %v3052 = vsel %vm2540, %v2016, %v2796
  %v3053 = vsel %vm2541, %v2019, %v2797
  %v3054 = vsel %vm2542, %v2024, %v2798
  %v3055 = vsel %vm2543, %v2027, %v2799
  %v3056 = vsel %vm2544, %v2032, %v2800
  %v3057 = vsel %vm2545, %v2035, %v2801
  %v3058 = vsel %vm2546, %v2040, %v2802
  %v3059 = vsel %vm2547, %v2043, %v2803
  %v3060 = vsel %vm2548, %v2048, %v2804
  %v3061 = vsel %vm2549, %v2051, %v2805
  %v3062 = vsel %vm2550, %v2056, %v2806
  %v3063 = vsel %vm2551, %v2059, %v2807
  %v3064 = vsel %vm2552, %v2064, %v2808
  %v3065 = vsel %vm2553, %v2067, %v2809
  %v3066 = vsel %vm2554, %v2072, %v2810
  %v3067 = vsel %vm2555, %v2075, %v2811
  %v3068 = vsel %vm2556, %v2080, %v2812
  %v3069 = vsel %vm2557, %v2083, %v2813
  %v3070 = vsel %vm2558, %v2088, %v2814
  %v3071 = vsel %vm2559, %v2091, %v2815
  %v3072 = vsel %vm2560, %v2096, %v2816
  %v3073 = vsel %vm2561, %v2099, %v2817
  %v3074 = vsel %vm2562, %v2104, %v2818
  %v3075 = vsel %vm2563, %v2107, %v2819
  %v3076 = vsel %vm2564, %v2112, %v2820
  %v3077 = vsel %vm2565, %v2115, %v2821
  %v3078 = vsel %vm2566, %v2120, %v2822
  %v3079 = vsel %vm2567, %v2123, %v2823
  %v3080 = vsel %vm2568, %v2128, %v2824
  %v3081 = vsel %vm2569, %v2131, %v2825
  %v3082 = vsel %vm2570, %v2136, %v2826
  %v3083 = vsel %vm2571, %v2139, %v2827
  %v3084 = vsel %vm2572, %v2144, %v2828
  %v3085 = vsel %vm2573, %v2147, %v2829
  %v3086 = vsel %vm2574, %v2152, %v2830
  %v3087 = vsel %vm2575, %v2155, %v2831
  %v3088 = vsel %vm2576, %v2160, %v2832
  %v3089 = vsel %vm2577, %v2163, %v2833
  %v3090 = vsel %vm2578, %v2168, %v2834
  %v3091 = vsel %vm2579, %v2171, %v2835
  %v3092 = vsel %vm2580, %v2176, %v2836
  %v3093 = vsel %vm2581, %v2179, %v2837
  %v3094 = vsel %vm2582, %v2184, %v2838
  %v3095 = vsel %vm2583, %v2187, %v2839
  %v3096 = vsel %vm2584, %v2192, %v2840
  %v3097 = vsel %vm2585, %v2195, %v2841
  %v3098 = vsel %vm2586, %v2200, %v2842
  %v3099 = vsel %vm2587, %v2203, %v2843
  %v3100 = vsel %vm2588, %v2208, %v2844
  %v3101 = vsel %vm2589, %v2211, %v2845
  %v3102 = vsel %vm2590, %v2216, %v2846
  %v3103 = vsel %vm2591, %v2219, %v2847
  %v3104 = vsel %vm2592, %v2224, %v2848
  %v3105 = vsel %vm2593, %v2227, %v2849
  %v3106 = vsel %vm2594, %v2232, %v2850
  %v3107 = vsel %vm2595, %v2235, %v2851
  %v3108 = vsel %vm2596, %v2240, %v2852
  %v3109 = vsel %vm2597, %v2243, %v2853
  %v3110 = vsel %vm2598, %v2248, %v2854
  %v3111 = vsel %vm2599, %v2251, %v2855
  %v3112 = vsel %vm2600, %v2256, %v2856
  %v3113 = vsel %vm2601, %v2259, %v2857
  %v3114 = vsel %vm2602, %v2264, %v2858
  %v3115 = vsel %vm2603, %v2267, %v2859
  %v3116 = vsel %vm2604, %v2272, %v2860
  %v3117 = vsel %vm2605, %v2275, %v2861
  %v3118 = vsel %vm2606, %v2280, %v2862
  %v3119 = vsel %vm2607, %v2283, %v2863
  %v3120 = vsel %vm2608, %v2288, %v2864
  %v3121 = vsel %vm2609, %v2291, %v2865
  %v3122 = vsel %vm2610, %v2296, %v2866
  %v3123 = vsel %vm2611, %v2299, %v2867
  %v3124 = vsel %vm2612, %v2304, %v2868
  %v3125 = vsel %vm2613, %v2307, %v2869
  %v3126 = vsel %vm2614, %v2312, %v2870
  %v3127 = vsel %vm2615, %v2315, %v2871
  %v3128 = vsel %vm2616, %v2320, %v2872
  %v3129 = vsel %vm2617, %v2323, %v2873
  %v3130 = vsel %vm2618, %v2328, %v2874
  %v3131 = vsel %vm2619, %v2331, %v2875
  %v3132 = vsel %vm2620, %v2336, %v2876
  %v3133 = vsel %vm2621, %v2339, %v2877
  %v3134 = vsel %vm2622, %v2344, %v2878
  %v3135 = vsel %vm2623, %v2347, %v2879
  %v3136 = vsel %vm2624, %v2352, %v2880
  %v3137 = vsel %vm2625, %v2355, %v2881
  %v3138 = vsel %vm2626, %v2360, %v2882
  %v3139 = vsel %vm2627, %v2363, %v2883
  %v3140 = vsel %vm2628, %v2368, %v2884
  %v3141 = vsel %vm2629, %v2371, %v2885
  %3142 = vst [vmem:[%s2] sm:$0xff] %v2886
  %3143 = vst [vmem:[%s2 + $0x8] sm:$0xff] %v2887
  %3144 = vst [vmem:[%s2 + $0x10] sm:$0xff] %v2888
  %3145 = vst [vmem:[%s2 + $0x18] sm:$0xff] %v2889
  %3146 = vst [vmem:[%s2 + $0x20] sm:$0xff] %v2890
  %3147 = vst [vmem:[%s2 + $0x28] sm:$0xff] %v2891
  %3148 = vst [vmem:[%s2 + $0x30] sm:$0xff] %v2892
  %3149 = vst [vmem:[%s2 + $0x38] sm:$0xff] %v2893
  %3150 = vst [vmem:[%s2 + $0x40] sm:$0xff] %v2894
  %3151 = vst [vmem:[%s2 + $0x48] sm:$0xff] %v2895
  %3152 = vst [vmem:[%s2 + $0x50] sm:$0xff] %v2896
  %3153 = vst [vmem:[%s2 + $0x58] sm:$0xff] %v2897
  %3154 = vst [vmem:[%s2 + $0x60] sm:$0xff] %v2898
  %3155 = vst [vmem:[%s2 + $0x68] sm:$0xff] %v2899
  %3156 = vst [vmem:[%s2 + $0x70] sm:$0xff] %v2900
  %3157 = vst [vmem:[%s2 + $0x78] sm:$0xff] %v2901
  %3158 = vst [vmem:[%s2 + $0x80] sm:$0xff] %v2902
  %3159 = vst [vmem:[%s2 + $0x88] sm:$0xff] %v2903
  %3160 = vst [vmem:[%s2 + $0x90] sm:$0xff] %v2904
  %3161 = vst [vmem:[%s2 + $0x98] sm:$0xff] %v2905
  %3162 = vst [vmem:[%s2 + $0xa0] sm:$0xff] %v2906
  %3163 = vst [vmem:[%s2 + $0xa8] sm:$0xff] %v2907
  %3164 = vst [vmem:[%s2 + $0xb0] sm:$0xff] %v2908
  %3165 = vst [vmem:[%s2 + $0xb8] sm:$0xff] %v2909
  %3166 = vst [vmem:[%s2 + $0xc0] sm:$0xff] %v2910
  %3167 = vst [vmem:[%s2 + $0xc8] sm:$0xff] %v2911
  %3168 = vst [vmem:[%s2 + $0xd0] sm:$0xff] %v2912
  %3169 = vst [vmem:[%s2 + $0xd8] sm:$0xff] %v2913
  %3170 = vst [vmem:[%s2 + $0xe0] sm:$0xff] %v2914
  %3171 = vst [vmem:[%s2 + $0xe8] sm:$0xff] %v2915
  %3172 = vst [vmem:[%s2 + $0xf0] sm:$0xff] %v2916
  %3173 = vst [vmem:[%s2 + $0xf8] sm:$0xff] %v2917
  %3174 = vst [vmem:[%s2 + $0x100] sm:$0xff] %v2918
  %3175 = vst [vmem:[%s2 + $0x108] sm:$0xff] %v2919
  %3176 = vst [vmem:[%s2 + $0x110] sm:$0xff] %v2920
  %3177 = vst [vmem:[%s2 + $0x118] sm:$0xff] %v2921
  %3178 = vst [vmem:[%s2 + $0x120] sm:$0xff] %v2922
  %3179 = vst [vmem:[%s2 + $0x128] sm:$0xff] %v2923
  %3180 = vst [vmem:[%s2 + $0x130] sm:$0xff] %v2924
  %3181 = vst [vmem:[%s2 + $0x138] sm:$0xff] %v2925
  %3182 = vst [vmem:[%s2 + $0x140] sm:$0xff] %v2926
  %3183 = vst [vmem:[%s2 + $0x148] sm:$0xff] %v2927
  %3184 = vst [vmem:[%s2 + $0x150] sm:$0xff] %v2928
  %3185 = vst [vmem:[%s2 + $0x158] sm:$0xff] %v2929
  %3186 = vst [vmem:[%s2 + $0x160] sm:$0xff] %v2930
  %3187 = vst [vmem:[%s2 + $0x168] sm:$0xff] %v2931
  %3188 = vst [vmem:[%s2 + $0x170] sm:$0xff] %v2932
  %3189 = vst [vmem:[%s2 + $0x178] sm:$0xff] %v2933
  %3190 = vst [vmem:[%s2 + $0x180] sm:$0xff] %v2934
  %3191 = vst [vmem:[%s2 + $0x188] sm:$0xff] %v2935
  %3192 = vst [vmem:[%s2 + $0x190] sm:$0xff] %v2936
  %3193 = vst [vmem:[%s2 + $0x198] sm:$0xff] %v2937
  %3194 = vst [vmem:[%s2 + $0x1a0] sm:$0xff] %v2938
  %3195 = vst [vmem:[%s2 + $0x1a8] sm:$0xff] %v2939
  %3196 = vst [vmem:[%s2 + $0x1b0] sm:$0xff] %v2940
  %3197 = vst [vmem:[%s2 + $0x1b8] sm:$0xff] %v2941
  %3198 = vst [vmem:[%s2 + $0x1c0] sm:$0xff] %v2942
  %3199 = vst [vmem:[%s2 + $0x1c8] sm:$0xff] %v2943
  %3200 = vst [vmem:[%s2 + $0x1d0] sm:$0xff] %v2944
  %3201 = vst [vmem:[%s2 + $0x1d8] sm:$0xff] %v2945
  %3202 = vst [vmem:[%s2 + $0x1e0] sm:$0xff] %v2946
  %3203 = vst [vmem:[%s2 + $0x1e8] sm:$0xff] %v2947
  %3204 = vst [vmem:[%s2 + $0x1f0] sm:$0xff] %v2948
  %3205 = vst [vmem:[%s2 + $0x1f8] sm:$0xff] %v2949
  %3206 = vst [vmem:[%s2 + $0x200] sm:$0xff] %v2950
  %3207 = vst [vmem:[%s2 + $0x208] sm:$0xff] %v2951
  %3208 = vst [vmem:[%s2 + $0x210] sm:$0xff] %v2952
  %3209 = vst [vmem:[%s2 + $0x218] sm:$0xff] %v2953
  %3210 = vst [vmem:[%s2 + $0x220] sm:$0xff] %v2954
  %3211 = vst [vmem:[%s2 + $0x228] sm:$0xff] %v2955
  %3212 = vst [vmem:[%s2 + $0x230] sm:$0xff] %v2956
  %3213 = vst [vmem:[%s2 + $0x238] sm:$0xff] %v2957
  %3214 = vst [vmem:[%s2 + $0x240] sm:$0xff] %v2958
  %3215 = vst [vmem:[%s2 + $0x248] sm:$0xff] %v2959
  %3216 = vst [vmem:[%s2 + $0x250] sm:$0xff] %v2960
  %3217 = vst [vmem:[%s2 + $0x258] sm:$0xff] %v2961
  %3218 = vst [vmem:[%s2 + $0x260] sm:$0xff] %v2962
  %3219 = vst [vmem:[%s2 + $0x268] sm:$0xff] %v2963
  %3220 = vst [vmem:[%s2 + $0x270] sm:$0xff] %v2964
  %3221 = vst [vmem:[%s2 + $0x278] sm:$0xff] %v2965
  %3222 = vst [vmem:[%s2 + $0x280] sm:$0xff] %v2966
  %3223 = vst [vmem:[%s2 + $0x288] sm:$0xff] %v2967
  %3224 = vst [vmem:[%s2 + $0x290] sm:$0xff] %v2968
  %3225 = vst [vmem:[%s2 + $0x298] sm:$0xff] %v2969
  %3226 = vst [vmem:[%s2 + $0x2a0] sm:$0xff] %v2970
  %3227 = vst [vmem:[%s2 + $0x2a8] sm:$0xff] %v2971
  %3228 = vst [vmem:[%s2 + $0x2b0] sm:$0xff] %v2972
  %3229 = vst [vmem:[%s2 + $0x2b8] sm:$0xff] %v2973
  %3230 = vst [vmem:[%s2 + $0x2c0] sm:$0xff] %v2974
  %3231 = vst [vmem:[%s2 + $0x2c8] sm:$0xff] %v2975
  %3232 = vst [vmem:[%s2 + $0x2d0] sm:$0xff] %v2976
  %3233 = vst [vmem:[%s2 + $0x2d8] sm:$0xff] %v2977
  %3234 = vst [vmem:[%s2 + $0x2e0] sm:$0xff] %v2978
  %3235 = vst [vmem:[%s2 + $0x2e8] sm:$0xff] %v2979
  %3236 = vst [vmem:[%s2 + $0x2f0] sm:$0xff] %v2980
  %3237 = vst [vmem:[%s2 + $0x2f8] sm:$0xff] %v2981
  %3238 = vst [vmem:[%s2 + $0x300] sm:$0xff] %v2982
  %3239 = vst [vmem:[%s2 + $0x308] sm:$0xff] %v2983
  %3240 = vst [vmem:[%s2 + $0x310] sm:$0xff] %v2984
  %3241 = vst [vmem:[%s2 + $0x318] sm:$0xff] %v2985
  %3242 = vst [vmem:[%s2 + $0x320] sm:$0xff] %v2986
  %3243 = vst [vmem:[%s2 + $0x328] sm:$0xff] %v2987
  %3244 = vst [vmem:[%s2 + $0x330] sm:$0xff] %v2988
  %3245 = vst [vmem:[%s2 + $0x338] sm:$0xff] %v2989
  %3246 = vst [vmem:[%s2 + $0x340] sm:$0xff] %v2990
  %3247 = vst [vmem:[%s2 + $0x348] sm:$0xff] %v2991
  %3248 = vst [vmem:[%s2 + $0x350] sm:$0xff] %v2992
  %3249 = vst [vmem:[%s2 + $0x358] sm:$0xff] %v2993
  %3250 = vst [vmem:[%s2 + $0x360] sm:$0xff] %v2994
  %3251 = vst [vmem:[%s2 + $0x368] sm:$0xff] %v2995
  %3252 = vst [vmem:[%s2 + $0x370] sm:$0xff] %v2996
  %3253 = vst [vmem:[%s2 + $0x378] sm:$0xff] %v2997
  %3254 = vst [vmem:[%s2 + $0x380] sm:$0xff] %v2998
  %3255 = vst [vmem:[%s2 + $0x388] sm:$0xff] %v2999
  %3256 = vst [vmem:[%s2 + $0x390] sm:$0xff] %v3000
  %3257 = vst [vmem:[%s2 + $0x398] sm:$0xff] %v3001
  %3258 = vst [vmem:[%s2 + $0x3a0] sm:$0xff] %v3002
  %3259 = vst [vmem:[%s2 + $0x3a8] sm:$0xff] %v3003
  %3260 = vst [vmem:[%s2 + $0x3b0] sm:$0xff] %v3004
  %3261 = vst [vmem:[%s2 + $0x3b8] sm:$0xff] %v3005
  %3262 = vst [vmem:[%s2 + $0x3c0] sm:$0xff] %v3006
  %3263 = vst [vmem:[%s2 + $0x3c8] sm:$0xff] %v3007
  %3264 = vst [vmem:[%s2 + $0x3d0] sm:$0xff] %v3008
  %3265 = vst [vmem:[%s2 + $0x3d8] sm:$0xff] %v3009
  %3266 = vst [vmem:[%s2 + $0x3e0] sm:$0xff] %v3010
  %3267 = vst [vmem:[%s2 + $0x3e8] sm:$0xff] %v3011
  %3268 = vst [vmem:[%s2 + $0x3f0] sm:$0xff] %v3012
  %3269 = vst [vmem:[%s2 + $0x3f8] sm:$0xff] %v3013
  %3270 = vst [vmem:[%s2 + $0x400] sm:$0xff] %v3014
  %3271 = vst [vmem:[%s2 + $0x408] sm:$0xff] %v3015
  %3272 = vst [vmem:[%s2 + $0x410] sm:$0xff] %v3016
  %3273 = vst [vmem:[%s2 + $0x418] sm:$0xff] %v3017
  %3274 = vst [vmem:[%s2 + $0x420] sm:$0xff] %v3018
  %3275 = vst [vmem:[%s2 + $0x428] sm:$0xff] %v3019
  %3276 = vst [vmem:[%s2 + $0x430] sm:$0xff] %v3020
  %3277 = vst [vmem:[%s2 + $0x438] sm:$0xff] %v3021
  %3278 = vst [vmem:[%s2 + $0x440] sm:$0xff] %v3022
  %3279 = vst [vmem:[%s2 + $0x448] sm:$0xff] %v3023
  %3280 = vst [vmem:[%s2 + $0x450] sm:$0xff] %v3024
  %3281 = vst [vmem:[%s2 + $0x458] sm:$0xff] %v3025
  %3282 = vst [vmem:[%s2 + $0x460] sm:$0xff] %v3026
  %3283 = vst [vmem:[%s2 + $0x468] sm:$0xff] %v3027
  %3284 = vst [vmem:[%s2 + $0x470] sm:$0xff] %v3028
  %3285 = vst [vmem:[%s2 + $0x478] sm:$0xff] %v3029
  %3286 = vst [vmem:[%s2 + $0x480] sm:$0xff] %v3030
  %3287 = vst [vmem:[%s2 + $0x488] sm:$0xff] %v3031
  %3288 = vst [vmem:[%s2 + $0x490] sm:$0xff] %v3032
  %3289 = vst [vmem:[%s2 + $0x498] sm:$0xff] %v3033
  %3290 = vst [vmem:[%s2 + $0x4a0] sm:$0xff] %v3034
  %3291 = vst [vmem:[%s2 + $0x4a8] sm:$0xff] %v3035
  %3292 = vst [vmem:[%s2 + $0x4b0] sm:$0xff] %v3036
  %3293 = vst [vmem:[%s2 + $0x4b8] sm:$0xff] %v3037
  %3294 = vst [vmem:[%s2 + $0x4c0] sm:$0xff] %v3038
  %3295 = vst [vmem:[%s2 + $0x4c8] sm:$0xff] %v3039
  %3296 = vst [vmem:[%s2 + $0x4d0] sm:$0xff] %v3040
  %3297 = vst [vmem:[%s2 + $0x4d8] sm:$0xff] %v3041
  %3298 = vst [vmem:[%s2 + $0x4e0] sm:$0xff] %v3042
  %3299 = vst [vmem:[%s2 + $0x4e8] sm:$0xff] %v3043
  %3300 = vst [vmem:[%s2 + $0x4f0] sm:$0xff] %v3044
  %3301 = vst [vmem:[%s2 + $0x4f8] sm:$0xff] %v3045
  %3302 = vst [vmem:[%s2 + $0x500] sm:$0xff] %v3046
  %3303 = vst [vmem:[%s2 + $0x508] sm:$0xff] %v3047
  %3304 = vst [vmem:[%s2 + $0x510] sm:$0xff] %v3048
  %3305 = vst [vmem:[%s2 + $0x518] sm:$0xff] %v3049
  %3306 = vst [vmem:[%s2 + $0x520] sm:$0xff] %v3050
  %3307 = vst [vmem:[%s2 + $0x528] sm:$0xff] %v3051
  %3308 = vst [vmem:[%s2 + $0x530] sm:$0xff] %v3052
  %3309 = vst [vmem:[%s2 + $0x538] sm:$0xff] %v3053
  %3310 = vst [vmem:[%s2 + $0x540] sm:$0xff] %v3054
  %3311 = vst [vmem:[%s2 + $0x548] sm:$0xff] %v3055
  %3312 = vst [vmem:[%s2 + $0x550] sm:$0xff] %v3056
  %3313 = vst [vmem:[%s2 + $0x558] sm:$0xff] %v3057
  %3314 = vst [vmem:[%s2 + $0x560] sm:$0xff] %v3058
  %3315 = vst [vmem:[%s2 + $0x568] sm:$0xff] %v3059
  %3316 = vst [vmem:[%s2 + $0x570] sm:$0xff] %v3060
  %3317 = vst [vmem:[%s2 + $0x578] sm:$0xff] %v3061
  %3318 = vst [vmem:[%s2 + $0x580] sm:$0xff] %v3062
  %3319 = vst [vmem:[%s2 + $0x588] sm:$0xff] %v3063
  %3320 = vst [vmem:[%s2 + $0x590] sm:$0xff] %v3064
  %3321 = vst [vmem:[%s2 + $0x598] sm:$0xff] %v3065
  %3322 = vst [vmem:[%s2 + $0x5a0] sm:$0xff] %v3066
  %3323 = vst [vmem:[%s2 + $0x5a8] sm:$0xff] %v3067
  %3324 = vst [vmem:[%s2 + $0x5b0] sm:$0xff] %v3068
  %3325 = vst [vmem:[%s2 + $0x5b8] sm:$0xff] %v3069
  %3326 = vst [vmem:[%s2 + $0x5c0] sm:$0xff] %v3070
  %3327 = vst [vmem:[%s2 + $0x5c8] sm:$0xff] %v3071
  %3328 = vst [vmem:[%s2 + $0x5d0] sm:$0xff] %v3072
  %3329 = vst [vmem:[%s2 + $0x5d8] sm:$0xff] %v3073
  %3330 = vst [vmem:[%s2 + $0x5e0] sm:$0xff] %v3074
  %3331 = vst [vmem:[%s2 + $0x5e8] sm:$0xff] %v3075
  %3332 = vst [vmem:[%s2 + $0x5f0] sm:$0xff] %v3076
  %3333 = vst [vmem:[%s2 + $0x5f8] sm:$0xff] %v3077
  %3334 = vst [vmem:[%s2 + $0x600] sm:$0xff] %v3078
  %3335 = vst [vmem:[%s2 + $0x608] sm:$0xff] %v3079
  %3336 = vst [vmem:[%s2 + $0x610] sm:$0xff] %v3080
  %3337 = vst [vmem:[%s2 + $0x618] sm:$0xff] %v3081
  %3338 = vst [vmem:[%s2 + $0x620] sm:$0xff] %v3082
  %3339 = vst [vmem:[%s2 + $0x628] sm:$0xff] %v3083
  %3340 = vst [vmem:[%s2 + $0x630] sm:$0xff] %v3084
  %3341 = vst [vmem:[%s2 + $0x638] sm:$0xff] %v3085
  %3342 = vst [vmem:[%s2 + $0x640] sm:$0xff] %v3086
  %3343 = vst [vmem:[%s2 + $0x648] sm:$0xff] %v3087
  %3344 = vst [vmem:[%s2 + $0x650] sm:$0xff] %v3088
  %3345 = vst [vmem:[%s2 + $0x658] sm:$0xff] %v3089
  %3346 = vst [vmem:[%s2 + $0x660] sm:$0xff] %v3090
  %3347 = vst [vmem:[%s2 + $0x668] sm:$0xff] %v3091
  %3348 = vst [vmem:[%s2 + $0x670] sm:$0xff] %v3092
  %3349 = vst [vmem:[%s2 + $0x678] sm:$0xff] %v3093
  %3350 = vst [vmem:[%s2 + $0x680] sm:$0xff] %v3094
  %3351 = vst [vmem:[%s2 + $0x688] sm:$0xff] %v3095
  %3352 = vst [vmem:[%s2 + $0x690] sm:$0xff] %v3096
  %3353 = vst [vmem:[%s2 + $0x698] sm:$0xff] %v3097
  %3354 = vst [vmem:[%s2 + $0x6a0] sm:$0xff] %v3098
  %3355 = vst [vmem:[%s2 + $0x6a8] sm:$0xff] %v3099
  %3356 = vst [vmem:[%s2 + $0x6b0] sm:$0xff] %v3100
  %3357 = vst [vmem:[%s2 + $0x6b8] sm:$0xff] %v3101
  %3358 = vst [vmem:[%s2 + $0x6c0] sm:$0xff] %v3102
  %3359 = vst [vmem:[%s2 + $0x6c8] sm:$0xff] %v3103
  %3360 = vst [vmem:[%s2 + $0x6d0] sm:$0xff] %v3104
  %3361 = vst [vmem:[%s2 + $0x6d8] sm:$0xff] %v3105
  %3362 = vst [vmem:[%s2 + $0x6e0] sm:$0xff] %v3106
  %3363 = vst [vmem:[%s2 + $0x6e8] sm:$0xff] %v3107
  %3364 = vst [vmem:[%s2 + $0x6f0] sm:$0xff] %v3108
  %3365 = vst [vmem:[%s2 + $0x6f8] sm:$0xff] %v3109
  %3366 = vst [vmem:[%s2 + $0x700] sm:$0xff] %v3110
  %3367 = vst [vmem:[%s2 + $0x708] sm:$0xff] %v3111
  %3368 = vst [vmem:[%s2 + $0x710] sm:$0xff] %v3112
  %3369 = vst [vmem:[%s2 + $0x718] sm:$0xff] %v3113
  %3370 = vst [vmem:[%s2 + $0x720] sm:$0xff] %v3114
  %3371 = vst [vmem:[%s2 + $0x728] sm:$0xff] %v3115
  %3372 = vst [vmem:[%s2 + $0x730] sm:$0xff] %v3116
  %3373 = vst [vmem:[%s2 + $0x738] sm:$0xff] %v3117
  %3374 = vst [vmem:[%s2 + $0x740] sm:$0xff] %v3118
  %3375 = vst [vmem:[%s2 + $0x748] sm:$0xff] %v3119
  %3376 = vst [vmem:[%s2 + $0x750] sm:$0xff] %v3120
  %3377 = vst [vmem:[%s2 + $0x758] sm:$0xff] %v3121
  %3378 = vst [vmem:[%s2 + $0x760] sm:$0xff] %v3122
  %3379 = vst [vmem:[%s2 + $0x768] sm:$0xff] %v3123
  %3380 = vst [vmem:[%s2 + $0x770] sm:$0xff] %v3124
  %3381 = vst [vmem:[%s2 + $0x778] sm:$0xff] %v3125
  %3382 = vst [vmem:[%s2 + $0x780] sm:$0xff] %v3126
  %3383 = vst [vmem:[%s2 + $0x788] sm:$0xff] %v3127
  %3384 = vst [vmem:[%s2 + $0x790] sm:$0xff] %v3128
  %3385 = vst [vmem:[%s2 + $0x798] sm:$0xff] %v3129
  %3386 = vst [vmem:[%s2 + $0x7a0] sm:$0xff] %v3130
  %3387 = vst [vmem:[%s2 + $0x7a8] sm:$0xff] %v3131
  %3388 = vst [vmem:[%s2 + $0x7b0] sm:$0xff] %v3132
  %3389 = vst [vmem:[%s2 + $0x7b8] sm:$0xff] %v3133
  %3390 = vst [vmem:[%s2 + $0x7c0] sm:$0xff] %v3134
  %3391 = vst [vmem:[%s2 + $0x7c8] sm:$0xff] %v3135
  %3392 = vst [vmem:[%s2 + $0x7d0] sm:$0xff] %v3136
  %3393 = vst [vmem:[%s2 + $0x7d8] sm:$0xff] %v3137
  %3394 = vst [vmem:[%s2 + $0x7e0] sm:$0xff] %v3138
  %3395 = vst [vmem:[%s2 + $0x7e8] sm:$0xff] %v3139
  %3396 = vst [vmem:[%s2 + $0x7f0] sm:$0xff] %v3140
  %3397 = vst [vmem:[%s2 + $0x7f8] sm:$0xff] %v3141
  // Predicated region
  $region10: #{discriminator_forward.5} parent=0 // pred_check
    _
  $region11: #{discriminator_forward.5} parent=0 // pred_check_branch
    %3399 = sbr.rel (0) target = $region13
  $region12: #{discriminator_forward.5} parent=0 // pred_region
    _
  $region13: #{discriminator_forward.5} parent=0 // pred_fallthru
    _
  // Predicated region
  $region14: #{discriminator_forward.5} parent=0 // pred_check
    _
  $region15: #{discriminator_forward.5} parent=0 // pred_check_branch
    %3401 = sbr.rel (0) target = $region17
  $region16: #{discriminator_forward.5} parent=0 // pred_region
    _
  $region17: #{discriminator_forward.5} parent=0 // pred_fallthru
    _

// kernel: discriminator_forward.6
$region0: #{discriminator_forward.6}
  #allocation0 [shape = 'u32[]', space=smem, size = 0x4, offset = 0x4, fixed_abs, tag = 'smem constant byte address 0x4 - core index']
  #allocation1 [shape = 'u32[144,128]{1,0:T(1,128)}', space=vmem, size = 0x12000, scoped, tag = 'internal scratch']
  %s0 = inlined_call_operand.vmem [shape: bf16[512,128], index: 0, kind: input, shape index: {}]
  %s1 = inlined_call_operand.vmem [shape: bf16[128,128], index: 1, kind: input, shape index: {}]
  %s2 = inlined_call_operand.vmem [shape: f32[1,128], index: 2, kind: input, shape index: {}]
  %s3 = inlined_call_operand.vmem [shape: f32[1,128], index: 3, kind: input, shape index: {}]
  %s4 = inlined_call_operand.vmem [shape: f32[512,128], index: 4, kind: output, shape index: {}]
  %s5 = sld [smem:[#allocation0]]
  $region26: #{discriminator_forward.6} parent=0
    _
  %s7 = ssub.s32 1, %s5
  %s8 = scalar_select 0, %s7, %s5
  // Predicated region
  $region2: #{discriminator_forward.6} parent=0 // pred_check
    _
  $region3: #{discriminator_forward.6} parent=0 // pred_check_branch
    %10 = sbr.rel (0) target = $region5
  $region4: #{discriminator_forward.6} parent=0 // pred_region
    _
  $region5: #{discriminator_forward.6} parent=0 // pred_fallthru
    _
  // Predicated region
  $region6: #{discriminator_forward.6} parent=0 // pred_check
    _
  $region7: #{discriminator_forward.6} parent=0 // pred_check_branch
    %12 = sbr.rel (0) target = $region9
  $region8: #{discriminator_forward.6} parent=0 // pred_region
    _
  $region9: #{discriminator_forward.6} parent=0 // pred_fallthru
    _
  // Predicated region
  $region10: #{discriminator_forward.6} parent=0 // pred_check
    _
  $region11: #{discriminator_forward.6} parent=0 // pred_check_branch
    %14 = sbr.rel (0) target = $region13
  $region12: #{discriminator_forward.6} parent=0 // pred_region
    _
  $region13: #{discriminator_forward.6} parent=0 // pred_fallthru
    _
  // Predicated region
  $region14: #{discriminator_forward.6} parent=0 // pred_check
    _
  $region15: #{discriminator_forward.6} parent=0 // pred_check_branch
    %16 = sbr.rel (0) target = $region17
  $region16: #{discriminator_forward.6} parent=0 // pred_region
    _
  $region17: #{discriminator_forward.6} parent=0 // pred_fallthru
    _
  %v18 = vld [vmem:[%s0] sm:$0xf]
  %v19 = vld [vmem:[%s0 + $0x4] sm:$0xf]
  %v20 = vld [vmem:[%s0 + $0x8] sm:$0xf]
  %v21 = vld [vmem:[%s0 + $0xc] sm:$0xf]
  %v22 = vld [vmem:[%s0 + $0x10] sm:$0xf]
  %v23 = vld [vmem:[%s0 + $0x14] sm:$0xf]
  %v24 = vld [vmem:[%s0 + $0x18] sm:$0xf]
  %v25 = vld [vmem:[%s0 + $0x1c] sm:$0xf]
  %v26 = vld [vmem:[%s0 + $0x20] sm:$0xf]
  %v27 = vld [vmem:[%s0 + $0x24] sm:$0xf]
  %v28 = vld [vmem:[%s0 + $0x28] sm:$0xf]
  %v29 = vld [vmem:[%s0 + $0x2c] sm:$0xf]
  %v30 = vld [vmem:[%s0 + $0x30] sm:$0xf]
  %v31 = vld [vmem:[%s0 + $0x34] sm:$0xf]
  %v32 = vld [vmem:[%s0 + $0x38] sm:$0xf]
  %v33 = vld [vmem:[%s0 + $0x3c] sm:$0xf]
  %v34 = vld [vmem:[%s0 + $0x40] sm:$0xf]
  %v35 = vld [vmem:[%s0 + $0x44] sm:$0xf]
  %v36 = vld [vmem:[%s0 + $0x48] sm:$0xf]
  %v37 = vld [vmem:[%s0 + $0x4c] sm:$0xf]
  %v38 = vld [vmem:[%s0 + $0x50] sm:$0xf]
  %v39 = vld [vmem:[%s0 + $0x54] sm:$0xf]
  %v40 = vld [vmem:[%s0 + $0x58] sm:$0xf]
  %v41 = vld [vmem:[%s0 + $0x5c] sm:$0xf]
  %v42 = vld [vmem:[%s0 + $0x60] sm:$0xf]
  %v43 = vld [vmem:[%s0 + $0x64] sm:$0xf]
  %v44 = vld [vmem:[%s0 + $0x68] sm:$0xf]
  %v45 = vld [vmem:[%s0 + $0x6c] sm:$0xf]
  %v46 = vld [vmem:[%s0 + $0x70] sm:$0xf]
  %v47 = vld [vmem:[%s0 + $0x74] sm:$0xf]
  %v48 = vld [vmem:[%s0 + $0x78] sm:$0xf]
  %v49 = vld [vmem:[%s0 + $0x7c] sm:$0xf]
  %v50 = vld [vmem:[%s0 + $0x80] sm:$0xf]
  %v51 = vld [vmem:[%s0 + $0x84] sm:$0xf]
  %v52 = vld [vmem:[%s0 + $0x88] sm:$0xf]
  %v53 = vld [vmem:[%s0 + $0x8c] sm:$0xf]
  %v54 = vld [vmem:[%s0 + $0x90] sm:$0xf]
  %v55 = vld [vmem:[%s0 + $0x94] sm:$0xf]
  %v56 = vld [vmem:[%s0 + $0x98] sm:$0xf]
  %v57 = vld [vmem:[%s0 + $0x9c] sm:$0xf]
  %v58 = vld [vmem:[%s0 + $0xa0] sm:$0xf]
  %v59 = vld [vmem:[%s0 + $0xa4] sm:$0xf]
  %v60 = vld [vmem:[%s0 + $0xa8] sm:$0xf]
  %v61 = vld [vmem:[%s0 + $0xac] sm:$0xf]
  %v62 = vld [vmem:[%s0 + $0xb0] sm:$0xf]
  %v63 = vld [vmem:[%s0 + $0xb4] sm:$0xf]
  %v64 = vld [vmem:[%s0 + $0xb8] sm:$0xf]
  %v65 = vld [vmem:[%s0 + $0xbc] sm:$0xf]
  %v66 = vld [vmem:[%s0 + $0xc0] sm:$0xf]
  %v67 = vld [vmem:[%s0 + $0xc4] sm:$0xf]
  %v68 = vld [vmem:[%s0 + $0xc8] sm:$0xf]
  %v69 = vld [vmem:[%s0 + $0xcc] sm:$0xf]
  %v70 = vld [vmem:[%s0 + $0xd0] sm:$0xf]
  %v71 = vld [vmem:[%s0 + $0xd4] sm:$0xf]
  %v72 = vld [vmem:[%s0 + $0xd8] sm:$0xf]
  %v73 = vld [vmem:[%s0 + $0xdc] sm:$0xf]
  %v74 = vld [vmem:[%s0 + $0xe0] sm:$0xf]
  %v75 = vld [vmem:[%s0 + $0xe4] sm:$0xf]
  %v76 = vld [vmem:[%s0 + $0xe8] sm:$0xf]
  %v77 = vld [vmem:[%s0 + $0xec] sm:$0xf]
  %v78 = vld [vmem:[%s0 + $0xf0] sm:$0xf]
  %v79 = vld [vmem:[%s0 + $0xf4] sm:$0xf]
  %v80 = vld [vmem:[%s0 + $0xf8] sm:$0xf]
  %v81 = vld [vmem:[%s0 + $0xfc] sm:$0xf]
  %v82 = vld [vmem:[%s1] sm:$0xf]
  %v83 = vld [vmem:[%s1 + $0x4] sm:$0xf]
  %v84 = vld [vmem:[%s1 + $0x8] sm:$0xf]
  %v85 = vld [vmem:[%s1 + $0xc] sm:$0xf]
  %v86 = vld [vmem:[%s1 + $0x10] sm:$0xf]
  %v87 = vld [vmem:[%s1 + $0x14] sm:$0xf]
  %v88 = vld [vmem:[%s1 + $0x18] sm:$0xf]
  %v89 = vld [vmem:[%s1 + $0x1c] sm:$0xf]
  %v90 = vld [vmem:[%s1 + $0x20] sm:$0xf]
  %v91 = vld [vmem:[%s1 + $0x24] sm:$0xf]
  %v92 = vld [vmem:[%s1 + $0x28] sm:$0xf]
  %v93 = vld [vmem:[%s1 + $0x2c] sm:$0xf]
  %v94 = vld [vmem:[%s1 + $0x30] sm:$0xf]
  %v95 = vld [vmem:[%s1 + $0x34] sm:$0xf]
  %v96 = vld [vmem:[%s1 + $0x38] sm:$0xf]
  %v97 = vld [vmem:[%s1 + $0x3c] sm:$0xf]
  %v162 = vunpack.c.l.b16 %v18
  %v163 = vunpack.c.l.b16 %v19
  %v164 = vunpack.c.l.b16 %v20
  %v165 = vunpack.c.l.b16 %v21
  %v166 = vunpack.c.l.b16 %v22
  %v167 = vunpack.c.l.b16 %v23
  %v168 = vunpack.c.l.b16 %v24
  %v169 = vunpack.c.l.b16 %v25
  %v170 = vunpack.c.l.b16 %v26
  %v171 = vunpack.c.l.b16 %v27
  %v172 = vunpack.c.l.b16 %v28
  %v173 = vunpack.c.l.b16 %v29
  %v174 = vunpack.c.l.b16 %v30
  %v175 = vunpack.c.l.b16 %v31
  %v176 = vunpack.c.l.b16 %v32
  %v177 = vunpack.c.l.b16 %v33
  %v178 = vunpack.c.l.b16 %v34
  %v179 = vunpack.c.l.b16 %v35
  %v180 = vunpack.c.l.b16 %v36
  %v181 = vunpack.c.l.b16 %v37
  %v182 = vunpack.c.l.b16 %v38
  %v183 = vunpack.c.l.b16 %v39
  %v184 = vunpack.c.l.b16 %v40
  %v185 = vunpack.c.l.b16 %v41
  %v186 = vunpack.c.l.b16 %v42
  %v187 = vunpack.c.l.b16 %v43
  %v188 = vunpack.c.l.b16 %v44
  %v189 = vunpack.c.l.b16 %v45
  %v190 = vunpack.c.l.b16 %v46
  %v191 = vunpack.c.l.b16 %v47
  %v192 = vunpack.c.l.b16 %v48
  %v193 = vunpack.c.l.b16 %v49
  %v194 = vunpack.c.l.b16 %v50
  %v195 = vunpack.c.l.b16 %v51
  %v196 = vunpack.c.l.b16 %v52
  %v197 = vunpack.c.l.b16 %v53
  %v198 = vunpack.c.l.b16 %v54
  %v199 = vunpack.c.l.b16 %v55
  %v200 = vunpack.c.l.b16 %v56
  %v201 = vunpack.c.l.b16 %v57
  %v202 = vunpack.c.l.b16 %v58
  %v203 = vunpack.c.l.b16 %v59
  %v204 = vunpack.c.l.b16 %v60
  %v205 = vunpack.c.l.b16 %v61
  %v206 = vunpack.c.l.b16 %v62
  %v207 = vunpack.c.l.b16 %v63
  %v208 = vunpack.c.l.b16 %v64
  %v209 = vunpack.c.l.b16 %v65
  %v210 = vunpack.c.l.b16 %v66
  %v211 = vunpack.c.l.b16 %v67
  %v212 = vunpack.c.l.b16 %v68
  %v213 = vunpack.c.l.b16 %v69
  %v214 = vunpack.c.l.b16 %v70
  %v215 = vunpack.c.l.b16 %v71
  %v216 = vunpack.c.l.b16 %v72
  %v217 = vunpack.c.l.b16 %v73
  %v218 = vunpack.c.l.b16 %v74
  %v219 = vunpack.c.l.b16 %v75
  %v220 = vunpack.c.l.b16 %v76
  %v221 = vunpack.c.l.b16 %v77
  %v222 = vunpack.c.l.b16 %v78
  %v223 = vunpack.c.l.b16 %v79
  %v224 = vunpack.c.l.b16 %v80
  %v225 = vunpack.c.l.b16 %v81
  %v226 = vpack.c.b16 %v163, %v162
  %v227 = vpack.c.b16 %v165, %v164
  %v228 = vpack.c.b16 %v167, %v166
  %v229 = vpack.c.b16 %v169, %v168
  %v230 = vpack.c.b16 %v171, %v170
  %v231 = vpack.c.b16 %v173, %v172
  %v232 = vpack.c.b16 %v175, %v174
  %v233 = vpack.c.b16 %v177, %v176
  %v234 = vpack.c.b16 %v179, %v178
  %v235 = vpack.c.b16 %v181, %v180
  %v236 = vpack.c.b16 %v183, %v182
  %v237 = vpack.c.b16 %v185, %v184
  %v238 = vpack.c.b16 %v187, %v186
  %v239 = vpack.c.b16 %v189, %v188
  %v240 = vpack.c.b16 %v191, %v190
  %v241 = vpack.c.b16 %v193, %v192
  %v242 = vpack.c.b16 %v195, %v194
  %v243 = vpack.c.b16 %v197, %v196
  %v244 = vpack.c.b16 %v199, %v198
  %v245 = vpack.c.b16 %v201, %v200
  %v246 = vpack.c.b16 %v203, %v202
  %v247 = vpack.c.b16 %v205, %v204
  %v248 = vpack.c.b16 %v207, %v206
  %v249 = vpack.c.b16 %v209, %v208
  %v250 = vpack.c.b16 %v211, %v210
  %v251 = vpack.c.b16 %v213, %v212
  %v252 = vpack.c.b16 %v215, %v214
  %v253 = vpack.c.b16 %v217, %v216
  %v254 = vpack.c.b16 %v219, %v218
  %v255 = vpack.c.b16 %v221, %v220
  %v256 = vpack.c.b16 %v223, %v222
  %v257 = vpack.c.b16 %v225, %v224
  %v306 = vunpack.c.l.b16 %v82
  %v307 = vunpack.c.l.b16 %v83
  %v308 = vunpack.c.l.b16 %v84
  %v309 = vunpack.c.l.b16 %v85
  %v310 = vunpack.c.l.b16 %v86
  %v311 = vunpack.c.l.b16 %v87
  %v312 = vunpack.c.l.b16 %v88
  %v313 = vunpack.c.l.b16 %v89
  %v314 = vunpack.c.l.b16 %v90
  %v315 = vunpack.c.l.b16 %v91
  %v316 = vunpack.c.l.b16 %v92
  %v317 = vunpack.c.l.b16 %v93
  %v318 = vunpack.c.l.b16 %v94
  %v319 = vunpack.c.l.b16 %v95
  %v320 = vunpack.c.l.b16 %v96
  %v321 = vunpack.c.l.b16 %v97
  %v322 = vpack.c.b16 %v307, %v306
  %v323 = vpack.c.b16 %v309, %v308
  %v324 = vpack.c.b16 %v311, %v310
  %v325 = vpack.c.b16 %v313, %v312
  %v326 = vpack.c.b16 %v315, %v314
  %v327 = vpack.c.b16 %v317, %v316
  %v328 = vpack.c.b16 %v319, %v318
  %v329 = vpack.c.b16 %v321, %v320
  %338 = vmatprep.subr.bf16.mxu0 0
  %339 = vmatpush1.bf16.msra.mxu0 %v329
  %340 = vmatprep.subr.bf16.mxu0 0
  %341 = vmatpush1.bf16.msra.mxu0 %v328
  %342 = vmatprep.subr.bf16.mxu0 0
  %343 = vmatpush1.bf16.msra.mxu0 %v327
  %344 = vmatprep.subr.bf16.mxu0 0
  %345 = vmatpush1.bf16.msra.mxu0 %v326
  %346 = vmatprep.subr.bf16.mxu0 0
  %347 = vmatpush1.bf16.msra.mxu0 %v325
  %348 = vmatprep.subr.bf16.mxu0 0
  %349 = vmatpush1.bf16.msra.mxu0 %v324
  %350 = vmatprep.subr.bf16.mxu0 0
  %351 = vmatpush1.bf16.msra.mxu0 %v323
  %352 = vmatprep.subr.bf16.mxu0 0
  %353 = vmatpush1.bf16.msra.mxu0 %v322
  %354 = vmatprep.subr.bf16.mxu0 0
  %355 = vmatpush2.bf16.msra.mxu0 0
  %356 = vmatprep.subr.bf16.mxu0 0
  %357 = vmatpush2.bf16.msra.mxu0 0
  %358 = vmatprep.subr.bf16.mxu0 0
  %359 = vmatpush2.bf16.msra.mxu0 0
  %360 = vmatprep.subr.bf16.mxu0 0
  %361 = vmatpush2.bf16.msra.mxu0 0
  %362 = vmatprep.subr.bf16.mxu0 0
  %363 = vmatpush2.bf16.msra.mxu0 0
  %364 = vmatprep.subr.bf16.mxu0 0
  %365 = vmatpush2.bf16.msra.mxu0 0
  %366 = vmatprep.subr.bf16.mxu0 0
  %367 = vmatpush2.bf16.msra.mxu0 0
  %368 = vmatprep.subr.bf16.mxu0 0
  %369 = vmatpush2.bf16.msra.mxu0 0
  %370 = vmatprep.mubr.bf16.mxu0 0
  %371 = vmatmul.mubr.bf16.gmra.mxu0 %v226
  %v372 = vpop.f32.mrf.mxu0
  %v373 = vadd.f32 0.0, %v372
  %v374 = vpop.f32.mrf.mxu0
  %v375 = vpop.f32.mrf.mxu0
  %v376 = vadd.f32 0.0, %v375
  %v377 = vpop.f32.mrf.mxu0
  %378 = vmatprep.mubr.bf16.mxu0 0
  %379 = vmatmul.mubr.bf16.gmra.mxu0 %v227
  %v380 = vpop.f32.mrf.mxu0
  %v381 = vadd.f32 0.0, %v380
  %v382 = vpop.f32.mrf.mxu0
  %v383 = vpop.f32.mrf.mxu0
  %v384 = vadd.f32 0.0, %v383
  %v385 = vpop.f32.mrf.mxu0
  %386 = vmatprep.mubr.bf16.mxu0 0
  %387 = vmatmul.mubr.bf16.gmra.mxu0 %v228
  %v388 = vpop.f32.mrf.mxu0
  %v389 = vadd.f32 0.0, %v388
  %v390 = vpop.f32.mrf.mxu0
  %v391 = vpop.f32.mrf.mxu0
  %v392 = vadd.f32 0.0, %v391
  %v393 = vpop.f32.mrf.mxu0
  %394 = vmatprep.mubr.bf16.mxu0 0
  %395 = vmatmul.mubr.bf16.gmra.mxu0 %v229
  %v396 = vpop.f32.mrf.mxu0
  %v397 = vadd.f32 0.0, %v396
  %v398 = vpop.f32.mrf.mxu0
  %v399 = vpop.f32.mrf.mxu0
  %v400 = vadd.f32 0.0, %v399
  %v401 = vpop.f32.mrf.mxu0
  %402 = vmatprep.mubr.bf16.mxu0 0
  %403 = vmatmul.mubr.bf16.gmra.mxu0 %v230
  %v404 = vpop.f32.mrf.mxu0
  %v405 = vadd.f32 0.0, %v404
  %v406 = vpop.f32.mrf.mxu0
  %v407 = vpop.f32.mrf.mxu0
  %v408 = vadd.f32 0.0, %v407
  %v409 = vpop.f32.mrf.mxu0
  %410 = vmatprep.mubr.bf16.mxu0 0
  %411 = vmatmul.mubr.bf16.gmra.mxu0 %v231
  %v412 = vpop.f32.mrf.mxu0
  %v413 = vadd.f32 0.0, %v412
  %v414 = vpop.f32.mrf.mxu0
  %v415 = vpop.f32.mrf.mxu0
  %v416 = vadd.f32 0.0, %v415
  %v417 = vpop.f32.mrf.mxu0
  %418 = vmatprep.mubr.bf16.mxu0 0
  %419 = vmatmul.mubr.bf16.gmra.mxu0 %v232
  %v420 = vpop.f32.mrf.mxu0
  %v421 = vadd.f32 0.0, %v420
  %v422 = vpop.f32.mrf.mxu0
  %v423 = vpop.f32.mrf.mxu0
  %v424 = vadd.f32 0.0, %v423
  %v425 = vpop.f32.mrf.mxu0
  %426 = vmatprep.mubr.bf16.mxu0 0
  %427 = vmatmul.mubr.bf16.gmra.mxu0 %v233
  %v428 = vpop.f32.mrf.mxu0
  %v429 = vadd.f32 0.0, %v428
  %v430 = vpop.f32.mrf.mxu0
  %v431 = vpop.f32.mrf.mxu0
  %v432 = vadd.f32 0.0, %v431
  %v433 = vpop.f32.mrf.mxu0
  %434 = vmatprep.mubr.bf16.mxu0 0
  %435 = vmatmul.mubr.bf16.gmra.mxu0 %v234
  %v436 = vpop.f32.mrf.mxu0
  %v437 = vadd.f32 0.0, %v436
  %v438 = vpop.f32.mrf.mxu0
  %v439 = vpop.f32.mrf.mxu0
  %v440 = vadd.f32 0.0, %v439
  %v441 = vpop.f32.mrf.mxu0
  %442 = vmatprep.mubr.bf16.mxu0 0
  %443 = vmatmul.mubr.bf16.gmra.mxu0 %v235
  %v444 = vpop.f32.mrf.mxu0
  %v445 = vadd.f32 0.0, %v444
  %v446 = vpop.f32.mrf.mxu0
  %v447 = vpop.f32.mrf.mxu0
  %v448 = vadd.f32 0.0, %v447
  %v449 = vpop.f32.mrf.mxu0
  %450 = vmatprep.mubr.bf16.mxu0 0
  %451 = vmatmul.mubr.bf16.gmra.mxu0 %v236
  %v452 = vpop.f32.mrf.mxu0
  %v453 = vadd.f32 0.0, %v452
  %v454 = vpop.f32.mrf.mxu0
  %v455 = vpop.f32.mrf.mxu0
  %v456 = vadd.f32 0.0, %v455
  %v457 = vpop.f32.mrf.mxu0
  %458 = vmatprep.mubr.bf16.mxu0 0
  %459 = vmatmul.mubr.bf16.gmra.mxu0 %v237
  %v460 = vpop.f32.mrf.mxu0
  %v461 = vadd.f32 0.0, %v460
  %v462 = vpop.f32.mrf.mxu0
  %v463 = vpop.f32.mrf.mxu0
  %v464 = vadd.f32 0.0, %v463
  %v465 = vpop.f32.mrf.mxu0
  %466 = vmatprep.mubr.bf16.mxu0 0
  %467 = vmatmul.mubr.bf16.gmra.mxu0 %v238
  %v468 = vpop.f32.mrf.mxu0
  %v469 = vadd.f32 0.0, %v468
  %v470 = vpop.f32.mrf.mxu0
  %v471 = vpop.f32.mrf.mxu0
  %v472 = vadd.f32 0.0, %v471
  %v473 = vpop.f32.mrf.mxu0
  %474 = vmatprep.mubr.bf16.mxu0 0
  %475 = vmatmul.mubr.bf16.gmra.mxu0 %v239
  %v476 = vpop.f32.mrf.mxu0
  %v477 = vadd.f32 0.0, %v476
  %v478 = vpop.f32.mrf.mxu0
  %v479 = vpop.f32.mrf.mxu0
  %v480 = vadd.f32 0.0, %v479
  %v481 = vpop.f32.mrf.mxu0
  %482 = vmatprep.mubr.bf16.mxu0 0
  %483 = vmatmul.mubr.bf16.gmra.mxu0 %v240
  %v484 = vpop.f32.mrf.mxu0
  %v485 = vadd.f32 0.0, %v484
  %v486 = vpop.f32.mrf.mxu0
  %v487 = vpop.f32.mrf.mxu0
  %v488 = vadd.f32 0.0, %v487
  %v489 = vpop.f32.mrf.mxu0
  %490 = vmatprep.mubr.bf16.mxu0 0
  %491 = vmatmul.mubr.bf16.gmra.mxu0 %v241
  %v492 = vpop.f32.mrf.mxu0
  %v493 = vadd.f32 0.0, %v492
  %v494 = vpop.f32.mrf.mxu0
  %v495 = vpop.f32.mrf.mxu0
  %v496 = vadd.f32 0.0, %v495
  %v497 = vpop.f32.mrf.mxu0
  %498 = vmatprep.mubr.bf16.mxu0 0
  %499 = vmatmul.mubr.bf16.gmra.mxu0 %v242
  %v500 = vpop.f32.mrf.mxu0
  %v501 = vadd.f32 0.0, %v500
  %v502 = vpop.f32.mrf.mxu0
  %v503 = vpop.f32.mrf.mxu0
  %v504 = vadd.f32 0.0, %v503
  %v505 = vpop.f32.mrf.mxu0
  %506 = vmatprep.mubr.bf16.mxu0 0
  %507 = vmatmul.mubr.bf16.gmra.mxu0 %v243
  %v508 = vpop.f32.mrf.mxu0
  %v509 = vadd.f32 0.0, %v508
  %v510 = vpop.f32.mrf.mxu0
  %v511 = vpop.f32.mrf.mxu0
  %v512 = vadd.f32 0.0, %v511
  %v513 = vpop.f32.mrf.mxu0
  %514 = vmatprep.mubr.bf16.mxu0 0
  %515 = vmatmul.mubr.bf16.gmra.mxu0 %v244
  %v516 = vpop.f32.mrf.mxu0
  %v517 = vadd.f32 0.0, %v516
  %v518 = vpop.f32.mrf.mxu0
  %v519 = vpop.f32.mrf.mxu0
  %v520 = vadd.f32 0.0, %v519
  %v521 = vpop.f32.mrf.mxu0
  %522 = vmatprep.mubr.bf16.mxu0 0
  %523 = vmatmul.mubr.bf16.gmra.mxu0 %v245
  %v524 = vpop.f32.mrf.mxu0
  %v525 = vadd.f32 0.0, %v524
  %v526 = vpop.f32.mrf.mxu0
  %v527 = vpop.f32.mrf.mxu0
  %v528 = vadd.f32 0.0, %v527
  %v529 = vpop.f32.mrf.mxu0
  %530 = vmatprep.mubr.bf16.mxu0 0
  %531 = vmatmul.mubr.bf16.gmra.mxu0 %v246
  %v532 = vpop.f32.mrf.mxu0
  %v533 = vadd.f32 0.0, %v532
  %v534 = vpop.f32.mrf.mxu0
  %v535 = vpop.f32.mrf.mxu0
  %v536 = vadd.f32 0.0, %v535
  %v537 = vpop.f32.mrf.mxu0
  %538 = vmatprep.mubr.bf16.mxu0 0
  %539 = vmatmul.mubr.bf16.gmra.mxu0 %v247
  %v540 = vpop.f32.mrf.mxu0
  %v541 = vadd.f32 0.0, %v540
  %v542 = vpop.f32.mrf.mxu0
  %v543 = vpop.f32.mrf.mxu0
  %v544 = vadd.f32 0.0, %v543
  %v545 = vpop.f32.mrf.mxu0
  %546 = vmatprep.mubr.bf16.mxu0 0
  %547 = vmatmul.mubr.bf16.gmra.mxu0 %v248
  %v548 = vpop.f32.mrf.mxu0
  %v549 = vadd.f32 0.0, %v548
  %v550 = vpop.f32.mrf.mxu0
  %v551 = vpop.f32.mrf.mxu0
  %v552 = vadd.f32 0.0, %v551
  %v553 = vpop.f32.mrf.mxu0
  %554 = vmatprep.mubr.bf16.mxu0 0
  %555 = vmatmul.mubr.bf16.gmra.mxu0 %v249
  %v556 = vpop.f32.mrf.mxu0
  %v557 = vadd.f32 0.0, %v556
  %v558 = vpop.f32.mrf.mxu0
  %v559 = vpop.f32.mrf.mxu0
  %v560 = vadd.f32 0.0, %v559
  %v561 = vpop.f32.mrf.mxu0
  %562 = vmatprep.mubr.bf16.mxu0 0
  %563 = vmatmul.mubr.bf16.gmra.mxu0 %v250
  %v564 = vpop.f32.mrf.mxu0
  %v565 = vadd.f32 0.0, %v564
  %v566 = vpop.f32.mrf.mxu0
  %v567 = vpop.f32.mrf.mxu0
  %v568 = vadd.f32 0.0, %v567
  %v569 = vpop.f32.mrf.mxu0
  %570 = vmatprep.mubr.bf16.mxu0 0
  %571 = vmatmul.mubr.bf16.gmra.mxu0 %v251
  %v572 = vpop.f32.mrf.mxu0
  %v573 = vadd.f32 0.0, %v572
  %v574 = vpop.f32.mrf.mxu0
  %v575 = vpop.f32.mrf.mxu0
  %v576 = vadd.f32 0.0, %v575
  %v577 = vpop.f32.mrf.mxu0
  %578 = vmatprep.mubr.bf16.mxu0 0
  %579 = vmatmul.mubr.bf16.gmra.mxu0 %v252
  %v580 = vpop.f32.mrf.mxu0
  %v581 = vadd.f32 0.0, %v580
  %v582 = vpop.f32.mrf.mxu0
  %v583 = vpop.f32.mrf.mxu0
  %v584 = vadd.f32 0.0, %v583
  %v585 = vpop.f32.mrf.mxu0
  %586 = vmatprep.mubr.bf16.mxu0 0
  %587 = vmatmul.mubr.bf16.gmra.mxu0 %v253
  %v588 = vpop.f32.mrf.mxu0
  %v589 = vadd.f32 0.0, %v588
  %v590 = vpop.f32.mrf.mxu0
  %v591 = vpop.f32.mrf.mxu0
  %v592 = vadd.f32 0.0, %v591
  %v593 = vpop.f32.mrf.mxu0
  %594 = vmatprep.mubr.bf16.mxu0 0
  %595 = vmatmul.mubr.bf16.gmra.mxu0 %v254
  %v596 = vpop.f32.mrf.mxu0
  %v597 = vadd.f32 0.0, %v596
  %v598 = vpop.f32.mrf.mxu0
  %v599 = vpop.f32.mrf.mxu0
  %v600 = vadd.f32 0.0, %v599
  %v601 = vpop.f32.mrf.mxu0
  %602 = vmatprep.mubr.bf16.mxu0 0
  %603 = vmatmul.mubr.bf16.gmra.mxu0 %v255
  %v604 = vpop.f32.mrf.mxu0
  %v605 = vadd.f32 0.0, %v604
  %v606 = vpop.f32.mrf.mxu0
  %v607 = vpop.f32.mrf.mxu0
  %v608 = vadd.f32 0.0, %v607
  %v609 = vpop.f32.mrf.mxu0
  %610 = vmatprep.mubr.bf16.mxu0 0
  %611 = vmatmul.mubr.bf16.gmra.mxu0 %v256
  %v612 = vpop.f32.mrf.mxu0
  %v613 = vadd.f32 0.0, %v612
  %v614 = vpop.f32.mrf.mxu0
  %v615 = vpop.f32.mrf.mxu0
  %v616 = vadd.f32 0.0, %v615
  %v617 = vpop.f32.mrf.mxu0
  %618 = vmatprep.mubr.bf16.mxu0 0
  %619 = vmatmul.mubr.bf16.gmra.mxu0 %v257
  %v620 = vpop.f32.mrf.mxu0
  %v621 = vadd.f32 0.0, %v620
  %v622 = vpop.f32.mrf.mxu0
  %v623 = vpop.f32.mrf.mxu0
  %v624 = vadd.f32 0.0, %v623
  %v625 = vpop.f32.mrf.mxu0
  %626 = vdwg.mxu0
  %v627 = vadd.f32 %v373, %v376
  %v628 = vadd.f32 %v627, %v381
  %v629 = vadd.f32 %v628, %v384
  %v630 = vadd.f32 %v629, %v389
  %v631 = vadd.f32 %v630, %v392
  %v632 = vadd.f32 %v631, %v397
  %v633 = vadd.f32 %v632, %v400
  %v634 = vadd.f32 %v633, %v405
  %v635 = vadd.f32 %v634, %v408
  %v636 = vadd.f32 %v635, %v413
  %v637 = vadd.f32 %v636, %v416
  %v638 = vadd.f32 %v637, %v421
  %v639 = vadd.f32 %v638, %v424
  %v640 = vadd.f32 %v639, %v429
  %v641 = vadd.f32 %v640, %v432
  %v642 = vadd.f32 %v641, %v437
  %v643 = vadd.f32 %v642, %v440
  %v644 = vadd.f32 %v643, %v445
  %v645 = vadd.f32 %v644, %v448
  %v646 = vadd.f32 %v645, %v453
  %v647 = vadd.f32 %v646, %v456
  %v648 = vadd.f32 %v647, %v461
  %v649 = vadd.f32 %v648, %v464
  %v650 = vadd.f32 %v649, %v469
  %v651 = vadd.f32 %v650, %v472
  %v652 = vadd.f32 %v651, %v477
  %v653 = vadd.f32 %v652, %v480
  %v654 = vadd.f32 %v653, %v485
  %v655 = vadd.f32 %v654, %v488
  %v656 = vadd.f32 %v655, %v493
  %v657 = vadd.f32 %v656, %v496
  %v658 = vadd.f32 %v657, %v501
  %v659 = vadd.f32 %v658, %v504
  %v660 = vadd.f32 %v659, %v509
  %v661 = vadd.f32 %v660, %v512
  %v662 = vadd.f32 %v661, %v517
  %v663 = vadd.f32 %v662, %v520
  %v664 = vadd.f32 %v663, %v525
  %v665 = vadd.f32 %v664, %v528
  %v666 = vadd.f32 %v665, %v533
  %v667 = vadd.f32 %v666, %v536
  %v668 = vadd.f32 %v667, %v541
  %v669 = vadd.f32 %v668, %v544
  %v670 = vadd.f32 %v669, %v549
  %v671 = vadd.f32 %v670, %v552
  %v672 = vadd.f32 %v671, %v557
  %v673 = vadd.f32 %v672, %v560
  %v674 = vadd.f32 %v673, %v565
  %v675 = vadd.f32 %v674, %v568
  %v676 = vadd.f32 %v675, %v573
  %v677 = vadd.f32 %v676, %v576
  %v678 = vadd.f32 %v677, %v581
  %v679 = vadd.f32 %v678, %v584
  %v680 = vadd.f32 %v679, %v589
  %v681 = vadd.f32 %v680, %v592
  %v682 = vadd.f32 %v681, %v597
  %v683 = vadd.f32 %v682, %v600
  %v684 = vadd.f32 %v683, %v605
  %v685 = vadd.f32 %v684, %v608
  %v686 = vadd.f32 %v685, %v613
  %v687 = vadd.f32 %v686, %v616
  %v688 = vadd.f32 %v687, %v621
  %v689 = vadd.f32 %v688, %v624
  %v690 = vrot.slane %v689, 4
  %v691 = vadd.f32 %v689, %v690
  %v692 = vrot.slane %v691, 2
  %v693 = vadd.f32 %v691, %v692
  %v694 = vrot.slane %v693, 1
  %v695 = vadd.f32 %v693, %v694
  %v696 = vmul.f32 %v695, 0.001953125
  %v697 = vsub.f32 %v373, %v696
  %v698 = vsub.f32 %v376, %v696
  %v699 = vsub.f32 %v381, %v696
  %v700 = vsub.f32 %v384, %v696
  %v701 = vsub.f32 %v389, %v696
  %v702 = vsub.f32 %v392, %v696
  %v703 = vsub.f32 %v397, %v696
  %v704 = vsub.f32 %v400, %v696
  %v705 = vsub.f32 %v405, %v696
  %v706 = vsub.f32 %v408, %v696
  %v707 = vsub.f32 %v413, %v696
  %v708 = vsub.f32 %v416, %v696
  %v709 = vsub.f32 %v421, %v696
  %v710 = vsub.f32 %v424, %v696
  %v711 = vsub.f32 %v429, %v696
  %v712 = vsub.f32 %v432, %v696
  %v713 = vsub.f32 %v437, %v696
  %v714 = vsub.f32 %v440, %v696
  %v715 = vsub.f32 %v445, %v696
  %v716 = vsub.f32 %v448, %v696
  %v717 = vsub.f32 %v453, %v696
  %v718 = vsub.f32 %v456, %v696
  %v719 = vsub.f32 %v461, %v696
  %v720 = vsub.f32 %v464, %v696
  %v721 = vsub.f32 %v469, %v696
  %v722 = vsub.f32 %v472, %v696
  %v723 = vsub.f32 %v477, %v696
  %v724 = vsub.f32 %v480, %v696
  %v725 = vsub.f32 %v485, %v696
  %v726 = vsub.f32 %v488, %v696
  %v727 = vsub.f32 %v493, %v696
  %v728 = vsub.f32 %v496, %v696
  %v729 = vsub.f32 %v501, %v696
  %v730 = vsub.f32 %v504, %v696
  %v731 = vsub.f32 %v509, %v696
  %v732 = vsub.f32 %v512, %v696
  %v733 = vsub.f32 %v517, %v696
  %v734 = vsub.f32 %v520, %v696
  %v735 = vsub.f32 %v525, %v696
  %v736 = vsub.f32 %v528, %v696
  %v737 = vsub.f32 %v533, %v696
  %v738 = vsub.f32 %v536, %v696
  %v739 = vsub.f32 %v541, %v696
  %v740 = vsub.f32 %v544, %v696
  %v741 = vsub.f32 %v549, %v696
  %v742 = vsub.f32 %v552, %v696
  %v743 = vsub.f32 %v557, %v696
  %v744 = vsub.f32 %v560, %v696
  %v745 = vsub.f32 %v565, %v696
  %v746 = vsub.f32 %v568, %v696
  %v747 = vsub.f32 %v573, %v696
  %v748 = vsub.f32 %v576, %v696
  %v749 = vsub.f32 %v581, %v696
  %v750 = vsub.f32 %v584, %v696
  %v751 = vsub.f32 %v589, %v696
  %v752 = vsub.f32 %v592, %v696
  %v753 = vsub.f32 %v597, %v696
  %v754 = vsub.f32 %v600, %v696
  %v755 = vsub.f32 %v605, %v696
  %v756 = vsub.f32 %v608, %v696
  %v757 = vsub.f32 %v613, %v696
  %v758 = vsub.f32 %v616, %v696
  %v759 = vsub.f32 %v621, %v696
  %v760 = vsub.f32 %v624, %v696
  %v761 = vmul.f32 %v697, %v697
  %v762 = vmul.f32 %v698, %v698
  %v763 = vmul.f32 %v699, %v699
  %v764 = vmul.f32 %v700, %v700
  %v765 = vmul.f32 %v701, %v701
  %v766 = vmul.f32 %v702, %v702
  %v767 = vmul.f32 %v703, %v703
  %v768 = vmul.f32 %v704, %v704
  %v769 = vmul.f32 %v705, %v705
  %v770 = vmul.f32 %v706, %v706
  %v771 = vmul.f32 %v707, %v707
  %v772 = vmul.f32 %v708, %v708
  %v773 = vmul.f32 %v709, %v709
  %v774 = vmul.f32 %v710, %v710
  %v775 = vmul.f32 %v711, %v711
  %v776 = vmul.f32 %v712, %v712
  %v777 = vmul.f32 %v713, %v713
  %v778 = vmul.f32 %v714, %v714
  %v779 = vmul.f32 %v715, %v715
  %v780 = vmul.f32 %v716, %v716
  %v781 = vmul.f32 %v717, %v717
  %v782 = vmul.f32 %v718, %v718
  %v783 = vmul.f32 %v719, %v719
  %v784 = vmul.f32 %v720, %v720
  %v785 = vmul.f32 %v721, %v721
  %v786 = vmul.f32 %v722, %v722
  %v787 = vmul.f32 %v723, %v723
  %v788 = vmul.f32 %v724, %v724
  %v789 = vmul.f32 %v725, %v725
  %v790 = vmul.f32 %v726, %v726
  %v791 = vmul.f32 %v727, %v727
  %v792 = vmul.f32 %v728, %v728
  %v793 = vmul.f32 %v729, %v729
  %v794 = vmul.f32 %v730, %v730
  %v795 = vmul.f32 %v731, %v731
  %v796 = vmul.f32 %v732, %v732
  %v797 = vmul.f32 %v733, %v733
  %v798 = vmul.f32 %v734, %v734
  %v799 = vmul.f32 %v735, %v735
  %v800 = vmul.f32 %v736, %v736
  %v801 = vmul.f32 %v737, %v737
  %v802 = vmul.f32 %v738, %v738
  %v803 = vmul.f32 %v739, %v739
  %v804 = vmul.f32 %v740, %v740
  %v805 = vmul.f32 %v741, %v741
  %v806 = vmul.f32 %v742, %v742
  %v807 = vmul.f32 %v743, %v743
  %v808 = vmul.f32 %v744, %v744
  %v809 = vmul.f32 %v745, %v745
  %v810 = vmul.f32 %v746, %v746
  %v811 = vmul.f32 %v747, %v747
  %v812 = vmul.f32 %v748, %v748
  %v813 = vmul.f32 %v749, %v749
  %v814 = vmul.f32 %v750, %v750
  %v815 = vmul.f32 %v751, %v751
  %v816 = vmul.f32 %v752, %v752
  %v817 = vmul.f32 %v753, %v753
  %v818 = vmul.f32 %v754, %v754
  %v819 = vmul.f32 %v755, %v755
  %v820 = vmul.f32 %v756, %v756
  %v821 = vmul.f32 %v757, %v757
  %v822 = vmul.f32 %v758, %v758
  %v823 = vmul.f32 %v759, %v759
  %v824 = vmul.f32 %v760, %v760
  %v825 = vadd.f32 %v761, %v762
  %v826 = vadd.f32 %v825, %v763
  %v827 = vadd.f32 %v826, %v764
  %v828 = vadd.f32 %v827, %v765
  %v829 = vadd.f32 %v828, %v766
  %v830 = vadd.f32 %v829, %v767
  %v831 = vadd.f32 %v830, %v768
  %v832 = vadd.f32 %v831, %v769
  %v833 = vadd.f32 %v832, %v770
  %v834 = vadd.f32 %v833, %v771
  %v835 = vadd.f32 %v834, %v772
  %v836 = vadd.f32 %v835, %v773
  %v837 = vadd.f32 %v836, %v774
  %v838 = vadd.f32 %v837, %v775
  %v839 = vadd.f32 %v838, %v776
  %v840 = vadd.f32 %v839, %v777
  %v841 = vadd.f32 %v840, %v778
  %v842 = vadd.f32 %v841, %v779
  %v843 = vadd.f32 %v842, %v780
  %v844 = vadd.f32 %v843, %v781
  %v845 = vadd.f32 %v844, %v782
  %v846 = vadd.f32 %v845, %v783
  %v847 = vadd.f32 %v846, %v784
  %v848 = vadd.f32 %v847, %v785
  %v849 = vadd.f32 %v848, %v786
  %v850 = vadd.f32 %v849, %v787
  %v851 = vadd.f32 %v850, %v788
  %v852 = vadd.f32 %v851, %v789
  %v853 = vadd.f32 %v852, %v790
  %v854 = vadd.f32 %v853, %v791
  %v855 = vadd.f32 %v854, %v792
  %v856 = vadd.f32 %v855, %v793
  %v857 = vadd.f32 %v856, %v794
  %v858 = vadd.f32 %v857, %v795
  %v859 = vadd.f32 %v858, %v796
  %v860 = vadd.f32 %v859, %v797
  %v861 = vadd.f32 %v860, %v798
  %v862 = vadd.f32 %v861, %v799
  %v863 = vadd.f32 %v862, %v800
  %v864 = vadd.f32 %v863, %v801
  %v865 = vadd.f32 %v864, %v802
  %v866 = vadd.f32 %v865, %v803
  %v867 = vadd.f32 %v866, %v804
  %v868 = vadd.f32 %v867, %v805
  %v869 = vadd.f32 %v868, %v806
  %v870 = vadd.f32 %v869, %v807
  %v871 = vadd.f32 %v870, %v808
  %v872 = vadd.f32 %v871, %v809
  %v873 = vadd.f32 %v872, %v810
  %v874 = vadd.f32 %v873, %v811
  %v875 = vadd.f32 %v874, %v812
  %v876 = vadd.f32 %v875, %v813
  %v877 = vadd.f32 %v876, %v814
  %v878 = vadd.f32 %v877, %v815
  %v879 = vadd.f32 %v878, %v816
  %v880 = vadd.f32 %v879, %v817
  %v881 = vadd.f32 %v880, %v818
  %v882 = vadd.f32 %v881, %v819
  %v883 = vadd.f32 %v882, %v820
  %v884 = vadd.f32 %v883, %v821
  %v885 = vadd.f32 %v884, %v822
  %v886 = vadd.f32 %v885, %v823
  %v887 = vadd.f32 %v886, %v824
  %v888 = vrot.slane %v887, 4
  %v889 = vadd.f32 %v887, %v888
  %v890 = vrot.slane %v889, 2
  %v891 = vadd.f32 %v889, %v890
  %v892 = vrot.slane %v891, 1
  %v893 = vadd.f32 %v891, %v892
  %v894 = vmul.f32 %v893, 0.001953125
  %v895 = vadd.f32 %v894, 1e-05
  %v896 = vrsqrt.pop %v895
  %v897 = vmul.f32 %v697, %v896
  %v898 = vmul.f32 %v698, %v896
  %v899 = vmul.f32 %v699, %v896
  %v900 = vmul.f32 %v700, %v896
  %v901 = vmul.f32 %v701, %v896
  %v902 = vmul.f32 %v702, %v896
  %v903 = vmul.f32 %v703, %v896
  %v904 = vmul.f32 %v704, %v896
  %v905 = vmul.f32 %v705, %v896
  %v906 = vmul.f32 %v706, %v896
  %v907 = vmul.f32 %v707, %v896
  %v908 = vmul.f32 %v708, %v896
  %v909 = vmul.f32 %v709, %v896
  %v910 = vmul.f32 %v710, %v896
  %v911 = vmul.f32 %v711, %v896
  %v912 = vmul.f32 %v712, %v896
  %v913 = vmul.f32 %v713, %v896
  %v914 = vmul.f32 %v714, %v896
  %v915 = vmul.f32 %v715, %v896
  %v916 = vmul.f32 %v716, %v896
  %v917 = vmul.f32 %v717, %v896
  %v918 = vmul.f32 %v718, %v896
  %v919 = vmul.f32 %v719, %v896
  %v920 = vmul.f32 %v720, %v896
  %v921 = vmul.f32 %v721, %v896
  %v922 = vmul.f32 %v722, %v896
  %v923 = vmul.f32 %v723, %v896
  %v924 = vmul.f32 %v724, %v896
  %v925 = vmul.f32 %v725, %v896
  %v926 = vmul.f32 %v726, %v896
  %v927 = vmul.f32 %v727, %v896
  %v928 = vmul.f32 %v728, %v896
  %v929 = vmul.f32 %v729, %v896
  %v930 = vmul.f32 %v730, %v896
  %v931 = vmul.f32 %v731, %v896
  %v932 = vmul.f32 %v732, %v896
  %v933 = vmul.f32 %v733, %v896
  %v934 = vmul.f32 %v734, %v896
  %v935 = vmul.f32 %v735, %v896
  %v936 = vmul.f32 %v736, %v896
  %v937 = vmul.f32 %v737, %v896
  %v938 = vmul.f32 %v738, %v896
  %v939 = vmul.f32 %v739, %v896
  %v940 = vmul.f32 %v740, %v896
  %v941 = vmul.f32 %v741, %v896
  %v942 = vmul.f32 %v742, %v896
  %v943 = vmul.f32 %v743, %v896
  %v944 = vmul.f32 %v744, %v896
  %v945 = vmul.f32 %v745, %v896
  %v946 = vmul.f32 %v746, %v896
  %v947 = vmul.f32 %v747, %v896
  %v948 = vmul.f32 %v748, %v896
  %v949 = vmul.f32 %v749, %v896
  %v950 = vmul.f32 %v750, %v896
  %v951 = vmul.f32 %v751, %v896
  %v952 = vmul.f32 %v752, %v896
  %v953 = vmul.f32 %v753, %v896
  %v954 = vmul.f32 %v754, %v896
  %v955 = vmul.f32 %v755, %v896
  %v956 = vmul.f32 %v756, %v896
  %v957 = vmul.f32 %v757, %v896
  %v958 = vmul.f32 %v758, %v896
  %v959 = vmul.f32 %v759, %v896
  %v960 = vmul.f32 %v760, %v896
  %v961 = vld [vmem:[%s2] sm:$0x1]
  %v963 = vlaneseq
  %v964 = vshrl.u32 %v963, 7
  %v965 = vsub.s32 0, %v964
  %v966 = vrot.slane %v961, %v965
  %v968 = vmul.f32 %v897, %v966
  %v969 = vmul.f32 %v898, %v966
  %v970 = vmul.f32 %v899, %v966
  %v971 = vmul.f32 %v900, %v966
  %v972 = vmul.f32 %v901, %v966
  %v973 = vmul.f32 %v902, %v966
  %v974 = vmul.f32 %v903, %v966
  %v975 = vmul.f32 %v904, %v966
  %v976 = vmul.f32 %v905, %v966
  %v977 = vmul.f32 %v906, %v966
  %v978 = vmul.f32 %v907, %v966
  %v979 = vmul.f32 %v908, %v966
  %v980 = vmul.f32 %v909, %v966
  %v981 = vmul.f32 %v910, %v966
  %v982 = vmul.f32 %v911, %v966
  %v983 = vmul.f32 %v912, %v966
  %v984 = vmul.f32 %v913, %v966
  %v985 = vmul.f32 %v914, %v966
  %v986 = vmul.f32 %v915, %v966
  %v987 = vmul.f32 %v916, %v966
  %v988 = vmul.f32 %v917, %v966
  %v989 = vmul.f32 %v918, %v966
  %v990 = vmul.f32 %v919, %v966
  %v991 = vmul.f32 %v920, %v966
  %v992 = vmul.f32 %v921, %v966
  %v993 = vmul.f32 %v922, %v966
  %v994 = vmul.f32 %v923, %v966
  %v995 = vmul.f32 %v924, %v966
  %v996 = vmul.f32 %v925, %v966
  %v997 = vmul.f32 %v926, %v966
  %v998 = vmul.f32 %v927, %v966
  %v999 = vmul.f32 %v928, %v966
  %v1000 = vmul.f32 %v929, %v966
  %v1001 = vmul.f32 %v930, %v966
  %v1002 = vmul.f32 %v931, %v966
  %v1003 = vmul.f32 %v932, %v966
  %v1004 = vmul.f32 %v933, %v966
  %v1005 = vmul.f32 %v934, %v966
  %v1006 = vmul.f32 %v935, %v966
  %v1007 = vmul.f32 %v936, %v966
  %v1008 = vmul.f32 %v937, %v966
  %v1009 = vmul.f32 %v938, %v966
  %v1010 = vmul.f32 %v939, %v966
  %v1011 = vmul.f32 %v940, %v966
  %v1012 = vmul.f32 %v941, %v966
  %v1013 = vmul.f32 %v942, %v966
  %v1014 = vmul.f32 %v943, %v966
  %v1015 = vmul.f32 %v944, %v966
  %v1016 = vmul.f32 %v945, %v966
  %v1017 = vmul.f32 %v946, %v966
  %v1018 = vmul.f32 %v947, %v966
  %v1019 = vmul.f32 %v948, %v966
  %v1020 = vmul.f32 %v949, %v966
  %v1021 = vmul.f32 %v950, %v966
  %v1022 = vmul.f32 %v951, %v966
  %v1023 = vmul.f32 %v952, %v966
  %v1024 = vmul.f32 %v953, %v966
  %v1025 = vmul.f32 %v954, %v966
  %v1026 = vmul.f32 %v955, %v966
  %v1027 = vmul.f32 %v956, %v966
  %v1028 = vmul.f32 %v957, %v966
  %v1029 = vmul.f32 %v958, %v966
  %v1030 = vmul.f32 %v959, %v966
  %v1031 = vmul.f32 %v960, %v966
  %v1032 = vld [vmem:[%s3] sm:$0x1]
  %v1034 = vlaneseq
  %v1035 = vshrl.u32 %v1034, 7
  %v1036 = vsub.s32 0, %v1035
  %v1037 = vrot.slane %v1032, %v1036
  %v1039 = vadd.f32 %v968, %v1037
  %v1040 = vadd.f32 %v969, %v1037
  %v1041 = vadd.f32 %v970, %v1037
  %v1042 = vadd.f32 %v971, %v1037
  %v1043 = vadd.f32 %v972, %v1037
  %v1044 = vadd.f32 %v973, %v1037
  %v1045 = vadd.f32 %v974, %v1037
  %v1046 = vadd.f32 %v975, %v1037
  %v1047 = vadd.f32 %v976, %v1037
  %v1048 = vadd.f32 %v977, %v1037
  %v1049 = vadd.f32 %v978, %v1037
  %v1050 = vadd.f32 %v979, %v1037
  %v1051 = vadd.f32 %v980, %v1037
  %v1052 = vadd.f32 %v981, %v1037
  %v1053 = vadd.f32 %v982, %v1037
  %v1054 = vadd.f32 %v983, %v1037
  %v1055 = vadd.f32 %v984, %v1037
  %v1056 = vadd.f32 %v985, %v1037
  %v1057 = vadd.f32 %v986, %v1037
  %v1058 = vadd.f32 %v987, %v1037
  %v1059 = vadd.f32 %v988, %v1037
  %v1060 = vadd.f32 %v989, %v1037
  %v1061 = vadd.f32 %v990, %v1037
  %v1062 = vadd.f32 %v991, %v1037
  %v1063 = vadd.f32 %v992, %v1037
  %v1064 = vadd.f32 %v993, %v1037
  %v1065 = vadd.f32 %v994, %v1037
  %v1066 = vadd.f32 %v995, %v1037
  %v1067 = vadd.f32 %v996, %v1037
  %v1068 = vadd.f32 %v997, %v1037
  %v1069 = vadd.f32 %v998, %v1037
  %v1070 = vadd.f32 %v999, %v1037
  %v1071 = vadd.f32 %v1000, %v1037
  %v1072 = vadd.f32 %v1001, %v1037
  %v1073 = vadd.f32 %v1002, %v1037
  %v1074 = vadd.f32 %v1003, %v1037
  %v1075 = vadd.f32 %v1004, %v1037
  %v1076 = vadd.f32 %v1005, %v1037
  %v1077 = vadd.f32 %v1006, %v1037
  %v1078 = vadd.f32 %v1007, %v1037
  %v1079 = vadd.f32 %v1008, %v1037
  %v1080 = vadd.f32 %v1009, %v1037
  %v1081 = vadd.f32 %v1010, %v1037
  %v1082 = vadd.f32 %v1011, %v1037
  %v1083 = vadd.f32 %v1012, %v1037
  %v1084 = vadd.f32 %v1013, %v1037
  %v1085 = vadd.f32 %v1014, %v1037
  %v1086 = vadd.f32 %v1015, %v1037
  %v1087 = vadd.f32 %v1016, %v1037
  %v1088 = vadd.f32 %v1017, %v1037
  %v1089 = vadd.f32 %v1018, %v1037
  %v1090 = vadd.f32 %v1019, %v1037
  %v1091 = vadd.f32 %v1020, %v1037
  %v1092 = vadd.f32 %v1021, %v1037
  %v1093 = vadd.f32 %v1022, %v1037
  %v1094 = vadd.f32 %v1023, %v1037
  %v1095 = vadd.f32 %v1024, %v1037
  %v1096 = vadd.f32 %v1025, %v1037
  %v1097 = vadd.f32 %v1026, %v1037
  %v1098 = vadd.f32 %v1027, %v1037
  %v1099 = vadd.f32 %v1028, %v1037
  %v1100 = vadd.f32 %v1029, %v1037
  %v1101 = vadd.f32 %v1030, %v1037
  %v1102 = vadd.f32 %v1031, %v1037
  %vm1103 = vcmp.ge.f32.partialorder %v1039, 0.0
  %vm1104 = vcmp.ge.f32.partialorder %v1040, 0.0
  %vm1105 = vcmp.ge.f32.partialorder %v1041, 0.0
  %vm1106 = vcmp.ge.f32.partialorder %v1042, 0.0
  %vm1107 = vcmp.ge.f32.partialorder %v1043, 0.0
  %vm1108 = vcmp.ge.f32.partialorder %v1044, 0.0
  %vm1109 = vcmp.ge.f32.partialorder %v1045, 0.0
  %vm1110 = vcmp.ge.f32.partialorder %v1046, 0.0
  %vm1111 = vcmp.ge.f32.partialorder %v1047, 0.0
  %vm1112 = vcmp.ge.f32.partialorder %v1048, 0.0
  %vm1113 = vcmp.ge.f32.partialorder %v1049, 0.0
  %vm1114 = vcmp.ge.f32.partialorder %v1050, 0.0
  %vm1115 = vcmp.ge.f32.partialorder %v1051, 0.0
  %vm1116 = vcmp.ge.f32.partialorder %v1052, 0.0
  %vm1117 = vcmp.ge.f32.partialorder %v1053, 0.0
  %vm1118 = vcmp.ge.f32.partialorder %v1054, 0.0
  %vm1119 = vcmp.ge.f32.partialorder %v1055, 0.0
  %vm1120 = vcmp.ge.f32.partialorder %v1056, 0.0
  %vm1121 = vcmp.ge.f32.partialorder %v1057, 0.0
  %vm1122 = vcmp.ge.f32.partialorder %v1058, 0.0
  %vm1123 = vcmp.ge.f32.partialorder %v1059, 0.0
  %vm1124 = vcmp.ge.f32.partialorder %v1060, 0.0
  %vm1125 = vcmp.ge.f32.partialorder %v1061, 0.0
  %vm1126 = vcmp.ge.f32.partialorder %v1062, 0.0
  %vm1127 = vcmp.ge.f32.partialorder %v1063, 0.0
  %vm1128 = vcmp.ge.f32.partialorder %v1064, 0.0
  %vm1129 = vcmp.ge.f32.partialorder %v1065, 0.0
  %vm1130 = vcmp.ge.f32.partialorder %v1066, 0.0
  %vm1131 = vcmp.ge.f32.partialorder %v1067, 0.0
  %vm1132 = vcmp.ge.f32.partialorder %v1068, 0.0
  %vm1133 = vcmp.ge.f32.partialorder %v1069, 0.0
  %vm1134 = vcmp.ge.f32.partialorder %v1070, 0.0
  %vm1135 = vcmp.ge.f32.partialorder %v1071, 0.0
  %vm1136 = vcmp.ge.f32.partialorder %v1072, 0.0
  %vm1137 = vcmp.ge.f32.partialorder %v1073, 0.0
  %vm1138 = vcmp.ge.f32.partialorder %v1074, 0.0
  %vm1139 = vcmp.ge.f32.partialorder %v1075, 0.0
  %vm1140 = vcmp.ge.f32.partialorder %v1076, 0.0
  %vm1141 = vcmp.ge.f32.partialorder %v1077, 0.0
  %vm1142 = vcmp.ge.f32.partialorder %v1078, 0.0
  %vm1143 = vcmp.ge.f32.partialorder %v1079, 0.0
  %vm1144 = vcmp.ge.f32.partialorder %v1080, 0.0
  %vm1145 = vcmp.ge.f32.partialorder %v1081, 0.0
  %vm1146 = vcmp.ge.f32.partialorder %v1082, 0.0
  %vm1147 = vcmp.ge.f32.partialorder %v1083, 0.0
  %vm1148 = vcmp.ge.f32.partialorder %v1084, 0.0
  %vm1149 = vcmp.ge.f32.partialorder %v1085, 0.0
  %vm1150 = vcmp.ge.f32.partialorder %v1086, 0.0
  %vm1151 = vcmp.ge.f32.partialorder %v1087, 0.0
  %vm1152 = vcmp.ge.f32.partialorder %v1088, 0.0
  %vm1153 = vcmp.ge.f32.partialorder %v1089, 0.0
  %vm1154 = vcmp.ge.f32.partialorder %v1090, 0.0
  %vm1155 = vcmp.ge.f32.partialorder %v1091, 0.0
  %vm1156 = vcmp.ge.f32.partialorder %v1092, 0.0
  %vm1157 = vcmp.ge.f32.partialorder %v1093, 0.0
  %vm1158 = vcmp.ge.f32.partialorder %v1094, 0.0
  %vm1159 = vcmp.ge.f32.partialorder %v1095, 0.0
  %vm1160 = vcmp.ge.f32.partialorder %v1096, 0.0
  %vm1161 = vcmp.ge.f32.partialorder %v1097, 0.0
  %vm1162 = vcmp.ge.f32.partialorder %v1098, 0.0
  %vm1163 = vcmp.ge.f32.partialorder %v1099, 0.0
  %vm1164 = vcmp.ge.f32.partialorder %v1100, 0.0
  %vm1165 = vcmp.ge.f32.partialorder %v1101, 0.0
  %vm1166 = vcmp.ge.f32.partialorder %v1102, 0.0
  %v1167 = vmul.f32 %v1039, 0.2
  %v1168 = vmul.f32 %v1040, 0.2
  %v1169 = vmul.f32 %v1041, 0.2
  %v1170 = vmul.f32 %v1042, 0.2
  %v1171 = vmul.f32 %v1043, 0.2
  %v1172 = vmul.f32 %v1044, 0.2
  %v1173 = vmul.f32 %v1045, 0.2
  %v1174 = vmul.f32 %v1046, 0.2
  %v1175 = vmul.f32 %v1047, 0.2
  %v1176 = vmul.f32 %v1048, 0.2
  %v1177 = vmul.f32 %v1049, 0.2
  %v1178 = vmul.f32 %v1050, 0.2
  %v1179 = vmul.f32 %v1051, 0.2
  %v1180 = vmul.f32 %v1052, 0.2
  %v1181 = vmul.f32 %v1053, 0.2
  %v1182 = vmul.f32 %v1054, 0.2
  %v1183 = vmul.f32 %v1055, 0.2
  %v1184 = vmul.f32 %v1056, 0.2
  %v1185 = vmul.f32 %v1057, 0.2
  %v1186 = vmul.f32 %v1058, 0.2
  %v1187 = vmul.f32 %v1059, 0.2
  %v1188 = vmul.f32 %v1060, 0.2
  %v1189 = vmul.f32 %v1061, 0.2
  %v1190 = vmul.f32 %v1062, 0.2
  %v1191 = vmul.f32 %v1063, 0.2
  %v1192 = vmul.f32 %v1064, 0.2
  %v1193 = vmul.f32 %v1065, 0.2
  %v1194 = vmul.f32 %v1066, 0.2
  %v1195 = vmul.f32 %v1067, 0.2
  %v1196 = vmul.f32 %v1068, 0.2
  %v1197 = vmul.f32 %v1069, 0.2
  %v1198 = vmul.f32 %v1070, 0.2
  %v1199 = vmul.f32 %v1071, 0.2
  %v1200 = vmul.f32 %v1072, 0.2
  %v1201 = vmul.f32 %v1073, 0.2
  %v1202 = vmul.f32 %v1074, 0.2
  %v1203 = vmul.f32 %v1075, 0.2
  %v1204 = vmul.f32 %v1076, 0.2
  %v1205 = vmul.f32 %v1077, 0.2
  %v1206 = vmul.f32 %v1078, 0.2
  %v1207 = vmul.f32 %v1079, 0.2
  %v1208 = vmul.f32 %v1080, 0.2
  %v1209 = vmul.f32 %v1081, 0.2
  %v1210 = vmul.f32 %v1082, 0.2
  %v1211 = vmul.f32 %v1083, 0.2
  %v1212 = vmul.f32 %v1084, 0.2
  %v1213 = vmul.f32 %v1085, 0.2
  %v1214 = vmul.f32 %v1086, 0.2
  %v1215 = vmul.f32 %v1087, 0.2
  %v1216 = vmul.f32 %v1088, 0.2
  %v1217 = vmul.f32 %v1089, 0.2
  %v1218 = vmul.f32 %v1090, 0.2
  %v1219 = vmul.f32 %v1091, 0.2
  %v1220 = vmul.f32 %v1092, 0.2
  %v1221 = vmul.f32 %v1093, 0.2
  %v1222 = vmul.f32 %v1094, 0.2
  %v1223 = vmul.f32 %v1095, 0.2
  %v1224 = vmul.f32 %v1096, 0.2
  %v1225 = vmul.f32 %v1097, 0.2
  %v1226 = vmul.f32 %v1098, 0.2
  %v1227 = vmul.f32 %v1099, 0.2
  %v1228 = vmul.f32 %v1100, 0.2
  %v1229 = vmul.f32 %v1101, 0.2
  %v1230 = vmul.f32 %v1102, 0.2
  %v1231 = vsel %vm1103, %v1039, %v1167
  %v1232 = vsel %vm1104, %v1040, %v1168
  %v1233 = vsel %vm1105, %v1041, %v1169
  %v1234 = vsel %vm1106, %v1042, %v1170
  %v1235 = vsel %vm1107, %v1043, %v1171
  %v1236 = vsel %vm1108, %v1044, %v1172
  %v1237 = vsel %vm1109, %v1045, %v1173
  %v1238 = vsel %vm1110, %v1046, %v1174
  %v1239 = vsel %vm1111, %v1047, %v1175
  %v1240 = vsel %vm1112, %v1048, %v1176
  %v1241 = vsel %vm1113, %v1049, %v1177
  %v1242 = vsel %vm1114, %v1050, %v1178
  %v1243 = vsel %vm1115, %v1051, %v1179
  %v1244 = vsel %vm1116, %v1052, %v1180
  %v1245 = vsel %vm1117, %v1053, %v1181
  %v1246 = vsel %vm1118, %v1054, %v1182
  %v1247 = vsel %vm1119, %v1055, %v1183
  %v1248 = vsel %vm1120, %v1056, %v1184
  %v1249 = vsel %vm1121, %v1057, %v1185
  %v1250 = vsel %vm1122, %v1058, %v1186
  %v1251 = vsel %vm1123, %v1059, %v1187
  %v1252 = vsel %vm1124, %v1060, %v1188
  %v1253 = vsel %vm1125, %v1061, %v1189
  %v1254 = vsel %vm1126, %v1062, %v1190
  %v1255 = vsel %vm1127, %v1063, %v1191
  %v1256 = vsel %vm1128, %v1064, %v1192
  %v1257 = vsel %vm1129, %v1065, %v1193
  %v1258 = vsel %vm1130, %v1066, %v1194
  %v1259 = vsel %vm1131, %v1067, %v1195
  %v1260 = vsel %vm1132, %v1068, %v1196
  %v1261 = vsel %vm1133, %v1069, %v1197
  %v1262 = vsel %vm1134, %v1070, %v1198
  %v1263 = vsel %vm1135, %v1071, %v1199
  %v1264 = vsel %vm1136, %v1072, %v1200
  %v1265 = vsel %vm1137, %v1073, %v1201
  %v1266 = vsel %vm1138, %v1074, %v1202
  %v1267 = vsel %vm1139, %v1075, %v1203
  %v1268 = vsel %vm1140, %v1076, %v1204
  %v1269 = vsel %vm1141, %v1077, %v1205
  %v1270 = vsel %vm1142, %v1078, %v1206
  %v1271 = vsel %vm1143, %v1079, %v1207
  %v1272 = vsel %vm1144, %v1080, %v1208
  %v1273 = vsel %vm1145, %v1081, %v1209
  %v1274 = vsel %vm1146, %v1082, %v1210
  %v1275 = vsel %vm1147, %v1083, %v1211
  %v1276 = vsel %vm1148, %v1084, %v1212
  %v1277 = vsel %vm1149, %v1085, %v1213
  %v1278 = vsel %vm1150, %v1086, %v1214
  %v1279 = vsel %vm1151, %v1087, %v1215
  %v1280 = vsel %vm1152, %v1088, %v1216
  %v1281 = vsel %vm1153, %v1089, %v1217
  %v1282 = vsel %vm1154, %v1090, %v1218
  %v1283 = vsel %vm1155, %v1091, %v1219
  %v1284 = vsel %vm1156, %v1092, %v1220
  %v1285 = vsel %vm1157, %v1093, %v1221
  %v1286 = vsel %vm1158, %v1094, %v1222
  %v1287 = vsel %vm1159, %v1095, %v1223
  %v1288 = vsel %vm1160, %v1096, %v1224
  %v1289 = vsel %vm1161, %v1097, %v1225
  %v1290 = vsel %vm1162, %v1098, %v1226
  %v1291 = vsel %vm1163, %v1099, %v1227
  %v1292 = vsel %vm1164, %v1100, %v1228
  %v1293 = vsel %vm1165, %v1101, %v1229
  %v1294 = vsel %vm1166, %v1102, %v1230
  %1295 = vst [vmem:[%s4] sm:$0xff] %v1231
  %1296 = vst [vmem:[%s4 + $0x8] sm:$0xff] %v1232
  %1297 = vst [vmem:[%s4 + $0x10] sm:$0xff] %v1233
  %1298 = vst [vmem:[%s4 + $0x18] sm:$0xff] %v1234
  %1299 = vst [vmem:[%s4 + $0x20] sm:$0xff] %v1235
  %1300 = vst [vmem:[%s4 + $0x28] sm:$0xff] %v1236
  %1301 = vst [vmem:[%s4 + $0x30] sm:$0xff] %v1237
  %1302 = vst [vmem:[%s4 + $0x38] sm:$0xff] %v1238
  %1303 = vst [vmem:[%s4 + $0x40] sm:$0xff] %v1239
  %1304 = vst [vmem:[%s4 + $0x48] sm:$0xff] %v1240
  %1305 = vst [vmem:[%s4 + $0x50] sm:$0xff] %v1241
  %1306 = vst [vmem:[%s4 + $0x58] sm:$0xff] %v1242
  %1307 = vst [vmem:[%s4 + $0x60] sm:$0xff] %v1243
  %1308 = vst [vmem:[%s4 + $0x68] sm:$0xff] %v1244
  %1309 = vst [vmem:[%s4 + $0x70] sm:$0xff] %v1245
  %1310 = vst [vmem:[%s4 + $0x78] sm:$0xff] %v1246
  %1311 = vst [vmem:[%s4 + $0x80] sm:$0xff] %v1247
  %1312 = vst [vmem:[%s4 + $0x88] sm:$0xff] %v1248
  %1313 = vst [vmem:[%s4 + $0x90] sm:$0xff] %v1249
  %1314 = vst [vmem:[%s4 + $0x98] sm:$0xff] %v1250
  %1315 = vst [vmem:[%s4 + $0xa0] sm:$0xff] %v1251
  %1316 = vst [vmem:[%s4 + $0xa8] sm:$0xff] %v1252
  %1317 = vst [vmem:[%s4 + $0xb0] sm:$0xff] %v1253
  %1318 = vst [vmem:[%s4 + $0xb8] sm:$0xff] %v1254
  %1319 = vst [vmem:[%s4 + $0xc0] sm:$0xff] %v1255
  %1320 = vst [vmem:[%s4 + $0xc8] sm:$0xff] %v1256
  %1321 = vst [vmem:[%s4 + $0xd0] sm:$0xff] %v1257
  %1322 = vst [vmem:[%s4 + $0xd8] sm:$0xff] %v1258
  %1323 = vst [vmem:[%s4 + $0xe0] sm:$0xff] %v1259
  %1324 = vst [vmem:[%s4 + $0xe8] sm:$0xff] %v1260
  %1325 = vst [vmem:[%s4 + $0xf0] sm:$0xff] %v1261
  %1326 = vst [vmem:[%s4 + $0xf8] sm:$0xff] %v1262
  %1327 = vst [vmem:[%s4 + $0x100] sm:$0xff] %v1263
  %1328 = vst [vmem:[%s4 + $0x108] sm:$0xff] %v1264
  %1329 = vst [vmem:[%s4 + $0x110] sm:$0xff] %v1265
  %1330 = vst [vmem:[%s4 + $0x118] sm:$0xff] %v1266
  %1331 = vst [vmem:[%s4 + $0x120] sm:$0xff] %v1267
  %1332 = vst [vmem:[%s4 + $0x128] sm:$0xff] %v1268
  %1333 = vst [vmem:[%s4 + $0x130] sm:$0xff] %v1269
  %1334 = vst [vmem:[%s4 + $0x138] sm:$0xff] %v1270
  %1335 = vst [vmem:[%s4 + $0x140] sm:$0xff] %v1271
  %1336 = vst [vmem:[%s4 + $0x148] sm:$0xff] %v1272
  %1337 = vst [vmem:[%s4 + $0x150] sm:$0xff] %v1273
  %1338 = vst [vmem:[%s4 + $0x158] sm:$0xff] %v1274
  %1339 = vst [vmem:[%s4 + $0x160] sm:$0xff] %v1275
  %1340 = vst [vmem:[%s4 + $0x168] sm:$0xff] %v1276
  %1341 = vst [vmem:[%s4 + $0x170] sm:$0xff] %v1277
  %1342 = vst [vmem:[%s4 + $0x178] sm:$0xff] %v1278
  %1343 = vst [vmem:[%s4 + $0x180] sm:$0xff] %v1279
  %1344 = vst [vmem:[%s4 + $0x188] sm:$0xff] %v1280
  %1345 = vst [vmem:[%s4 + $0x190] sm:$0xff] %v1281
  %1346 = vst [vmem:[%s4 + $0x198] sm:$0xff] %v1282
  %1347 = vst [vmem:[%s4 + $0x1a0] sm:$0xff] %v1283
  %1348 = vst [vmem:[%s4 + $0x1a8] sm:$0xff] %v1284
  %1349 = vst [vmem:[%s4 + $0x1b0] sm:$0xff] %v1285
  %1350 = vst [vmem:[%s4 + $0x1b8] sm:$0xff] %v1286
  %1351 = vst [vmem:[%s4 + $0x1c0] sm:$0xff] %v1287
  %1352 = vst [vmem:[%s4 + $0x1c8] sm:$0xff] %v1288
  %1353 = vst [vmem:[%s4 + $0x1d0] sm:$0xff] %v1289
  %1354 = vst [vmem:[%s4 + $0x1d8] sm:$0xff] %v1290
  %1355 = vst [vmem:[%s4 + $0x1e0] sm:$0xff] %v1291
  %1356 = vst [vmem:[%s4 + $0x1e8] sm:$0xff] %v1292
  %1357 = vst [vmem:[%s4 + $0x1f0] sm:$0xff] %v1293
  %1358 = vst [vmem:[%s4 + $0x1f8] sm:$0xff] %v1294
  // Predicated region
  $region18: #{discriminator_forward.6} parent=0 // pred_check
    _
  $region19: #{discriminator_forward.6} parent=0 // pred_check_branch
    %1360 = sbr.rel (0) target = $region21
  $region20: #{discriminator_forward.6} parent=0 // pred_region
    _
  $region21: #{discriminator_forward.6} parent=0 // pred_fallthru
    _
  // Predicated region
  $region22: #{discriminator_forward.6} parent=0 // pred_check
    _
  $region23: #{discriminator_forward.6} parent=0 // pred_check_branch
    %1362 = sbr.rel (0) target = $region25
  $region24: #{discriminator_forward.6} parent=0 // pred_region
    _
  $region25: #{discriminator_forward.6} parent=0 // pred_fallthru
    _

// kernel: discriminator_forward.7
$region0: #{discriminator_forward.7}
  #allocation0 [shape = 'u32[]', space=smem, size = 0x4, offset = 0x4, fixed_abs, tag = 'smem constant byte address 0x4 - core index']
  #allocation1 [shape = 'u32[144,128]{1,0:T(1,128)}', space=vmem, size = 0x12000, scoped, tag = 'internal scratch']
  %s0 = inlined_call_operand.vmem [shape: bf16[128,256], index: 0, kind: input, shape index: {}]
  %s1 = inlined_call_operand.vmem [shape: bf16[256,128], index: 1, kind: input, shape index: {}]
  %s2 = inlined_call_operand.vmem [shape: f32[1,128], index: 2, kind: input, shape index: {}]
  %s3 = inlined_call_operand.vmem [shape: f32[1,128], index: 3, kind: input, shape index: {}]
  %s4 = inlined_call_operand.vmem [shape: f32[128,128], index: 4, kind: output, shape index: {}]
  %s5 = sld [smem:[#allocation0]]
  $region26: #{discriminator_forward.7} parent=0
    _
  %s7 = ssub.s32 1, %s5
  %s8 = scalar_select 0, %s7, %s5
  // Predicated region
  $region2: #{discriminator_forward.7} parent=0 // pred_check
    _
  $region3: #{discriminator_forward.7} parent=0 // pred_check_branch
    %10 = sbr.rel (0) target = $region5
  $region4: #{discriminator_forward.7} parent=0 // pred_region
    _
  $region5: #{discriminator_forward.7} parent=0 // pred_fallthru
    _
  // Predicated region
  $region6: #{discriminator_forward.7} parent=0 // pred_check
    _
  $region7: #{discriminator_forward.7} parent=0 // pred_check_branch
    %12 = sbr.rel (0) target = $region9
  $region8: #{discriminator_forward.7} parent=0 // pred_region
    _
  $region9: #{discriminator_forward.7} parent=0 // pred_fallthru
    _
  // Predicated region
  $region10: #{discriminator_forward.7} parent=0 // pred_check
    _
  $region11: #{discriminator_forward.7} parent=0 // pred_check_branch
    %14 = sbr.rel (0) target = $region13
  $region12: #{discriminator_forward.7} parent=0 // pred_region
    _
  $region13: #{discriminator_forward.7} parent=0 // pred_fallthru
    _
  // Predicated region
  $region14: #{discriminator_forward.7} parent=0 // pred_check
    _
  $region15: #{discriminator_forward.7} parent=0 // pred_check_branch
    %16 = sbr.rel (0) target = $region17
  $region16: #{discriminator_forward.7} parent=0 // pred_region
    _
  $region17: #{discriminator_forward.7} parent=0 // pred_fallthru
    _
  %v18 = vld [vmem:[%s0] sm:$0xff]
  %v19 = vld [vmem:[%s0 + $0x8] sm:$0xff]
  %v20 = vld [vmem:[%s0 + $0x10] sm:$0xff]
  %v21 = vld [vmem:[%s0 + $0x18] sm:$0xff]
  %v22 = vld [vmem:[%s0 + $0x20] sm:$0xff]
  %v23 = vld [vmem:[%s0 + $0x28] sm:$0xff]
  %v24 = vld [vmem:[%s0 + $0x30] sm:$0xff]
  %v25 = vld [vmem:[%s0 + $0x38] sm:$0xff]
  %v26 = vld [vmem:[%s0 + $0x40] sm:$0xff]
  %v27 = vld [vmem:[%s0 + $0x48] sm:$0xff]
  %v28 = vld [vmem:[%s0 + $0x50] sm:$0xff]
  %v29 = vld [vmem:[%s0 + $0x58] sm:$0xff]
  %v30 = vld [vmem:[%s0 + $0x60] sm:$0xff]
  %v31 = vld [vmem:[%s0 + $0x68] sm:$0xff]
  %v32 = vld [vmem:[%s0 + $0x70] sm:$0xff]
  %v33 = vld [vmem:[%s0 + $0x78] sm:$0xff]
  %v34 = vld [vmem:[%s1] sm:$0xf]
  %v35 = vld [vmem:[%s1 + $0x4] sm:$0xf]
  %v36 = vld [vmem:[%s1 + $0x8] sm:$0xf]
  %v37 = vld [vmem:[%s1 + $0xc] sm:$0xf]
  %v38 = vld [vmem:[%s1 + $0x10] sm:$0xf]
  %v39 = vld [vmem:[%s1 + $0x14] sm:$0xf]
  %v40 = vld [vmem:[%s1 + $0x18] sm:$0xf]
  %v41 = vld [vmem:[%s1 + $0x1c] sm:$0xf]
  %v42 = vld [vmem:[%s1 + $0x20] sm:$0xf]
  %v43 = vld [vmem:[%s1 + $0x24] sm:$0xf]
  %v44 = vld [vmem:[%s1 + $0x28] sm:$0xf]
  %v45 = vld [vmem:[%s1 + $0x2c] sm:$0xf]
  %v46 = vld [vmem:[%s1 + $0x30] sm:$0xf]
  %v47 = vld [vmem:[%s1 + $0x34] sm:$0xf]
  %v48 = vld [vmem:[%s1 + $0x38] sm:$0xf]
  %v49 = vld [vmem:[%s1 + $0x3c] sm:$0xf]
  %v50 = vld [vmem:[%s1 + $0x40] sm:$0xf]
  %v51 = vld [vmem:[%s1 + $0x44] sm:$0xf]
  %v52 = vld [vmem:[%s1 + $0x48] sm:$0xf]
  %v53 = vld [vmem:[%s1 + $0x4c] sm:$0xf]
  %v54 = vld [vmem:[%s1 + $0x50] sm:$0xf]
  %v55 = vld [vmem:[%s1 + $0x54] sm:$0xf]
  %v56 = vld [vmem:[%s1 + $0x58] sm:$0xf]
  %v57 = vld [vmem:[%s1 + $0x5c] sm:$0xf]
  %v58 = vld [vmem:[%s1 + $0x60] sm:$0xf]
  %v59 = vld [vmem:[%s1 + $0x64] sm:$0xf]
  %v60 = vld [vmem:[%s1 + $0x68] sm:$0xf]
  %v61 = vld [vmem:[%s1 + $0x6c] sm:$0xf]
  %v62 = vld [vmem:[%s1 + $0x70] sm:$0xf]
  %v63 = vld [vmem:[%s1 + $0x74] sm:$0xf]
  %v64 = vld [vmem:[%s1 + $0x78] sm:$0xf]
  %v65 = vld [vmem:[%s1 + $0x7c] sm:$0xf]
  %v82 = vunpack.c.l.b16 %v18
  %v83 = vunpack.c.h.b16 %v18
  %v84 = vunpack.c.l.b16 %v19
  %v85 = vunpack.c.h.b16 %v19
  %v86 = vunpack.c.l.b16 %v20
  %v87 = vunpack.c.h.b16 %v20
  %v88 = vunpack.c.l.b16 %v21
  %v89 = vunpack.c.h.b16 %v21
  %v90 = vunpack.c.l.b16 %v22
  %v91 = vunpack.c.h.b16 %v22
  %v92 = vunpack.c.l.b16 %v23
  %v93 = vunpack.c.h.b16 %v23
  %v94 = vunpack.c.l.b16 %v24
  %v95 = vunpack.c.h.b16 %v24
  %v96 = vunpack.c.l.b16 %v25
  %v97 = vunpack.c.h.b16 %v25
  %v98 = vunpack.c.l.b16 %v26
  %v99 = vunpack.c.h.b16 %v26
  %v100 = vunpack.c.l.b16 %v27
  %v101 = vunpack.c.h.b16 %v27
  %v102 = vunpack.c.l.b16 %v28
  %v103 = vunpack.c.h.b16 %v28
  %v104 = vunpack.c.l.b16 %v29
  %v105 = vunpack.c.h.b16 %v29
  %v106 = vunpack.c.l.b16 %v30
  %v107 = vunpack.c.h.b16 %v30
  %v108 = vunpack.c.l.b16 %v31
  %v109 = vunpack.c.h.b16 %v31
  %v110 = vunpack.c.l.b16 %v32
  %v111 = vunpack.c.h.b16 %v32
  %v112 = vunpack.c.l.b16 %v33
  %v113 = vunpack.c.h.b16 %v33
  %v114 = vpack.c.b16 %v84, %v82
  %v115 = vpack.c.b16 %v85, %v83
  %v116 = vpack.c.b16 %v88, %v86
  %v117 = vpack.c.b16 %v89, %v87
  %v118 = vpack.c.b16 %v92, %v90
  %v119 = vpack.c.b16 %v93, %v91
  %v120 = vpack.c.b16 %v96, %v94
  %v121 = vpack.c.b16 %v97, %v95
  %v122 = vpack.c.b16 %v100, %v98
  %v123 = vpack.c.b16 %v101, %v99
  %v124 = vpack.c.b16 %v104, %v102
  %v125 = vpack.c.b16 %v105, %v103
  %v126 = vpack.c.b16 %v108, %v106
  %v127 = vpack.c.b16 %v109, %v107
  %v128 = vpack.c.b16 %v112, %v110
  %v129 = vpack.c.b16 %v113, %v111
  %v178 = vunpack.c.l.b16 %v34
  %v179 = vunpack.c.l.b16 %v35
  %v180 = vunpack.c.l.b16 %v36
  %v181 = vunpack.c.l.b16 %v37
  %v182 = vunpack.c.l.b16 %v38
  %v183 = vunpack.c.l.b16 %v39
  %v184 = vunpack.c.l.b16 %v40
  %v185 = vunpack.c.l.b16 %v41
  %v186 = vunpack.c.l.b16 %v42
  %v187 = vunpack.c.l.b16 %v43
  %v188 = vunpack.c.l.b16 %v44
  %v189 = vunpack.c.l.b16 %v45
  %v190 = vunpack.c.l.b16 %v46
  %v191 = vunpack.c.l.b16 %v47
  %v192 = vunpack.c.l.b16 %v48
  %v193 = vunpack.c.l.b16 %v49
  %v194 = vunpack.c.l.b16 %v50
  %v195 = vunpack.c.l.b16 %v51
  %v196 = vunpack.c.l.b16 %v52
  %v197 = vunpack.c.l.b16 %v53
  %v198 = vunpack.c.l.b16 %v54
  %v199 = vunpack.c.l.b16 %v55
  %v200 = vunpack.c.l.b16 %v56
  %v201 = vunpack.c.l.b16 %v57
  %v202 = vunpack.c.l.b16 %v58
  %v203 = vunpack.c.l.b16 %v59
  %v204 = vunpack.c.l.b16 %v60
  %v205 = vunpack.c.l.b16 %v61
  %v206 = vunpack.c.l.b16 %v62
  %v207 = vunpack.c.l.b16 %v63
  %v208 = vunpack.c.l.b16 %v64
  %v209 = vunpack.c.l.b16 %v65
  %v210 = vpack.c.b16 %v179, %v178
  %v211 = vpack.c.b16 %v181, %v180
  %v212 = vpack.c.b16 %v183, %v182
  %v213 = vpack.c.b16 %v185, %v184
  %v214 = vpack.c.b16 %v187, %v186
  %v215 = vpack.c.b16 %v189, %v188
  %v216 = vpack.c.b16 %v191, %v190
  %v217 = vpack.c.b16 %v193, %v192
  %v218 = vpack.c.b16 %v195, %v194
  %v219 = vpack.c.b16 %v197, %v196
  %v220 = vpack.c.b16 %v199, %v198
  %v221 = vpack.c.b16 %v201, %v200
  %v222 = vpack.c.b16 %v203, %v202
  %v223 = vpack.c.b16 %v205, %v204
  %v224 = vpack.c.b16 %v207, %v206
  %v225 = vpack.c.b16 %v209, %v208
  %242 = vmatprep.subr.bf16.mxu0 0
  %243 = vmatpush1.bf16.msra.mxu0 %v217
  %244 = vmatprep.subr.bf16.mxu0 0
  %245 = vmatpush1.bf16.msra.mxu0 %v216
  %246 = vmatprep.subr.bf16.mxu0 0
  %247 = vmatpush1.bf16.msra.mxu0 %v215
  %248 = vmatprep.subr.bf16.mxu0 0
  %249 = vmatpush1.bf16.msra.mxu0 %v214
  %250 = vmatprep.subr.bf16.mxu0 0
  %251 = vmatpush1.bf16.msra.mxu0 %v213
  %252 = vmatprep.subr.bf16.mxu0 0
  %253 = vmatpush1.bf16.msra.mxu0 %v212
  %254 = vmatprep.subr.bf16.mxu0 0
  %255 = vmatpush1.bf16.msra.mxu0 %v211
  %256 = vmatprep.subr.bf16.mxu0 0
  %257 = vmatpush1.bf16.msra.mxu0 %v210
  %258 = vmatprep.subr.bf16.mxu0 0
  %259 = vmatpush2.bf16.msra.mxu0 %v225
  %260 = vmatprep.subr.bf16.mxu0 0
  %261 = vmatpush2.bf16.msra.mxu0 %v224
  %262 = vmatprep.subr.bf16.mxu0 0
  %263 = vmatpush2.bf16.msra.mxu0 %v223
  %264 = vmatprep.subr.bf16.mxu0 0
  %265 = vmatpush2.bf16.msra.mxu0 %v222
  %266 = vmatprep.subr.bf16.mxu0 0
  %267 = vmatpush2.bf16.msra.mxu0 %v221
  %268 = vmatprep.subr.bf16.mxu0 0
  %269 = vmatpush2.bf16.msra.mxu0 %v220
  %270 = vmatprep.subr.bf16.mxu0 0
  %271 = vmatpush2.bf16.msra.mxu0 %v219
  %272 = vmatprep.subr.bf16.mxu0 0
  %273 = vmatpush2.bf16.msra.mxu0 %v218
  %274 = vmatprep.mubr.bf16.mxu0 %v115
  %275 = vmatmul.mubr.bf16.gmra.mxu0 %v114
  %v276 = vpop.f32.mrf.mxu0
  %v277 = vadd.f32 0.0, %v276
  %v278 = vpop.f32.mrf.mxu0
  %v279 = vpop.f32.mrf.mxu0
  %v280 = vadd.f32 0.0, %v279
  %v281 = vpop.f32.mrf.mxu0
  %282 = vmatprep.mubr.bf16.mxu0 %v117
  %283 = vmatmul.mubr.bf16.gmra.mxu0 %v116
  %v284 = vpop.f32.mrf.mxu0
  %v285 = vadd.f32 0.0, %v284
  %v286 = vpop.f32.mrf.mxu0
  %v287 = vpop.f32.mrf.mxu0
  %v288 = vadd.f32 0.0, %v287
  %v289 = vpop.f32.mrf.mxu0
  %290 = vmatprep.mubr.bf16.mxu0 %v119
  %291 = vmatmul.mubr.bf16.gmra.mxu0 %v118
  %v292 = vpop.f32.mrf.mxu0
  %v293 = vadd.f32 0.0, %v292
  %v294 = vpop.f32.mrf.mxu0
  %v295 = vpop.f32.mrf.mxu0
  %v296 = vadd.f32 0.0, %v295
  %v297 = vpop.f32.mrf.mxu0
  %298 = vmatprep.mubr.bf16.mxu0 %v121
  %299 = vmatmul.mubr.bf16.gmra.mxu0 %v120
  %v300 = vpop.f32.mrf.mxu0
  %v301 = vadd.f32 0.0, %v300
  %v302 = vpop.f32.mrf.mxu0
  %v303 = vpop.f32.mrf.mxu0
  %v304 = vadd.f32 0.0, %v303
  %v305 = vpop.f32.mrf.mxu0
  %306 = vmatprep.mubr.bf16.mxu0 %v123
  %307 = vmatmul.mubr.bf16.gmra.mxu0 %v122
  %v308 = vpop.f32.mrf.mxu0
  %v309 = vadd.f32 0.0, %v308
  %v310 = vpop.f32.mrf.mxu0
  %v311 = vpop.f32.mrf.mxu0
  %v312 = vadd.f32 0.0, %v311
  %v313 = vpop.f32.mrf.mxu0
  %314 = vmatprep.mubr.bf16.mxu0 %v125
  %315 = vmatmul.mubr.bf16.gmra.mxu0 %v124
  %v316 = vpop.f32.mrf.mxu0
  %v317 = vadd.f32 0.0, %v316
  %v318 = vpop.f32.mrf.mxu0
  %v319 = vpop.f32.mrf.mxu0
  %v320 = vadd.f32 0.0, %v319
  %v321 = vpop.f32.mrf.mxu0
  %322 = vmatprep.mubr.bf16.mxu0 %v127
  %323 = vmatmul.mubr.bf16.gmra.mxu0 %v126
  %v324 = vpop.f32.mrf.mxu0
  %v325 = vadd.f32 0.0, %v324
  %v326 = vpop.f32.mrf.mxu0
  %v327 = vpop.f32.mrf.mxu0
  %v328 = vadd.f32 0.0, %v327
  %v329 = vpop.f32.mrf.mxu0
  %330 = vmatprep.mubr.bf16.mxu0 %v129
  %331 = vmatmul.mubr.bf16.gmra.mxu0 %v128
  %v332 = vpop.f32.mrf.mxu0
  %v333 = vadd.f32 0.0, %v332
  %v334 = vpop.f32.mrf.mxu0
  %v335 = vpop.f32.mrf.mxu0
  %v336 = vadd.f32 0.0, %v335
  %v337 = vpop.f32.mrf.mxu0
  %338 = vdwg.mxu0
  %v339 = vadd.f32 %v277, %v280
  %v340 = vadd.f32 %v339, %v285
  %v341 = vadd.f32 %v340, %v288
  %v342 = vadd.f32 %v341, %v293
  %v343 = vadd.f32 %v342, %v296
  %v344 = vadd.f32 %v343, %v301
  %v345 = vadd.f32 %v344, %v304
  %v346 = vadd.f32 %v345, %v309
  %v347 = vadd.f32 %v346, %v312
  %v348 = vadd.f32 %v347, %v317
  %v349 = vadd.f32 %v348, %v320
  %v350 = vadd.f32 %v349, %v325
  %v351 = vadd.f32 %v350, %v328
  %v352 = vadd.f32 %v351, %v333
  %v353 = vadd.f32 %v352, %v336
  %v354 = vrot.slane %v353, 4
  %v355 = vadd.f32 %v353, %v354
  %v356 = vrot.slane %v355, 2
  %v357 = vadd.f32 %v355, %v356
  %v358 = vrot.slane %v357, 1
  %v359 = vadd.f32 %v357, %v358
  %v360 = vmul.f32 %v359, 0.0078125
  %v361 = vsub.f32 %v277, %v360
  %v362 = vsub.f32 %v280, %v360
  %v363 = vsub.f32 %v285, %v360
  %v364 = vsub.f32 %v288, %v360
  %v365 = vsub.f32 %v293, %v360
  %v366 = vsub.f32 %v296, %v360
  %v367 = vsub.f32 %v301, %v360
  %v368 = vsub.f32 %v304, %v360
  %v369 = vsub.f32 %v309, %v360
  %v370 = vsub.f32 %v312, %v360
  %v371 = vsub.f32 %v317, %v360
  %v372 = vsub.f32 %v320, %v360
  %v373 = vsub.f32 %v325, %v360
  %v374 = vsub.f32 %v328, %v360
  %v375 = vsub.f32 %v333, %v360
  %v376 = vsub.f32 %v336, %v360
  %v377 = vmul.f32 %v361, %v361
  %v378 = vmul.f32 %v362, %v362
  %v379 = vmul.f32 %v363, %v363
  %v380 = vmul.f32 %v364, %v364
  %v381 = vmul.f32 %v365, %v365
  %v382 = vmul.f32 %v366, %v366
  %v383 = vmul.f32 %v367, %v367
  %v384 = vmul.f32 %v368, %v368
  %v385 = vmul.f32 %v369, %v369
  %v386 = vmul.f32 %v370, %v370
  %v387 = vmul.f32 %v371, %v371
  %v388 = vmul.f32 %v372, %v372
  %v389 = vmul.f32 %v373, %v373
  %v390 = vmul.f32 %v374, %v374
  %v391 = vmul.f32 %v375, %v375
  %v392 = vmul.f32 %v376, %v376
  %v393 = vadd.f32 %v377, %v378
  %v394 = vadd.f32 %v393, %v379
  %v395 = vadd.f32 %v394, %v380
  %v396 = vadd.f32 %v395, %v381
  %v397 = vadd.f32 %v396, %v382
  %v398 = vadd.f32 %v397, %v383
  %v399 = vadd.f32 %v398, %v384
  %v400 = vadd.f32 %v399, %v385
  %v401 = vadd.f32 %v400, %v386
  %v402 = vadd.f32 %v401, %v387
  %v403 = vadd.f32 %v402, %v388
  %v404 = vadd.f32 %v403, %v389
  %v405 = vadd.f32 %v404, %v390
  %v406 = vadd.f32 %v405, %v391
  %v407 = vadd.f32 %v406, %v392
  %v408 = vrot.slane %v407, 4
  %v409 = vadd.f32 %v407, %v408
  %v410 = vrot.slane %v409, 2
  %v411 = vadd.f32 %v409, %v410
  %v412 = vrot.slane %v411, 1
  %v413 = vadd.f32 %v411, %v412
  %v414 = vmul.f32 %v413, 0.0078125
  %v415 = vadd.f32 %v414, 1e-05
  %v416 = vrsqrt.pop %v415
  %v417 = vmul.f32 %v361, %v416
  %v418 = vmul.f32 %v362, %v416
  %v419 = vmul.f32 %v363, %v416
  %v420 = vmul.f32 %v364, %v416
  %v421 = vmul.f32 %v365, %v416
  %v422 = vmul.f32 %v366, %v416
  %v423 = vmul.f32 %v367, %v416
  %v424 = vmul.f32 %v368, %v416
  %v425 = vmul.f32 %v369, %v416
  %v426 = vmul.f32 %v370, %v416
  %v427 = vmul.f32 %v371, %v416
  %v428 = vmul.f32 %v372, %v416
  %v429 = vmul.f32 %v373, %v416
  %v430 = vmul.f32 %v374, %v416
  %v431 = vmul.f32 %v375, %v416
  %v432 = vmul.f32 %v376, %v416
  %v433 = vld [vmem:[%s2] sm:$0x1]
  %v435 = vlaneseq
  %v436 = vshrl.u32 %v435, 7
  %v437 = vsub.s32 0, %v436
  %v438 = vrot.slane %v433, %v437
  %v440 = vmul.f32 %v417, %v438
  %v441 = vmul.f32 %v418, %v438
  %v442 = vmul.f32 %v419, %v438
  %v443 = vmul.f32 %v420, %v438
  %v444 = vmul.f32 %v421, %v438
  %v445 = vmul.f32 %v422, %v438
  %v446 = vmul.f32 %v423, %v438
  %v447 = vmul.f32 %v424, %v438
  %v448 = vmul.f32 %v425, %v438
  %v449 = vmul.f32 %v426, %v438
  %v450 = vmul.f32 %v427, %v438
  %v451 = vmul.f32 %v428, %v438
  %v452 = vmul.f32 %v429, %v438
  %v453 = vmul.f32 %v430, %v438
  %v454 = vmul.f32 %v431, %v438
  %v455 = vmul.f32 %v432, %v438
  %v456 = vld [vmem:[%s3] sm:$0x1]
  %v458 = vlaneseq
  %v459 = vshrl.u32 %v458, 7
  %v460 = vsub.s32 0, %v459
  %v461 = vrot.slane %v456, %v460
  %v463 = vadd.f32 %v440, %v461
  %v464 = vadd.f32 %v441, %v461
  %v465 = vadd.f32 %v442, %v461
  %v466 = vadd.f32 %v443, %v461
  %v467 = vadd.f32 %v444, %v461
  %v468 = vadd.f32 %v445, %v461
  %v469 = vadd.f32 %v446, %v461
  %v470 = vadd.f32 %v447, %v461
  %v471 = vadd.f32 %v448, %v461
  %v472 = vadd.f32 %v449, %v461
  %v473 = vadd.f32 %v450, %v461
  %v474 = vadd.f32 %v451, %v461
  %v475 = vadd.f32 %v452, %v461
  %v476 = vadd.f32 %v453, %v461
  %v477 = vadd.f32 %v454, %v461
  %v478 = vadd.f32 %v455, %v461
  %vm479 = vcmp.ge.f32.partialorder %v463, 0.0
  %vm480 = vcmp.ge.f32.partialorder %v464, 0.0
  %vm481 = vcmp.ge.f32.partialorder %v465, 0.0
  %vm482 = vcmp.ge.f32.partialorder %v466, 0.0
  %vm483 = vcmp.ge.f32.partialorder %v467, 0.0
  %vm484 = vcmp.ge.f32.partialorder %v468, 0.0
  %vm485 = vcmp.ge.f32.partialorder %v469, 0.0
  %vm486 = vcmp.ge.f32.partialorder %v470, 0.0
  %vm487 = vcmp.ge.f32.partialorder %v471, 0.0
  %vm488 = vcmp.ge.f32.partialorder %v472, 0.0
  %vm489 = vcmp.ge.f32.partialorder %v473, 0.0
  %vm490 = vcmp.ge.f32.partialorder %v474, 0.0
  %vm491 = vcmp.ge.f32.partialorder %v475, 0.0
  %vm492 = vcmp.ge.f32.partialorder %v476, 0.0
  %vm493 = vcmp.ge.f32.partialorder %v477, 0.0
  %vm494 = vcmp.ge.f32.partialorder %v478, 0.0
  %v495 = vmul.f32 %v463, 0.2
  %v496 = vmul.f32 %v464, 0.2
  %v497 = vmul.f32 %v465, 0.2
  %v498 = vmul.f32 %v466, 0.2
  %v499 = vmul.f32 %v467, 0.2
  %v500 = vmul.f32 %v468, 0.2
  %v501 = vmul.f32 %v469, 0.2
  %v502 = vmul.f32 %v470, 0.2
  %v503 = vmul.f32 %v471, 0.2
  %v504 = vmul.f32 %v472, 0.2
  %v505 = vmul.f32 %v473, 0.2
  %v506 = vmul.f32 %v474, 0.2
  %v507 = vmul.f32 %v475, 0.2
  %v508 = vmul.f32 %v476, 0.2
  %v509 = vmul.f32 %v477, 0.2
  %v510 = vmul.f32 %v478, 0.2
  %v511 = vsel %vm479, %v463, %v495
  %v512 = vsel %vm480, %v464, %v496
  %v513 = vsel %vm481, %v465, %v497
  %v514 = vsel %vm482, %v466, %v498
  %v515 = vsel %vm483, %v467, %v499
  %v516 = vsel %vm484, %v468, %v500
  %v517 = vsel %vm485, %v469, %v501
  %v518 = vsel %vm486, %v470, %v502
  %v519 = vsel %vm487, %v471, %v503
  %v520 = vsel %vm488, %v472, %v504
  %v521 = vsel %vm489, %v473, %v505
  %v522 = vsel %vm490, %v474, %v506
  %v523 = vsel %vm491, %v475, %v507
  %v524 = vsel %vm492, %v476, %v508
  %v525 = vsel %vm493, %v477, %v509
  %v526 = vsel %vm494, %v478, %v510
  %527 = vst [vmem:[%s4] sm:$0xff] %v511
  %528 = vst [vmem:[%s4 + $0x8] sm:$0xff] %v512
  %529 = vst [vmem:[%s4 + $0x10] sm:$0xff] %v513
  %530 = vst [vmem:[%s4 + $0x18] sm:$0xff] %v514
  %531 = vst [vmem:[%s4 + $0x20] sm:$0xff] %v515
  %532 = vst [vmem:[%s4 + $0x28] sm:$0xff] %v516
  %533 = vst [vmem:[%s4 + $0x30] sm:$0xff] %v517
  %534 = vst [vmem:[%s4 + $0x38] sm:$0xff] %v518
  %535 = vst [vmem:[%s4 + $0x40] sm:$0xff] %v519
  %536 = vst [vmem:[%s4 + $0x48] sm:$0xff] %v520
  %537 = vst [vmem:[%s4 + $0x50] sm:$0xff] %v521
  %538 = vst [vmem:[%s4 + $0x58] sm:$0xff] %v522
  %539 = vst [vmem:[%s4 + $0x60] sm:$0xff] %v523
  %540 = vst [vmem:[%s4 + $0x68] sm:$0xff] %v524
  %541 = vst [vmem:[%s4 + $0x70] sm:$0xff] %v525
  %542 = vst [vmem:[%s4 + $0x78] sm:$0xff] %v526
  // Predicated region
  $region18: #{discriminator_forward.7} parent=0 // pred_check
    _
  $region19: #{discriminator_forward.7} parent=0 // pred_check_branch
    %544 = sbr.rel (0) target = $region21
  $region20: #{discriminator_forward.7} parent=0 // pred_region
    _
  $region21: #{discriminator_forward.7} parent=0 // pred_fallthru
    _
  // Predicated region
  $region22: #{discriminator_forward.7} parent=0 // pred_check
    _
  $region23: #{discriminator_forward.7} parent=0 // pred_check_branch
    %546 = sbr.rel (0) target = $region25
  $region24: #{discriminator_forward.7} parent=0 // pred_region
    _
  $region25: #{discriminator_forward.7} parent=0 // pred_fallthru
    _

// kernel: discriminator_forward.8
$region0: #{discriminator_forward.8}
  #allocation0 [shape = 'u32[]', space=smem, size = 0x4, offset = 0x4, fixed_abs, tag = 'smem constant byte address 0x4 - core index']
  #allocation1 [shape = 'u32[144,128]{1,0:T(1,128)}', space=vmem, size = 0x12000, scoped, tag = 'internal scratch']
  %s0 = inlined_call_operand.vmem [shape: bf16[32,512], index: 0, kind: input, shape index: {}]
  %s1 = inlined_call_operand.vmem [shape: bf16[512,128], index: 1, kind: input, shape index: {}]
  %s2 = inlined_call_operand.vmem [shape: f32[1,128], index: 2, kind: input, shape index: {}]
  %s3 = inlined_call_operand.vmem [shape: f32[1,128], index: 3, kind: input, shape index: {}]
  %s4 = inlined_call_operand.vmem [shape: f32[32,128], index: 4, kind: output, shape index: {}]
  %s5 = sld [smem:[#allocation0]]
  $region26: #{discriminator_forward.8} parent=0
    _
  %s7 = ssub.s32 1, %s5
  %s8 = scalar_select 0, %s7, %s5
  // Predicated region
  $region2: #{discriminator_forward.8} parent=0 // pred_check
    _
  $region3: #{discriminator_forward.8} parent=0 // pred_check_branch
    %10 = sbr.rel (0) target = $region5
  $region4: #{discriminator_forward.8} parent=0 // pred_region
    _
  $region5: #{discriminator_forward.8} parent=0 // pred_fallthru
    _
  // Predicated region
  $region6: #{discriminator_forward.8} parent=0 // pred_check
    _
  $region7: #{discriminator_forward.8} parent=0 // pred_check_branch
    %12 = sbr.rel (0) target = $region9
  $region8: #{discriminator_forward.8} parent=0 // pred_region
    _
  $region9: #{discriminator_forward.8} parent=0 // pred_fallthru
    _
  // Predicated region
  $region10: #{discriminator_forward.8} parent=0 // pred_check
    _
  $region11: #{discriminator_forward.8} parent=0 // pred_check_branch
    %14 = sbr.rel (0) target = $region13
  $region12: #{discriminator_forward.8} parent=0 // pred_region
    _
  $region13: #{discriminator_forward.8} parent=0 // pred_fallthru
    _
  // Predicated region
  $region14: #{discriminator_forward.8} parent=0 // pred_check
    _
  $region15: #{discriminator_forward.8} parent=0 // pred_check_branch
    %16 = sbr.rel (0) target = $region17
  $region16: #{discriminator_forward.8} parent=0 // pred_region
    _
  $region17: #{discriminator_forward.8} parent=0 // pred_fallthru
    _
  %v18 = vld [vmem:[%s0] sm:$0xff]
  %v19 = vld [vmem:[%s0 + $0x8] sm:$0xff]
  %v20 = vld [vmem:[%s0 + $0x10] sm:$0xff]
  %v21 = vld [vmem:[%s0 + $0x18] sm:$0xff]
  %v22 = vld [vmem:[%s0 + $0x20] sm:$0xff]
  %v23 = vld [vmem:[%s0 + $0x28] sm:$0xff]
  %v24 = vld [vmem:[%s0 + $0x30] sm:$0xff]
  %v25 = vld [vmem:[%s0 + $0x38] sm:$0xff]
  %v26 = vld [vmem:[%s1] sm:$0xf]
  %v27 = vld [vmem:[%s1 + $0x4] sm:$0xf]
  %v28 = vld [vmem:[%s1 + $0x8] sm:$0xf]
  %v29 = vld [vmem:[%s1 + $0xc] sm:$0xf]
  %v30 = vld [vmem:[%s1 + $0x10] sm:$0xf]
  %v31 = vld [vmem:[%s1 + $0x14] sm:$0xf]
  %v32 = vld [vmem:[%s1 + $0x18] sm:$0xf]
  %v33 = vld [vmem:[%s1 + $0x1c] sm:$0xf]
  %v34 = vld [vmem:[%s1 + $0x20] sm:$0xf]
  %v35 = vld [vmem:[%s1 + $0x24] sm:$0xf]
  %v36 = vld [vmem:[%s1 + $0x28] sm:$0xf]
  %v37 = vld [vmem:[%s1 + $0x2c] sm:$0xf]
  %v38 = vld [vmem:[%s1 + $0x30] sm:$0xf]
  %v39 = vld [vmem:[%s1 + $0x34] sm:$0xf]
  %v40 = vld [vmem:[%s1 + $0x38] sm:$0xf]
  %v41 = vld [vmem:[%s1 + $0x3c] sm:$0xf]
  %v42 = vld [vmem:[%s1 + $0x40] sm:$0xf]
  %v43 = vld [vmem:[%s1 + $0x44] sm:$0xf]
  %v44 = vld [vmem:[%s1 + $0x48] sm:$0xf]
  %v45 = vld [vmem:[%s1 + $0x4c] sm:$0xf]
  %v46 = vld [vmem:[%s1 + $0x50] sm:$0xf]
  %v47 = vld [vmem:[%s1 + $0x54] sm:$0xf]
  %v48 = vld [vmem:[%s1 + $0x58] sm:$0xf]
  %v49 = vld [vmem:[%s1 + $0x5c] sm:$0xf]
  %v50 = vld [vmem:[%s1 + $0x60] sm:$0xf]
  %v51 = vld [vmem:[%s1 + $0x64] sm:$0xf]
  %v52 = vld [vmem:[%s1 + $0x68] sm:$0xf]
  %v53 = vld [vmem:[%s1 + $0x6c] sm:$0xf]
  %v54 = vld [vmem:[%s1 + $0x70] sm:$0xf]
  %v55 = vld [vmem:[%s1 + $0x74] sm:$0xf]
  %v56 = vld [vmem:[%s1 + $0x78] sm:$0xf]
  %v57 = vld [vmem:[%s1 + $0x7c] sm:$0xf]
  %v58 = vld [vmem:[%s1 + $0x80] sm:$0xf]
  %v59 = vld [vmem:[%s1 + $0x84] sm:$0xf]
  %v60 = vld [vmem:[%s1 + $0x88] sm:$0xf]
  %v61 = vld [vmem:[%s1 + $0x8c] sm:$0xf]
  %v62 = vld [vmem:[%s1 + $0x90] sm:$0xf]
  %v63 = vld [vmem:[%s1 + $0x94] sm:$0xf]
  %v64 = vld [vmem:[%s1 + $0x98] sm:$0xf]
  %v65 = vld [vmem:[%s1 + $0x9c] sm:$0xf]
  %v66 = vld [vmem:[%s1 + $0xa0] sm:$0xf]
  %v67 = vld [vmem:[%s1 + $0xa4] sm:$0xf]
  %v68 = vld [vmem:[%s1 + $0xa8] sm:$0xf]
  %v69 = vld [vmem:[%s1 + $0xac] sm:$0xf]
  %v70 = vld [vmem:[%s1 + $0xb0] sm:$0xf]
  %v71 = vld [vmem:[%s1 + $0xb4] sm:$0xf]
  %v72 = vld [vmem:[%s1 + $0xb8] sm:$0xf]
  %v73 = vld [vmem:[%s1 + $0xbc] sm:$0xf]
  %v74 = vld [vmem:[%s1 + $0xc0] sm:$0xf]
  %v75 = vld [vmem:[%s1 + $0xc4] sm:$0xf]
  %v76 = vld [vmem:[%s1 + $0xc8] sm:$0xf]
  %v77 = vld [vmem:[%s1 + $0xcc] sm:$0xf]
  %v78 = vld [vmem:[%s1 + $0xd0] sm:$0xf]
  %v79 = vld [vmem:[%s1 + $0xd4] sm:$0xf]
  %v80 = vld [vmem:[%s1 + $0xd8] sm:$0xf]
  %v81 = vld [vmem:[%s1 + $0xdc] sm:$0xf]
  %v82 = vld [vmem:[%s1 + $0xe0] sm:$0xf]
  %v83 = vld [vmem:[%s1 + $0xe4] sm:$0xf]
  %v84 = vld [vmem:[%s1 + $0xe8] sm:$0xf]
  %v85 = vld [vmem:[%s1 + $0xec] sm:$0xf]
  %v86 = vld [vmem:[%s1 + $0xf0] sm:$0xf]
  %v87 = vld [vmem:[%s1 + $0xf4] sm:$0xf]
  %v88 = vld [vmem:[%s1 + $0xf8] sm:$0xf]
  %v89 = vld [vmem:[%s1 + $0xfc] sm:$0xf]
  %v98 = vunpack.c.l.b16 %v18
  %v99 = vunpack.c.h.b16 %v18
  %v100 = vunpack.c.l.b16 %v19
  %v101 = vunpack.c.h.b16 %v19
  %v102 = vunpack.c.l.b16 %v20
  %v103 = vunpack.c.h.b16 %v20
  %v104 = vunpack.c.l.b16 %v21
  %v105 = vunpack.c.h.b16 %v21
  %v106 = vunpack.c.l.b16 %v22
  %v107 = vunpack.c.h.b16 %v22
  %v108 = vunpack.c.l.b16 %v23
  %v109 = vunpack.c.h.b16 %v23
  %v110 = vunpack.c.l.b16 %v24
  %v111 = vunpack.c.h.b16 %v24
  %v112 = vunpack.c.l.b16 %v25
  %v113 = vunpack.c.h.b16 %v25
  %v114 = vpack.c.b16 %v102, %v98
  %v115 = vpack.c.b16 %v103, %v99
  %v116 = vpack.c.b16 %v104, %v100
  %v117 = vpack.c.b16 %v105, %v101
  %v118 = vpack.c.b16 %v110, %v106
  %v119 = vpack.c.b16 %v111, %v107
  %v120 = vpack.c.b16 %v112, %v108
  %v121 = vpack.c.b16 %v113, %v109
  %v194 = vunpack.c.l.b16 %v26
  %v195 = vunpack.c.l.b16 %v27
  %v196 = vunpack.c.l.b16 %v28
  %v197 = vunpack.c.l.b16 %v29
  %v198 = vunpack.c.l.b16 %v30
  %v199 = vunpack.c.l.b16 %v31
  %v200 = vunpack.c.l.b16 %v32
  %v201 = vunpack.c.l.b16 %v33
  %v202 = vunpack.c.l.b16 %v34
  %v203 = vunpack.c.l.b16 %v35
  %v204 = vunpack.c.l.b16 %v36
  %v205 = vunpack.c.l.b16 %v37
  %v206 = vunpack.c.l.b16 %v38
  %v207 = vunpack.c.l.b16 %v39
  %v208 = vunpack.c.l.b16 %v40
  %v209 = vunpack.c.l.b16 %v41
  %v210 = vunpack.c.l.b16 %v42
  %v211 = vunpack.c.l.b16 %v43
  %v212 = vunpack.c.l.b16 %v44
  %v213 = vunpack.c.l.b16 %v45
  %v214 = vunpack.c.l.b16 %v46
  %v215 = vunpack.c.l.b16 %v47
  %v216 = vunpack.c.l.b16 %v48
  %v217 = vunpack.c.l.b16 %v49
  %v218 = vunpack.c.l.b16 %v50
  %v219 = vunpack.c.l.b16 %v51
  %v220 = vunpack.c.l.b16 %v52
  %v221 = vunpack.c.l.b16 %v53
  %v222 = vunpack.c.l.b16 %v54
  %v223 = vunpack.c.l.b16 %v55
  %v224 = vunpack.c.l.b16 %v56
  %v225 = vunpack.c.l.b16 %v57
  %v226 = vunpack.c.l.b16 %v58
  %v227 = vunpack.c.l.b16 %v59
  %v228 = vunpack.c.l.b16 %v60
  %v229 = vunpack.c.l.b16 %v61
  %v230 = vunpack.c.l.b16 %v62
  %v231 = vunpack.c.l.b16 %v63
  %v232 = vunpack.c.l.b16 %v64
  %v233 = vunpack.c.l.b16 %v65
  %v234 = vunpack.c.l.b16 %v66
  %v235 = vunpack.c.l.b16 %v67
  %v236 = vunpack.c.l.b16 %v68
  %v237 = vunpack.c.l.b16 %v69
  %v238 = vunpack.c.l.b16 %v70
  %v239 = vunpack.c.l.b16 %v71
  %v240 = vunpack.c.l.b16 %v72
  %v241 = vunpack.c.l.b16 %v73
  %v242 = vunpack.c.l.b16 %v74
  %v243 = vunpack.c.l.b16 %v75
  %v244 = vunpack.c.l.b16 %v76
  %v245 = vunpack.c.l.b16 %v77
  %v246 = vunpack.c.l.b16 %v78
  %v247 = vunpack.c.l.b16 %v79
  %v248 = vunpack.c.l.b16 %v80
  %v249 = vunpack.c.l.b16 %v81
  %v250 = vunpack.c.l.b16 %v82
  %v251 = vunpack.c.l.b16 %v83
  %v252 = vunpack.c.l.b16 %v84
  %v253 = vunpack.c.l.b16 %v85
  %v254 = vunpack.c.l.b16 %v86
  %v255 = vunpack.c.l.b16 %v87
  %v256 = vunpack.c.l.b16 %v88
  %v257 = vunpack.c.l.b16 %v89
  %v258 = vpack.c.b16 %v195, %v194
  %v259 = vpack.c.b16 %v197, %v196
  %v260 = vpack.c.b16 %v199, %v198
  %v261 = vpack.c.b16 %v201, %v200
  %v262 = vpack.c.b16 %v203, %v202
  %v263 = vpack.c.b16 %v205, %v204
  %v264 = vpack.c.b16 %v207, %v206
  %v265 = vpack.c.b16 %v209, %v208
  %v266 = vpack.c.b16 %v211, %v210
  %v267 = vpack.c.b16 %v213, %v212
  %v268 = vpack.c.b16 %v215, %v214
  %v269 = vpack.c.b16 %v217, %v216
  %v270 = vpack.c.b16 %v219, %v218
  %v271 = vpack.c.b16 %v221, %v220
  %v272 = vpack.c.b16 %v223, %v222
  %v273 = vpack.c.b16 %v225, %v224
  %v274 = vpack.c.b16 %v227, %v226
  %v275 = vpack.c.b16 %v229, %v228
  %v276 = vpack.c.b16 %v231, %v230
  %v277 = vpack.c.b16 %v233, %v232
  %v278 = vpack.c.b16 %v235, %v234
  %v279 = vpack.c.b16 %v237, %v236
  %v280 = vpack.c.b16 %v239, %v238
  %v281 = vpack.c.b16 %v241, %v240
  %v282 = vpack.c.b16 %v243, %v242
  %v283 = vpack.c.b16 %v245, %v244
  %v284 = vpack.c.b16 %v247, %v246
  %v285 = vpack.c.b16 %v249, %v248
  %v286 = vpack.c.b16 %v251, %v250
  %v287 = vpack.c.b16 %v253, %v252
  %v288 = vpack.c.b16 %v255, %v254
  %v289 = vpack.c.b16 %v257, %v256
  %322 = vmatprep.subr.bf16.mxu0 0
  %323 = vmatpush1.bf16.msra.mxu0 %v265
  %324 = vmatprep.subr.bf16.mxu0 0
  %325 = vmatpush1.bf16.msra.mxu0 %v264
  %326 = vmatprep.subr.bf16.mxu0 0
  %327 = vmatpush1.bf16.msra.mxu0 %v263
  %328 = vmatprep.subr.bf16.mxu0 0
  %329 = vmatpush1.bf16.msra.mxu0 %v262
  %330 = vmatprep.subr.bf16.mxu0 0
  %331 = vmatpush1.bf16.msra.mxu0 %v261
  %332 = vmatprep.subr.bf16.mxu0 0
  %333 = vmatpush1.bf16.msra.mxu0 %v260
  %334 = vmatprep.subr.bf16.mxu0 0
  %335 = vmatpush1.bf16.msra.mxu0 %v259
  %336 = vmatprep.subr.bf16.mxu0 0
  %337 = vmatpush1.bf16.msra.mxu0 %v258
  %338 = vmatprep.subr.bf16.mxu0 0
  %339 = vmatpush2.bf16.msra.mxu0 %v273
  %340 = vmatprep.subr.bf16.mxu0 0
  %341 = vmatpush2.bf16.msra.mxu0 %v272
  %342 = vmatprep.subr.bf16.mxu0 0
  %343 = vmatpush2.bf16.msra.mxu0 %v271
  %344 = vmatprep.subr.bf16.mxu0 0
  %345 = vmatpush2.bf16.msra.mxu0 %v270
  %346 = vmatprep.subr.bf16.mxu0 0
  %347 = vmatpush2.bf16.msra.mxu0 %v269
  %348 = vmatprep.subr.bf16.mxu0 0
  %349 = vmatpush2.bf16.msra.mxu0 %v268
  %350 = vmatprep.subr.bf16.mxu0 0
  %351 = vmatpush2.bf16.msra.mxu0 %v267
  %352 = vmatprep.subr.bf16.mxu0 0
  %353 = vmatpush2.bf16.msra.mxu0 %v266
  %354 = vmatprep.mubr.bf16.mxu0 %v115
  %355 = vmatmul.mubr.bf16.gmra.mxu0 %v114
  %v356 = vpop.f32.mrf.mxu0
  %v357 = vadd.f32 0.0, %v356
  %v358 = vpop.f32.mrf.mxu0
  %v359 = vpop.f32.mrf.mxu0
  %v360 = vadd.f32 0.0, %v359
  %v361 = vpop.f32.mrf.mxu0
  %362 = vmatprep.mubr.bf16.mxu0 %v119
  %363 = vmatmul.mubr.bf16.gmra.mxu0 %v118
  %v364 = vpop.f32.mrf.mxu0
  %v365 = vadd.f32 0.0, %v364
  %v366 = vpop.f32.mrf.mxu0
  %v367 = vpop.f32.mrf.mxu0
  %v368 = vadd.f32 0.0, %v367
  %v369 = vpop.f32.mrf.mxu0
  %370 = vdwg.mxu0
  %371 = vmatprep.subr.bf16.mxu0 0
  %372 = vmatpush1.bf16.msra.mxu0 %v281
  %373 = vmatprep.subr.bf16.mxu0 0
  %374 = vmatpush1.bf16.msra.mxu0 %v280
  %375 = vmatprep.subr.bf16.mxu0 0
  %376 = vmatpush1.bf16.msra.mxu0 %v279
  %377 = vmatprep.subr.bf16.mxu0 0
  %378 = vmatpush1.bf16.msra.mxu0 %v278
  %379 = vmatprep.subr.bf16.mxu0 0
  %380 = vmatpush1.bf16.msra.mxu0 %v277
  %381 = vmatprep.subr.bf16.mxu0 0
  %382 = vmatpush1.bf16.msra.mxu0 %v276
  %383 = vmatprep.subr.bf16.mxu0 0
  %384 = vmatpush1.bf16.msra.mxu0 %v275
  %385 = vmatprep.subr.bf16.mxu0 0
  %386 = vmatpush1.bf16.msra.mxu0 %v274
  %387 = vmatprep.subr.bf16.mxu0 0
  %388 = vmatpush2.bf16.msra.mxu0 %v289
  %389 = vmatprep.subr.bf16.mxu0 0
  %390 = vmatpush2.bf16.msra.mxu0 %v288
  %391 = vmatprep.subr.bf16.mxu0 0
  %392 = vmatpush2.bf16.msra.mxu0 %v287
  %393 = vmatprep.subr.bf16.mxu0 0
  %394 = vmatpush2.bf16.msra.mxu0 %v286
  %395 = vmatprep.subr.bf16.mxu0 0
  %396 = vmatpush2.bf16.msra.mxu0 %v285
  %397 = vmatprep.subr.bf16.mxu0 0
  %398 = vmatpush2.bf16.msra.mxu0 %v284
  %399 = vmatprep.subr.bf16.mxu0 0
  %400 = vmatpush2.bf16.msra.mxu0 %v283
  %401 = vmatprep.subr.bf16.mxu0 0
  %402 = vmatpush2.bf16.msra.mxu0 %v282
  %403 = vmatprep.mubr.bf16.mxu0 %v117
  %404 = vmatmul.mubr.bf16.gmra.mxu0 %v116
  %v405 = vpop.f32.mrf.mxu0
  %v406 = vadd.f32 %v357, %v405
  %v407 = vpop.f32.mrf.mxu0
  %v408 = vpop.f32.mrf.mxu0
  %v409 = vadd.f32 %v360, %v408
  %v410 = vpop.f32.mrf.mxu0
  %411 = vmatprep.mubr.bf16.mxu0 %v121
  %412 = vmatmul.mubr.bf16.gmra.mxu0 %v120
  %v413 = vpop.f32.mrf.mxu0
  %v414 = vadd.f32 %v365, %v413
  %v415 = vpop.f32.mrf.mxu0
  %v416 = vpop.f32.mrf.mxu0
  %v417 = vadd.f32 %v368, %v416
  %v418 = vpop.f32.mrf.mxu0
  %419 = vdwg.mxu0
  %v420 = vadd.f32 %v406, %v409
  %v421 = vadd.f32 %v420, %v414
  %v422 = vadd.f32 %v421, %v417
  %v423 = vrot.slane %v422, 4
  %v424 = vadd.f32 %v422, %v423
  %v425 = vrot.slane %v424, 2
  %v426 = vadd.f32 %v424, %v425
  %v427 = vrot.slane %v426, 1
  %v428 = vadd.f32 %v426, %v427
  %v429 = vmul.f32 %v428, 0.03125
  %v430 = vsub.f32 %v406, %v429
  %v431 = vsub.f32 %v409, %v429
  %v432 = vsub.f32 %v414, %v429
  %v433 = vsub.f32 %v417, %v429
  %v434 = vmul.f32 %v430, %v430
  %v435 = vmul.f32 %v431, %v431
  %v436 = vmul.f32 %v432, %v432
  %v437 = vmul.f32 %v433, %v433
  %v438 = vadd.f32 %v434, %v435
  %v439 = vadd.f32 %v438, %v436
  %v440 = vadd.f32 %v439, %v437
  %v441 = vrot.slane %v440, 4
  %v442 = vadd.f32 %v440, %v441
  %v443 = vrot.slane %v442, 2
  %v444 = vadd.f32 %v442, %v443
  %v445 = vrot.slane %v444, 1
  %v446 = vadd.f32 %v444, %v445
  %v447 = vmul.f32 %v446, 0.03125
  %v448 = vadd.f32 %v447, 1e-05
  %v449 = vrsqrt.pop %v448
  %v450 = vmul.f32 %v430, %v449
  %v451 = vmul.f32 %v431, %v449
  %v452 = vmul.f32 %v432, %v449
  %v453 = vmul.f32 %v433, %v449
  %v454 = vld [vmem:[%s2] sm:$0x1]
  %v456 = vlaneseq
  %v457 = vshrl.u32 %v456, 7
  %v458 = vsub.s32 0, %v457
  %v459 = vrot.slane %v454, %v458
  %v461 = vmul.f32 %v450, %v459
  %v462 = vmul.f32 %v451, %v459
  %v463 = vmul.f32 %v452, %v459
  %v464 = vmul.f32 %v453, %v459
  %v465 = vld [vmem:[%s3] sm:$0x1]
  %v467 = vlaneseq
  %v468 = vshrl.u32 %v467, 7
  %v469 = vsub.s32 0, %v468
  %v470 = vrot.slane %v465, %v469
  %v472 = vadd.f32 %v461, %v470
  %v473 = vadd.f32 %v462, %v470
  %v474 = vadd.f32 %v463, %v470
  %v475 = vadd.f32 %v464, %v470
  %vm476 = vcmp.ge.f32.partialorder %v472, 0.0
  %vm477 = vcmp.ge.f32.partialorder %v473, 0.0
  %vm478 = vcmp.ge.f32.partialorder %v474, 0.0
  %vm479 = vcmp.ge.f32.partialorder %v475, 0.0
  %v480 = vmul.f32 %v472, 0.2
  %v481 = vmul.f32 %v473, 0.2
  %v482 = vmul.f32 %v474, 0.2
  %v483 = vmul.f32 %v475, 0.2
  %v484 = vsel %vm476, %v472, %v480
  %v485 = vsel %vm477, %v473, %v481
  %v486 = vsel %vm478, %v474, %v482
  %v487 = vsel %vm479, %v475, %v483
  %488 = vst [vmem:[%s4] sm:$0xff] %v484
  %489 = vst [vmem:[%s4 + $0x8] sm:$0xff] %v485
  %490 = vst [vmem:[%s4 + $0x10] sm:$0xff] %v486
  %491 = vst [vmem:[%s4 + $0x18] sm:$0xff] %v487
  // Predicated region
  $region18: #{discriminator_forward.8} parent=0 // pred_check
    _
  $region19: #{discriminator_forward.8} parent=0 // pred_check_branch
    %493 = sbr.rel (0) target = $region21
  $region20: #{discriminator_forward.8} parent=0 // pred_region
    _
  $region21: #{discriminator_forward.8} parent=0 // pred_fallthru
    _
  // Predicated region
  $region22: #{discriminator_forward.8} parent=0 // pred_check
    _
  $region23: #{discriminator_forward.8} parent=0 // pred_check_branch
    %495 = sbr.rel (0) target = $region25
  $region24: #{discriminator_forward.8} parent=0 // pred_region
    _
  $region25: #{discriminator_forward.8} parent=0 // pred_fallthru
    _

// kernel: discriminator_forward.9
$region0: #{discriminator_forward.9}
  #allocation0 [shape = 'u32[]', space=smem, size = 0x4, offset = 0x4, fixed_abs, tag = 'smem constant byte address 0x4 - core index']
  #allocation1 [shape = 'u32[144,128]{1,0:T(1,128)}', space=vmem, size = 0x12000, scoped, tag = 'internal scratch']
  %s0 = inlined_call_operand.vmem [shape: bf16[2,1024], index: 0, kind: input, shape index: {}]
  %s1 = inlined_call_operand.vmem [shape: bf16[1024,128], index: 1, kind: input, shape index: {}]
  %s2 = inlined_call_operand.vmem [shape: f32[2,128], index: 2, kind: output, shape index: {}]
  %s3 = sld [smem:[#allocation0]]
  $region18: #{discriminator_forward.9} parent=0
    _
  %s5 = ssub.s32 1, %s3
  %s6 = scalar_select 0, %s5, %s3
  // Predicated region
  $region2: #{discriminator_forward.9} parent=0 // pred_check
    _
  $region3: #{discriminator_forward.9} parent=0 // pred_check_branch
    %8 = sbr.rel (0) target = $region5
  $region4: #{discriminator_forward.9} parent=0 // pred_region
    _
  $region5: #{discriminator_forward.9} parent=0 // pred_fallthru
    _
  // Predicated region
  $region6: #{discriminator_forward.9} parent=0 // pred_check
    _
  $region7: #{discriminator_forward.9} parent=0 // pred_check_branch
    %10 = sbr.rel (0) target = $region9
  $region8: #{discriminator_forward.9} parent=0 // pred_region
    _
  $region9: #{discriminator_forward.9} parent=0 // pred_fallthru
    _
  %v12 = vld [vmem:[%s0] sm:$0xff]
  %v13 = vld [vmem:[%s1] sm:$0xf]
  %v14 = vld [vmem:[%s1 + $0x4] sm:$0xf]
  %v15 = vld [vmem:[%s1 + $0x8] sm:$0xf]
  %v16 = vld [vmem:[%s1 + $0xc] sm:$0xf]
  %v17 = vld [vmem:[%s1 + $0x10] sm:$0xf]
  %v18 = vld [vmem:[%s1 + $0x14] sm:$0xf]
  %v19 = vld [vmem:[%s1 + $0x18] sm:$0xf]
  %v20 = vld [vmem:[%s1 + $0x1c] sm:$0xf]
  %v21 = vld [vmem:[%s1 + $0x20] sm:$0xf]
  %v22 = vld [vmem:[%s1 + $0x24] sm:$0xf]
  %v23 = vld [vmem:[%s1 + $0x28] sm:$0xf]
  %v24 = vld [vmem:[%s1 + $0x2c] sm:$0xf]
  %v25 = vld [vmem:[%s1 + $0x30] sm:$0xf]
  %v26 = vld [vmem:[%s1 + $0x34] sm:$0xf]
  %v27 = vld [vmem:[%s1 + $0x38] sm:$0xf]
  %v28 = vld [vmem:[%s1 + $0x3c] sm:$0xf]
  %v29 = vld [vmem:[%s1 + $0x40] sm:$0xf]
  %v30 = vld [vmem:[%s1 + $0x44] sm:$0xf]
  %v31 = vld [vmem:[%s1 + $0x48] sm:$0xf]
  %v32 = vld [vmem:[%s1 + $0x4c] sm:$0xf]
  %v33 = vld [vmem:[%s1 + $0x50] sm:$0xf]
  %v34 = vld [vmem:[%s1 + $0x54] sm:$0xf]
  %v35 = vld [vmem:[%s1 + $0x58] sm:$0xf]
  %v36 = vld [vmem:[%s1 + $0x5c] sm:$0xf]
  %v37 = vld [vmem:[%s1 + $0x60] sm:$0xf]
  %v38 = vld [vmem:[%s1 + $0x64] sm:$0xf]
  %v39 = vld [vmem:[%s1 + $0x68] sm:$0xf]
  %v40 = vld [vmem:[%s1 + $0x6c] sm:$0xf]
  %v41 = vld [vmem:[%s1 + $0x70] sm:$0xf]
  %v42 = vld [vmem:[%s1 + $0x74] sm:$0xf]
  %v43 = vld [vmem:[%s1 + $0x78] sm:$0xf]
  %v44 = vld [vmem:[%s1 + $0x7c] sm:$0xf]
  %v45 = vld [vmem:[%s1 + $0x80] sm:$0xf]
  %v46 = vld [vmem:[%s1 + $0x84] sm:$0xf]
  %v47 = vld [vmem:[%s1 + $0x88] sm:$0xf]
  %v48 = vld [vmem:[%s1 + $0x8c] sm:$0xf]
  %v49 = vld [vmem:[%s1 + $0x90] sm:$0xf]
  %v50 = vld [vmem:[%s1 + $0x94] sm:$0xf]
  %v51 = vld [vmem:[%s1 + $0x98] sm:$0xf]
  %v52 = vld [vmem:[%s1 + $0x9c] sm:$0xf]
  %v53 = vld [vmem:[%s1 + $0xa0] sm:$0xf]
  %v54 = vld [vmem:[%s1 + $0xa4] sm:$0xf]
  %v55 = vld [vmem:[%s1 + $0xa8] sm:$0xf]
  %v56 = vld [vmem:[%s1 + $0xac] sm:$0xf]
  %v57 = vld [vmem:[%s1 + $0xb0] sm:$0xf]
  %v58 = vld [vmem:[%s1 + $0xb4] sm:$0xf]
  %v59 = vld [vmem:[%s1 + $0xb8] sm:$0xf]
  %v60 = vld [vmem:[%s1 + $0xbc] sm:$0xf]
  %v61 = vld [vmem:[%s1 + $0xc0] sm:$0xf]
  %v62 = vld [vmem:[%s1 + $0xc4] sm:$0xf]
  %v63 = vld [vmem:[%s1 + $0xc8] sm:$0xf]
  %v64 = vld [vmem:[%s1 + $0xcc] sm:$0xf]
  %v65 = vld [vmem:[%s1 + $0xd0] sm:$0xf]
  %v66 = vld [vmem:[%s1 + $0xd4] sm:$0xf]
  %v67 = vld [vmem:[%s1 + $0xd8] sm:$0xf]
  %v68 = vld [vmem:[%s1 + $0xdc] sm:$0xf]
  %v69 = vld [vmem:[%s1 + $0xe0] sm:$0xf]
  %v70 = vld [vmem:[%s1 + $0xe4] sm:$0xf]
  %v71 = vld [vmem:[%s1 + $0xe8] sm:$0xf]
  %v72 = vld [vmem:[%s1 + $0xec] sm:$0xf]
  %v73 = vld [vmem:[%s1 + $0xf0] sm:$0xf]
  %v74 = vld [vmem:[%s1 + $0xf4] sm:$0xf]
  %v75 = vld [vmem:[%s1 + $0xf8] sm:$0xf]
  %v76 = vld [vmem:[%s1 + $0xfc] sm:$0xf]
  %v77 = vld [vmem:[%s1 + $0x100] sm:$0xf]
  %v78 = vld [vmem:[%s1 + $0x104] sm:$0xf]
  %v79 = vld [vmem:[%s1 + $0x108] sm:$0xf]
  %v80 = vld [vmem:[%s1 + $0x10c] sm:$0xf]
  %v81 = vld [vmem:[%s1 + $0x110] sm:$0xf]
  %v82 = vld [vmem:[%s1 + $0x114] sm:$0xf]
  %v83 = vld [vmem:[%s1 + $0x118] sm:$0xf]
  %v84 = vld [vmem:[%s1 + $0x11c] sm:$0xf]
  %v85 = vld [vmem:[%s1 + $0x120] sm:$0xf]
  %v86 = vld [vmem:[%s1 + $0x124] sm:$0xf]
  %v87 = vld [vmem:[%s1 + $0x128] sm:$0xf]
  %v88 = vld [vmem:[%s1 + $0x12c] sm:$0xf]
  %v89 = vld [vmem:[%s1 + $0x130] sm:$0xf]
  %v90 = vld [vmem:[%s1 + $0x134] sm:$0xf]
  %v91 = vld [vmem:[%s1 + $0x138] sm:$0xf]
  %v92 = vld [vmem:[%s1 + $0x13c] sm:$0xf]
  %v93 = vld [vmem:[%s1 + $0x140] sm:$0xf]
  %v94 = vld [vmem:[%s1 + $0x144] sm:$0xf]
  %v95 = vld [vmem:[%s1 + $0x148] sm:$0xf]
  %v96 = vld [vmem:[%s1 + $0x14c] sm:$0xf]
  %v97 = vld [vmem:[%s1 + $0x150] sm:$0xf]
  %v98 = vld [vmem:[%s1 + $0x154] sm:$0xf]
  %v99 = vld [vmem:[%s1 + $0x158] sm:$0xf]
  %v100 = vld [vmem:[%s1 + $0x15c] sm:$0xf]
  %v101 = vld [vmem:[%s1 + $0x160] sm:$0xf]
  %v102 = vld [vmem:[%s1 + $0x164] sm:$0xf]
  %v103 = vld [vmem:[%s1 + $0x168] sm:$0xf]
  %v104 = vld [vmem:[%s1 + $0x16c] sm:$0xf]
  %v105 = vld [vmem:[%s1 + $0x170] sm:$0xf]
  %v106 = vld [vmem:[%s1 + $0x174] sm:$0xf]
  %v107 = vld [vmem:[%s1 + $0x178] sm:$0xf]
  %v108 = vld [vmem:[%s1 + $0x17c] sm:$0xf]
  %v109 = vld [vmem:[%s1 + $0x180] sm:$0xf]
  %v110 = vld [vmem:[%s1 + $0x184] sm:$0xf]
  %v111 = vld [vmem:[%s1 + $0x188] sm:$0xf]
  %v112 = vld [vmem:[%s1 + $0x18c] sm:$0xf]
  %v113 = vld [vmem:[%s1 + $0x190] sm:$0xf]
  %v114 = vld [vmem:[%s1 + $0x194] sm:$0xf]
  %v115 = vld [vmem:[%s1 + $0x198] sm:$0xf]
  %v116 = vld [vmem:[%s1 + $0x19c] sm:$0xf]
  %v117 = vld [vmem:[%s1 + $0x1a0] sm:$0xf]
  %v118 = vld [vmem:[%s1 + $0x1a4] sm:$0xf]
  %v119 = vld [vmem:[%s1 + $0x1a8] sm:$0xf]
  %v120 = vld [vmem:[%s1 + $0x1ac] sm:$0xf]
  %v121 = vld [vmem:[%s1 + $0x1b0] sm:$0xf]
  %v122 = vld [vmem:[%s1 + $0x1b4] sm:$0xf]
  %v123 = vld [vmem:[%s1 + $0x1b8] sm:$0xf]
  %v124 = vld [vmem:[%s1 + $0x1bc] sm:$0xf]
  %v125 = vld [vmem:[%s1 + $0x1c0] sm:$0xf]
  %v126 = vld [vmem:[%s1 + $0x1c4] sm:$0xf]
  %v127 = vld [vmem:[%s1 + $0x1c8] sm:$0xf]
  %v128 = vld [vmem:[%s1 + $0x1cc] sm:$0xf]
  %v129 = vld [vmem:[%s1 + $0x1d0] sm:$0xf]
  %v130 = vld [vmem:[%s1 + $0x1d4] sm:$0xf]
  %v131 = vld [vmem:[%s1 + $0x1d8] sm:$0xf]
  %v132 = vld [vmem:[%s1 + $0x1dc] sm:$0xf]
  %v133 = vld [vmem:[%s1 + $0x1e0] sm:$0xf]
  %v134 = vld [vmem:[%s1 + $0x1e4] sm:$0xf]
  %v135 = vld [vmem:[%s1 + $0x1e8] sm:$0xf]
  %v136 = vld [vmem:[%s1 + $0x1ec] sm:$0xf]
  %v137 = vld [vmem:[%s1 + $0x1f0] sm:$0xf]
  %v138 = vld [vmem:[%s1 + $0x1f4] sm:$0xf]
  %v139 = vld [vmem:[%s1 + $0x1f8] sm:$0xf]
  %v140 = vld [vmem:[%s1 + $0x1fc] sm:$0xf]
  %v142 = vcombine.high %v12, %v12
  %v144 = vunpack.c.l.s4 1966171168
  %v145 = vunpack.c.0.s8 %v144
  %v146 = vlaneseq
  %v147 = vshrl.u32 %v146, 7
  %v148 = vsub.s32 %v145, %v147
  %v149 = vrot.slane %v12, %v148
  %v151 = vunpack.c.l.s4 1966171168
  %v152 = vunpack.c.0.s8 %v151
  %v153 = vlaneseq
  %v154 = vshrl.u32 %v153, 7
  %v155 = vsub.s32 %v152, %v154
  %v156 = vrot.slane %v142, %v155
  %v157 = vcombine.high %v149, %v149
  %v158 = vcombine.high %v156, %v156
  %v160 = vunpack.c.l.s4 1966171168
  %v161 = vunpack.c.0.s8 %v160
  %v162 = vlaneseq
  %v163 = vshrl.u32 %v162, 7
  %v164 = vsub.s32 %v161, %v163
  %v165 = vrot.slane %v149, %v164
  %v167 = vunpack.c.l.s4 1966171168
  %v168 = vunpack.c.0.s8 %v167
  %v169 = vlaneseq
  %v170 = vshrl.u32 %v169, 7
  %v171 = vsub.s32 %v168, %v170
  %v172 = vrot.slane %v156, %v171
  %v174 = vunpack.c.l.s4 1966171168
  %v175 = vunpack.c.0.s8 %v174
  %v176 = vlaneseq
  %v177 = vshrl.u32 %v176, 7
  %v178 = vsub.s32 %v175, %v177
  %v179 = vrot.slane %v157, %v178
  %v181 = vunpack.c.l.s4 1966171168
  %v182 = vunpack.c.0.s8 %v181
  %v183 = vlaneseq
  %v184 = vshrl.u32 %v183, 7
  %v185 = vsub.s32 %v182, %v184
  %v186 = vrot.slane %v158, %v185
  %v187 = vcombine.high %v165, %v165
  %v188 = vcombine.high %v172, %v172
  %v189 = vcombine.high %v179, %v179
  %v190 = vcombine.high %v186, %v186
  %v327 = vunpack.c.l.b16 %v13
  %v328 = vunpack.c.l.b16 %v14
  %v329 = vunpack.c.l.b16 %v15
  %v330 = vunpack.c.l.b16 %v16
  %v331 = vunpack.c.l.b16 %v17
  %v332 = vunpack.c.l.b16 %v18
  %v333 = vunpack.c.l.b16 %v19
  %v334 = vunpack.c.l.b16 %v20
  %v335 = vunpack.c.l.b16 %v21
  %v336 = vunpack.c.l.b16 %v22
  %v337 = vunpack.c.l.b16 %v23
  %v338 = vunpack.c.l.b16 %v24
  %v339 = vunpack.c.l.b16 %v25
  %v340 = vunpack.c.l.b16 %v26
  %v341 = vunpack.c.l.b16 %v27
  %v342 = vunpack.c.l.b16 %v28
  %v343 = vunpack.c.l.b16 %v29
  %v344 = vunpack.c.l.b16 %v30
  %v345 = vunpack.c.l.b16 %v31
  %v346 = vunpack.c.l.b16 %v32
  %v347 = vunpack.c.l.b16 %v33
  %v348 = vunpack.c.l.b16 %v34
  %v349 = vunpack.c.l.b16 %v35
  %v350 = vunpack.c.l.b16 %v36
  %v351 = vunpack.c.l.b16 %v37
  %v352 = vunpack.c.l.b16 %v38
  %v353 = vunpack.c.l.b16 %v39
  %v354 = vunpack.c.l.b16 %v40
  %v355 = vunpack.c.l.b16 %v41
  %v356 = vunpack.c.l.b16 %v42
  %v357 = vunpack.c.l.b16 %v43
  %v358 = vunpack.c.l.b16 %v44
  %v359 = vunpack.c.l.b16 %v45
  %v360 = vunpack.c.l.b16 %v46
  %v361 = vunpack.c.l.b16 %v47
  %v362 = vunpack.c.l.b16 %v48
  %v363 = vunpack.c.l.b16 %v49
  %v364 = vunpack.c.l.b16 %v50
  %v365 = vunpack.c.l.b16 %v51
  %v366 = vunpack.c.l.b16 %v52
  %v367 = vunpack.c.l.b16 %v53
  %v368 = vunpack.c.l.b16 %v54
  %v369 = vunpack.c.l.b16 %v55
  %v370 = vunpack.c.l.b16 %v56
  %v371 = vunpack.c.l.b16 %v57
  %v372 = vunpack.c.l.b16 %v58
  %v373 = vunpack.c.l.b16 %v59
  %v374 = vunpack.c.l.b16 %v60
  %v375 = vunpack.c.l.b16 %v61
  %v376 = vunpack.c.l.b16 %v62
  %v377 = vunpack.c.l.b16 %v63
  %v378 = vunpack.c.l.b16 %v64
  %v379 = vunpack.c.l.b16 %v65
  %v380 = vunpack.c.l.b16 %v66
  %v381 = vunpack.c.l.b16 %v67
  %v382 = vunpack.c.l.b16 %v68
  %v383 = vunpack.c.l.b16 %v69
  %v384 = vunpack.c.l.b16 %v70
  %v385 = vunpack.c.l.b16 %v71
  %v386 = vunpack.c.l.b16 %v72
  %v387 = vunpack.c.l.b16 %v73
  %v388 = vunpack.c.l.b16 %v74
  %v389 = vunpack.c.l.b16 %v75
  %v390 = vunpack.c.l.b16 %v76
  %v391 = vunpack.c.l.b16 %v77
  %v392 = vunpack.c.l.b16 %v78
  %v393 = vunpack.c.l.b16 %v79
  %v394 = vunpack.c.l.b16 %v80
  %v395 = vunpack.c.l.b16 %v81
  %v396 = vunpack.c.l.b16 %v82
  %v397 = vunpack.c.l.b16 %v83
  %v398 = vunpack.c.l.b16 %v84
  %v399 = vunpack.c.l.b16 %v85
  %v400 = vunpack.c.l.b16 %v86
  %v401 = vunpack.c.l.b16 %v87
  %v402 = vunpack.c.l.b16 %v88
  %v403 = vunpack.c.l.b16 %v89
  %v404 = vunpack.c.l.b16 %v90
  %v405 = vunpack.c.l.b16 %v91
  %v406 = vunpack.c.l.b16 %v92
  %v407 = vunpack.c.l.b16 %v93
  %v408 = vunpack.c.l.b16 %v94
  %v409 = vunpack.c.l.b16 %v95
  %v410 = vunpack.c.l.b16 %v96
  %v411 = vunpack.c.l.b16 %v97
  %v412 = vunpack.c.l.b16 %v98
  %v413 = vunpack.c.l.b16 %v99
  %v414 = vunpack.c.l.b16 %v100
  %v415 = vunpack.c.l.b16 %v101
  %v416 = vunpack.c.l.b16 %v102
  %v417 = vunpack.c.l.b16 %v103
  %v418 = vunpack.c.l.b16 %v104
  %v419 = vunpack.c.l.b16 %v105
  %v420 = vunpack.c.l.b16 %v106
  %v421 = vunpack.c.l.b16 %v107
  %v422 = vunpack.c.l.b16 %v108
  %v423 = vunpack.c.l.b16 %v109
  %v424 = vunpack.c.l.b16 %v110
  %v425 = vunpack.c.l.b16 %v111
  %v426 = vunpack.c.l.b16 %v112
  %v427 = vunpack.c.l.b16 %v113
  %v428 = vunpack.c.l.b16 %v114
  %v429 = vunpack.c.l.b16 %v115
  %v430 = vunpack.c.l.b16 %v116
  %v431 = vunpack.c.l.b16 %v117
  %v432 = vunpack.c.l.b16 %v118
  %v433 = vunpack.c.l.b16 %v119
  %v434 = vunpack.c.l.b16 %v120
  %v435 = vunpack.c.l.b16 %v121
  %v436 = vunpack.c.l.b16 %v122
  %v437 = vunpack.c.l.b16 %v123
  %v438 = vunpack.c.l.b16 %v124
  %v439 = vunpack.c.l.b16 %v125
  %v440 = vunpack.c.l.b16 %v126
  %v441 = vunpack.c.l.b16 %v127
  %v442 = vunpack.c.l.b16 %v128
  %v443 = vunpack.c.l.b16 %v129
  %v444 = vunpack.c.l.b16 %v130
  %v445 = vunpack.c.l.b16 %v131
  %v446 = vunpack.c.l.b16 %v132
  %v447 = vunpack.c.l.b16 %v133
  %v448 = vunpack.c.l.b16 %v134
  %v449 = vunpack.c.l.b16 %v135
  %v450 = vunpack.c.l.b16 %v136
  %v451 = vunpack.c.l.b16 %v137
  %v452 = vunpack.c.l.b16 %v138
  %v453 = vunpack.c.l.b16 %v139
  %v454 = vunpack.c.l.b16 %v140
  %v455 = vpack.c.b16 %v328, %v327
  %v456 = vpack.c.b16 %v330, %v329
  %v457 = vpack.c.b16 %v332, %v331
  %v458 = vpack.c.b16 %v334, %v333
  %v459 = vpack.c.b16 %v336, %v335
  %v460 = vpack.c.b16 %v338, %v337
  %v461 = vpack.c.b16 %v340, %v339
  %v462 = vpack.c.b16 %v342, %v341
  %v463 = vpack.c.b16 %v344, %v343
  %v464 = vpack.c.b16 %v346, %v345
  %v465 = vpack.c.b16 %v348, %v347
  %v466 = vpack.c.b16 %v350, %v349
  %v467 = vpack.c.b16 %v352, %v351
  %v468 = vpack.c.b16 %v354, %v353
  %v469 = vpack.c.b16 %v356, %v355
  %v470 = vpack.c.b16 %v358, %v357
  %v471 = vpack.c.b16 %v360, %v359
  %v472 = vpack.c.b16 %v362, %v361
  %v473 = vpack.c.b16 %v364, %v363
  %v474 = vpack.c.b16 %v366, %v365
  %v475 = vpack.c.b16 %v368, %v367
  %v476 = vpack.c.b16 %v370, %v369
  %v477 = vpack.c.b16 %v372, %v371
  %v478 = vpack.c.b16 %v374, %v373
  %v479 = vpack.c.b16 %v376, %v375
  %v480 = vpack.c.b16 %v378, %v377
  %v481 = vpack.c.b16 %v380, %v379
  %v482 = vpack.c.b16 %v382, %v381
  %v483 = vpack.c.b16 %v384, %v383
  %v484 = vpack.c.b16 %v386, %v385
  %v485 = vpack.c.b16 %v388, %v387
  %v486 = vpack.c.b16 %v390, %v389
  %v487 = vpack.c.b16 %v392, %v391
  %v488 = vpack.c.b16 %v394, %v393
  %v489 = vpack.c.b16 %v396, %v395
  %v490 = vpack.c.b16 %v398, %v397
  %v491 = vpack.c.b16 %v400, %v399
  %v492 = vpack.c.b16 %v402, %v401
  %v493 = vpack.c.b16 %v404, %v403
  %v494 = vpack.c.b16 %v406, %v405
  %v495 = vpack.c.b16 %v408, %v407
  %v496 = vpack.c.b16 %v410, %v409
  %v497 = vpack.c.b16 %v412, %v411
  %v498 = vpack.c.b16 %v414, %v413
  %v499 = vpack.c.b16 %v416, %v415
  %v500 = vpack.c.b16 %v418, %v417
  %v501 = vpack.c.b16 %v420, %v419
  %v502 = vpack.c.b16 %v422, %v421
  %v503 = vpack.c.b16 %v424, %v423
  %v504 = vpack.c.b16 %v426, %v425
  %v505 = vpack.c.b16 %v428, %v427
  %v506 = vpack.c.b16 %v430, %v429
  %v507 = vpack.c.b16 %v432, %v431
  %v508 = vpack.c.b16 %v434, %v433
  %v509 = vpack.c.b16 %v436, %v435
  %v510 = vpack.c.b16 %v438, %v437
  %v511 = vpack.c.b16 %v440, %v439
  %v512 = vpack.c.b16 %v442, %v441
  %v513 = vpack.c.b16 %v444, %v443
  %v514 = vpack.c.b16 %v446, %v445
  %v515 = vpack.c.b16 %v448, %v447
  %v516 = vpack.c.b16 %v450, %v449
  %v517 = vpack.c.b16 %v452, %v451
  %v518 = vpack.c.b16 %v454, %v453
  %583 = vmatprep.subr.bf16.mxu0 0
  %584 = vmatpush1.bf16.msra.mxu0 %v462
  %585 = vmatprep.subr.bf16.mxu0 0
  %586 = vmatpush1.bf16.msra.mxu0 %v461
  %587 = vmatprep.subr.bf16.mxu0 0
  %588 = vmatpush1.bf16.msra.mxu0 %v460
  %589 = vmatprep.subr.bf16.mxu0 0
  %590 = vmatpush1.bf16.msra.mxu0 %v459
  %591 = vmatprep.subr.bf16.mxu0 0
  %592 = vmatpush1.bf16.msra.mxu0 %v458
  %593 = vmatprep.subr.bf16.mxu0 0
  %594 = vmatpush1.bf16.msra.mxu0 %v457
  %595 = vmatprep.subr.bf16.mxu0 0
  %596 = vmatpush1.bf16.msra.mxu0 %v456
  %597 = vmatprep.subr.bf16.mxu0 0
  %598 = vmatpush1.bf16.msra.mxu0 %v455
  %599 = vmatprep.subr.bf16.mxu0 0
  %600 = vmatpush2.bf16.msra.mxu0 %v470
  %601 = vmatprep.subr.bf16.mxu0 0
  %602 = vmatpush2.bf16.msra.mxu0 %v469
  %603 = vmatprep.subr.bf16.mxu0 0
  %604 = vmatpush2.bf16.msra.mxu0 %v468
  %605 = vmatprep.subr.bf16.mxu0 0
  %606 = vmatpush2.bf16.msra.mxu0 %v467
  %607 = vmatprep.subr.bf16.mxu0 0
  %608 = vmatpush2.bf16.msra.mxu0 %v466
  %609 = vmatprep.subr.bf16.mxu0 0
  %610 = vmatpush2.bf16.msra.mxu0 %v465
  %611 = vmatprep.subr.bf16.mxu0 0
  %612 = vmatpush2.bf16.msra.mxu0 %v464
  %613 = vmatprep.subr.bf16.mxu0 0
  %614 = vmatpush2.bf16.msra.mxu0 %v463
  %615 = vmatprep.mubr.bf16.mxu0 %v179
  %616 = vmatmul.mubr.bf16.gmra.mxu0 %v165
  %v617 = vpop.f32.mrf.mxu0
  %v618 = vadd.f32 0.0, %v617
  %v619 = vpop.f32.mrf.mxu0
  %v620 = vpop.f32.mrf.mxu0
  %v621 = vpop.f32.mrf.mxu0
  %622 = vdwg.mxu0
  %623 = vmatprep.subr.bf16.mxu0 0
  %624 = vmatpush1.bf16.msra.mxu0 %v478
  %625 = vmatprep.subr.bf16.mxu0 0
  %626 = vmatpush1.bf16.msra.mxu0 %v477
  %627 = vmatprep.subr.bf16.mxu0 0
  %628 = vmatpush1.bf16.msra.mxu0 %v476
  %629 = vmatprep.subr.bf16.mxu0 0
  %630 = vmatpush1.bf16.msra.mxu0 %v475
  %631 = vmatprep.subr.bf16.mxu0 0
  %632 = vmatpush1.bf16.msra.mxu0 %v474
  %633 = vmatprep.subr.bf16.mxu0 0
  %634 = vmatpush1.bf16.msra.mxu0 %v473
  %635 = vmatprep.subr.bf16.mxu0 0
  %636 = vmatpush1.bf16.msra.mxu0 %v472
  %637 = vmatprep.subr.bf16.mxu0 0
  %638 = vmatpush1.bf16.msra.mxu0 %v471
  %639 = vmatprep.subr.bf16.mxu0 0
  %640 = vmatpush2.bf16.msra.mxu0 %v486
  %641 = vmatprep.subr.bf16.mxu0 0
  %642 = vmatpush2.bf16.msra.mxu0 %v485
  %643 = vmatprep.subr.bf16.mxu0 0
  %644 = vmatpush2.bf16.msra.mxu0 %v484
  %645 = vmatprep.subr.bf16.mxu0 0
  %646 = vmatpush2.bf16.msra.mxu0 %v483
  %647 = vmatprep.subr.bf16.mxu0 0
  %648 = vmatpush2.bf16.msra.mxu0 %v482
  %649 = vmatprep.subr.bf16.mxu0 0
  %650 = vmatpush2.bf16.msra.mxu0 %v481
  %651 = vmatprep.subr.bf16.mxu0 0
  %652 = vmatpush2.bf16.msra.mxu0 %v480
  %653 = vmatprep.subr.bf16.mxu0 0
  %654 = vmatpush2.bf16.msra.mxu0 %v479
  %655 = vmatprep.mubr.bf16.mxu0 %v189
  %656 = vmatmul.mubr.bf16.gmra.mxu0 %v187
  %v657 = vpop.f32.mrf.mxu0
  %v658 = vadd.f32 %v618, %v657
  %v659 = vpop.f32.mrf.mxu0
  %v660 = vpop.f32.mrf.mxu0
  %v661 = vpop.f32.mrf.mxu0
  %662 = vdwg.mxu0
  %663 = vmatprep.subr.bf16.mxu0 0
  %664 = vmatpush1.bf16.msra.mxu0 %v494
  %665 = vmatprep.subr.bf16.mxu0 0
  %666 = vmatpush1.bf16.msra.mxu0 %v493
  %667 = vmatprep.subr.bf16.mxu0 0
  %668 = vmatpush1.bf16.msra.mxu0 %v492
  %669 = vmatprep.subr.bf16.mxu0 0
  %670 = vmatpush1.bf16.msra.mxu0 %v491
  %671 = vmatprep.subr.bf16.mxu0 0
  %672 = vmatpush1.bf16.msra.mxu0 %v490
  %673 = vmatprep.subr.bf16.mxu0 0
  %674 = vmatpush1.bf16.msra.mxu0 %v489
  %675 = vmatprep.subr.bf16.mxu0 0
  %676 = vmatpush1.bf16.msra.mxu0 %v488
  %677 = vmatprep.subr.bf16.mxu0 0
  %678 = vmatpush1.bf16.msra.mxu0 %v487
  %679 = vmatprep.subr.bf16.mxu0 0
  %680 = vmatpush2.bf16.msra.mxu0 %v502
  %681 = vmatprep.subr.bf16.mxu0 0
  %682 = vmatpush2.bf16.msra.mxu0 %v501
  %683 = vmatprep.subr.bf16.mxu0 0
  %684 = vmatpush2.bf16.msra.mxu0 %v500
  %685 = vmatprep.subr.bf16.mxu0 0
  %686 = vmatpush2.bf16.msra.mxu0 %v499
  %687 = vmatprep.subr.bf16.mxu0 0
  %688 = vmatpush2.bf16.msra.mxu0 %v498
  %689 = vmatprep.subr.bf16.mxu0 0
  %690 = vmatpush2.bf16.msra.mxu0 %v497
  %691 = vmatprep.subr.bf16.mxu0 0
  %692 = vmatpush2.bf16.msra.mxu0 %v496
  %693 = vmatprep.subr.bf16.mxu0 0
  %694 = vmatpush2.bf16.msra.mxu0 %v495
  %695 = vmatprep.mubr.bf16.mxu0 %v186
  %696 = vmatmul.mubr.bf16.gmra.mxu0 %v172
  %v697 = vpop.f32.mrf.mxu0
  %v698 = vadd.f32 %v658, %v697
  %v699 = vpop.f32.mrf.mxu0
  %v700 = vpop.f32.mrf.mxu0
  %v701 = vpop.f32.mrf.mxu0
  %702 = vdwg.mxu0
  %703 = vmatprep.subr.bf16.mxu0 0
  %704 = vmatpush1.bf16.msra.mxu0 %v510
  %705 = vmatprep.subr.bf16.mxu0 0
  %706 = vmatpush1.bf16.msra.mxu0 %v509
  %707 = vmatprep.subr.bf16.mxu0 0
  %708 = vmatpush1.bf16.msra.mxu0 %v508
  %709 = vmatprep.subr.bf16.mxu0 0
  %710 = vmatpush1.bf16.msra.mxu0 %v507
  %711 = vmatprep.subr.bf16.mxu0 0
  %712 = vmatpush1.bf16.msra.mxu0 %v506
  %713 = vmatprep.subr.bf16.mxu0 0
  %714 = vmatpush1.bf16.msra.mxu0 %v505
  %715 = vmatprep.subr.bf16.mxu0 0
  %716 = vmatpush1.bf16.msra.mxu0 %v504
  %717 = vmatprep.subr.bf16.mxu0 0
  %718 = vmatpush1.bf16.msra.mxu0 %v503
  %719 = vmatprep.subr.bf16.mxu0 0
  %720 = vmatpush2.bf16.msra.mxu0 %v518
  %721 = vmatprep.subr.bf16.mxu0 0
  %722 = vmatpush2.bf16.msra.mxu0 %v517
  %723 = vmatprep.subr.bf16.mxu0 0
  %724 = vmatpush2.bf16.msra.mxu0 %v516
  %725 = vmatprep.subr.bf16.mxu0 0
  %726 = vmatpush2.bf16.msra.mxu0 %v515
  %727 = vmatprep.subr.bf16.mxu0 0
  %728 = vmatpush2.bf16.msra.mxu0 %v514
  %729 = vmatprep.subr.bf16.mxu0 0
  %730 = vmatpush2.bf16.msra.mxu0 %v513
  %731 = vmatprep.subr.bf16.mxu0 0
  %732 = vmatpush2.bf16.msra.mxu0 %v512
  %733 = vmatprep.subr.bf16.mxu0 0
  %734 = vmatpush2.bf16.msra.mxu0 %v511
  %735 = vmatprep.mubr.bf16.mxu0 %v190
  %736 = vmatmul.mubr.bf16.gmra.mxu0 %v188
  %v737 = vpop.f32.mrf.mxu0
  %v738 = vadd.f32 %v698, %v737
  %v739 = vpop.f32.mrf.mxu0
  %v740 = vpop.f32.mrf.mxu0
  %v741 = vpop.f32.mrf.mxu0
  %742 = vdwg.mxu0
  %v743 = vxor.u32 %v738, 2147483648
  %v744 = vmul.f32 %v743, 1.442695
  %v745 = vpow.pop %v744
  %v746 = vadd.f32 %v745, 1.0
  %v747 = vrcp.pop %v746
  %v748 = vmul.f32 1.0, %v747
  %749 = vst [vmem:[%s2] sm:$0x3] %v748
  // Predicated region
  $region10: #{discriminator_forward.9} parent=0 // pred_check
    _
  $region11: #{discriminator_forward.9} parent=0 // pred_check_branch
    %751 = sbr.rel (0) target = $region13
  $region12: #{discriminator_forward.9} parent=0 // pred_region
    _
  $region13: #{discriminator_forward.9} parent=0 // pred_fallthru
    _
  // Predicated region
  $region14: #{discriminator_forward.9} parent=0 // pred_check
    _
  $region15: #{discriminator_forward.9} parent=0 // pred_check_branch
    %753 = sbr.rel (0) target = $region17
  $region16: #{discriminator_forward.9} parent=0 // pred_region
    _
  $region17: #{discriminator_forward.9} parent=0 // pred_fallthru
    _

</llo_original>
